<compile_context>
chip_gen: v7x
topology: tpu7x:2x2x1
jax: 0.10.0
libtpu: 0.0.40
codegen_flags: <defaults>
</compile_context>

<pallas_src>
import math
import functools

import jax
import jax.numpy as jnp
from jax.experimental import pallas as pl
from jax.experimental.pallas import tpu as pltpu

LATENT_DIM = 512
LR_MUL = 0.01
NUM_LAYERS = 4
NEG_SLOPE = 0.2
FLRELU_SCALE = math.sqrt(2.0)


# ----------------------------------------------------------------------------
# Fused Pallas kernel: grid = (group,)
#   gsize_ref : [G] int32 SMEM   true (unpadded) style count per group
#   x_ref     : [1, M, D] f32    zero-padded, flattened group latents (M=B*n_pad)
#   w_ref     : [1, L, D, D] bf16  all 4 pre-scaled transposed weights
#   b_ref     : [1, L, 1, D] f32   all 4 fused biases (bias * lr_mul)
#   o_ref     : [1, M, D] f32    group output
# ----------------------------------------------------------------------------
def _fused_mapper_kernel(gsize_ref, x_ref, w_ref, b_ref, o_ref, *,
                         batch, n_pad, num_layers):
    g = pl.program_id(0)

    # PixelNorm over the style axis (torch dim=1).  Padded style rows are zero,
    # so sum(x^2) over the padded axis is exact; divide by the true group size.
    x = x_ref[0]                                        # [M, D] f32
    m, d = x.shape
    xb = x.reshape(batch, n_pad, d)                     # n_pad % 8 == 0 -> layout-free
    n = gsize_ref[g].astype(jnp.float32)
    mean_sq = jnp.sum(xb * xb, axis=1, keepdims=True) / n          # [B, 1, D]
    h = (xb * jax.lax.rsqrt(mean_sq + jnp.float32(1e-8))).reshape(m, d)

    # 4x EqualLinear with fused leaky-relu, statically unrolled; h carried as a
    # value (no VMEM scratch round-trip):
    #   y = h @ (W*scale).T + bias*lr_mul ; y = leaky_relu(y, 0.2) * sqrt(2)
    for l in range(num_layers):
        w = w_ref[0, l]                                 # [D, D] bf16 (in, out)
        b = b_ref[0, l]                                 # [1, D] f32
        y = jnp.dot(h.astype(jnp.bfloat16), w,
                    preferred_element_type=jnp.float32)  # MXU, f32 accumulate
        y = y + b
        h = jnp.maximum(y, jnp.float32(NEG_SLOPE) * y) * jnp.float32(FLRELU_SCALE)

    o_ref[0] = h.astype(o_ref.dtype)


def run_fused_mapper(xg, w_all, b_all, gsizes, batch, n_pad):
    """xg: [G, M, D] f32; w_all: [G, L, D, D] bf16; b_all: [G, L, 1, D] f32;
    gsizes: [G] int32 (true style counts per group).  Returns [G, M, D] f32."""
    G, M, D = xg.shape
    L = w_all.shape[1]

    kernel = functools.partial(_fused_mapper_kernel,
                               batch=batch, n_pad=n_pad, num_layers=L)

    cost = pl.CostEstimate(
        flops=2 * G * L * M * D * D,
        transcendentals=G * batch * D,                  # rsqrt per (b, d)
        bytes_accessed=(xg.size * 4 + w_all.size * 2 + b_all.size * 4
                        + G * M * D * 4),
    )

    return pl.pallas_call(
        kernel,
        out_shape=jax.ShapeDtypeStruct((G, M, D), jnp.float32),
        grid_spec=pltpu.PrefetchScalarGridSpec(
            num_scalar_prefetch=1,
            grid=(G,),
            in_specs=[
                pl.BlockSpec((1, M, D), lambda g, gs: (g, 0, 0)),
                # Whole per-group weight stack in one block -> one 2 MiB DMA
                # per group, double-buffered across groups by the pipeline.
                pl.BlockSpec((1, L, D, D), lambda g, gs: (g, 0, 0, 0)),
                pl.BlockSpec((1, L, 1, D), lambda g, gs: (g, 0, 0, 0)),
            ],
            out_specs=pl.BlockSpec((1, M, D), lambda g, gs: (g, 0, 0)),
        ),
        compiler_params=pltpu.CompilerParams(
            dimension_semantics=("parallel",)),
        cost_estimate=cost,
    )(gsizes, xg, w_all, b_all)


# ----------------------------------------------------------------------------
# Parameter init (deterministic, mirrors EqualLinear __init__); weights bf16.
# ----------------------------------------------------------------------------
def init_mapper_params(key, latent_dim=LATENT_DIM, lr_mul=LR_MUL):
    # EqualLinear: weight = randn(out, in) / lr_mul ; bias = zeros
    #              scale  = (1 / sqrt(in)) * lr_mul
    scale = (1.0 / math.sqrt(latent_dim)) * lr_mul
    ws, bs = [], []
    for _ in range(NUM_LAYERS):
        key, sub = jax.random.split(key)
        w = jax.random.normal(sub, (latent_dim, latent_dim), jnp.float32) / lr_mul
        b = jnp.zeros((latent_dim,), jnp.float32)
        ws.append(((w * scale).T).astype(jnp.bfloat16))   # fold scale, transpose, bf16
        bs.append((b * lr_mul)[None, :])                  # fold lr_mul into bias
    return jnp.stack(ws), jnp.stack(bs)                   # [L,D,D] bf16, [L,1,D] f32


# ----------------------------------------------------------------------------
# Single Mapper forward (the original module's forward), via the fused kernel.
# ----------------------------------------------------------------------------
def mapper_forward(x, w_stack, b_stack):
    """x: [B, N, D] f32 -> [B, N, D] f32 (PixelNorm over dim=1 + 4x EqualLinear)."""
    B, N, D = x.shape
    n_pad = max(8, -(-N // 8) * 8)
    xp = jnp.pad(x, ((0, 0), (0, n_pad - N), (0, 0))).reshape(1, B * n_pad, D)
    out = run_fused_mapper(xp, w_stack[None], b_stack[None],
                           jnp.asarray([N], jnp.int32), B, n_pad)
    return out.reshape(B, n_pad, D)[:, :N, :]


# ----------------------------------------------------------------------------
# LevelsMapper forward: coarse/medium/fine groups fused into ONE pallas_call.
# ----------------------------------------------------------------------------
def levels_mapper_forward(x, params, opts):
    B, S, D = x.shape
    groups = [("coarse", 0, 4, not opts["no_coarse_mapper"]),
              ("medium", 4, 8, not opts["no_medium_mapper"]),
              ("fine",   8, S, not opts["no_fine_mapper"])]
    active = [g for g in groups if g[3]]

    out_groups = {}
    if active:
        n_pad = max(-(-(s1 - s0) // 8) * 8 for _, s0, s1, _ in active)
        xg_list, w_list, b_list, sizes = [], [], [], []
        for name, s0, s1, _ in active:
            n = s1 - s0
            xs = jnp.pad(x[:, s0:s1, :], ((0, 0), (0, n_pad - n), (0, 0)))
            xg_list.append(xs.reshape(B * n_pad, D))
            w_g, b_g = params[name]
            w_list.append(w_g)
            b_list.append(b_g)
            sizes.append(n)
        xg = jnp.stack(xg_list)                        # [G, M, D] f32
        w_all = jnp.stack(w_list)                      # [G, L, D, D] bf16
        b_all = jnp.stack(b_list)                      # [G, L, 1, D] f32
        gsizes = jnp.asarray(sizes, jnp.int32)
        out = run_fused_mapper(xg, w_all, b_all, gsizes, B, n_pad)
        out = out.reshape(len(active), B, n_pad, D)
        for idx, (name, s0, s1, _) in enumerate(active):
            out_groups[name] = out[idx, :, : s1 - s0, :]

    pieces = []
    for name, s0, s1, enabled in groups:
        pieces.append(out_groups[name] if enabled
                      else jnp.zeros_like(x[:, s0:s1, :]))
    return jnp.concatenate(pieces, axis=1)


# ----------------------------------------------------------------------------
# Pure-JAX references (mirror the kernel's bf16 weight / bf16-activation MXU math)
# ----------------------------------------------------------------------------
def _mapper_ref(x, w_stack, b_stack):
    mean_sq = jnp.mean(x * x, axis=1, keepdims=True)
    h = x * jax.lax.rsqrt(mean_sq + 1e-8)
    for l in range(NUM_LAYERS):
        y = jnp.einsum("bnd,de->bne", h.astype(jnp.bfloat16), w_stack[l],
                       preferred_element_type=jnp.float32) + b_stack[l][None]
        h = jnp.maximum(y, NEG_SLOPE * y) * FLRELU_SCALE
    return h


def _levels_ref(x, params, opts):
    xc, xm, xf = x[:, :4, :], x[:, 4:8, :], x[:, 8:, :]
    xc = _mapper_ref(xc, *params["coarse"]) if not opts["no_coarse_mapper"] else jnp.zeros_like(xc)
    xm = _mapper_ref(xm, *params["medium"]) if not opts["no_medium_mapper"] else jnp.zeros_like(xm)
    xf = _mapper_ref(xf, *params["fine"])   if not opts["no_fine_mapper"]   else jnp.zeros_like(xf)
    return jnp.concatenate([xc, xm, xf], axis=1)


if __name__ == "__main__":
    key = jax.random.PRNGKey(0)
    k_x, k_c, k_m, k_f = jax.random.split(key, 4)

    opts = {"no_coarse_mapper": False, "no_medium_mapper": False, "no_fine_mapper": False}

    B = 2
    x = jax.random.normal(k_x, (B, 18, LATENT_DIM), jnp.float32)

    params = {
        "coarse": init_mapper_params(k_c),
        "medium": init_mapper_params(k_m),
        "fine":   init_mapper_params(k_f),
    }

    # Fused LevelsMapper (3 Mapper groups in one pallas_call, grid=(3,)).
    fwd = jax.jit(lambda x_, p_: levels_mapper_forward(x_, p_, opts))
    out = jax.block_until_ready(fwd(x, params))
    ref = _levels_ref(x, params, opts)
    assert out.shape == (B, 18, LATENT_DIM), out.shape
    assert jnp.allclose(out, ref, atol=2e-2, rtol=2e-2), (
        float(jnp.max(jnp.abs(out - ref)))
    )

    # Single Mapper (the spec module's forward) on the full W+ tensor.
    single = jax.block_until_ready(mapper_forward(x, *params["coarse"]))
    single_ref = _mapper_ref(x, *params["coarse"])
    assert single.shape == (B, 18, LATENT_DIM), single.shape
    assert jnp.allclose(single, single_ref, atol=2e-2, rtol=2e-2), (
        float(jnp.max(jnp.abs(single - single_ref)))
    )

    print("KERNEL_OK")
</pallas_src>

<mosaic_0001>
module attributes {stable_mosaic.version = 11 : i64} {
  func.func @_fused_mapper_kernel(%arg0: i32, %arg1: memref<3xi32, #tpu.memory_space<smem>>, %arg2: memref<1x32x512xf32, #tpu.memory_space<vmem>>, %arg3: memref<1x4x512x512xbf16, #tpu.memory_space<vmem>>, %arg4: memref<1x4x1x512xf32, #tpu.memory_space<vmem>>, %arg5: memref<1x32x512xf32, #tpu.memory_space<vmem>>) attributes {dimension_semantics = [#tpu.dimension_semantics<parallel>], iteration_bounds = array<i64: 3>, scalar_prefetch = 1 : i64, scratch_operands = 0 : i64, tpu.core_type = #tpu.core_type<tc>, window_params = [{transform_indices = @transform_0, window_bounds = array<i64: 1, 32, 512>}, {transform_indices = @transform_1, window_bounds = array<i64: 1, 4, 512, 512>}, {transform_indices = @transform_2, window_bounds = array<i64: 1, 4, 1, 512>}, {transform_indices = @transform_3, window_bounds = array<i64: 1, 32, 512>}]} {
    %c0 = arith.constant 0 : index
    %c0_0 = arith.constant 0 : index
    %c0_1 = arith.constant 0 : index
    %0 = vector.load %arg2[%c0, %c0_0, %c0_1] : memref<1x32x512xf32, #tpu.memory_space<vmem>>, vector<1x32x512xf32>
    %1 = vector.shape_cast %0 : vector<1x32x512xf32> to vector<32x512xf32>
    %2 = vector.shape_cast %1 : vector<32x512xf32> to vector<2x16x512xf32>
    %3 = arith.index_cast %arg0 : i32 to index
    %4 = memref.load %arg1[%3] : memref<3xi32, #tpu.memory_space<smem>>
    %5 = arith.sitofp %4 : i32 to f32
    %6 = arith.mulf %2, %2 : vector<2x16x512xf32>
    %cst = arith.constant dense<0.000000e+00> : vector<2x512xf32>
    %7 = vector.multi_reduction <add>, %6, %cst [1] : vector<2x16x512xf32> to vector<2x512xf32>
    %8 = vector.shape_cast %7 : vector<2x512xf32> to vector<2x1x512xf32>
    %9 = vector.broadcast %5 : f32 to vector<2x1x512xf32>
    %10 = arith.divf %8, %9 : vector<2x1x512xf32>
    %cst_2 = arith.constant 9.99999993E-9 : f32
    %11 = vector.broadcast %cst_2 : f32 to vector<2x1x512xf32>
    %12 = arith.addf %10, %11 : vector<2x1x512xf32>
    %13 = math.rsqrt %12 : vector<2x1x512xf32>
    %14 = vector.broadcast %13 : vector<2x1x512xf32> to vector<2x16x512xf32>
    %15 = arith.mulf %2, %14 : vector<2x16x512xf32>
    %16 = vector.shape_cast %15 : vector<2x16x512xf32> to vector<32x512xf32>
    %c0_3 = arith.constant 0 : index
    %c0_4 = arith.constant 0 : index
    %c0_5 = arith.constant 0 : index
    %c0_6 = arith.constant 0 : index
    %17 = vector.load %arg3[%c0_3, %c0_4, %c0_5, %c0_6] : memref<1x4x512x512xbf16, #tpu.memory_space<vmem>>, vector<1x1x512x512xbf16>
    %18 = vector.shape_cast %17 : vector<1x1x512x512xbf16> to vector<512x512xbf16>
    %c0_7 = arith.constant 0 : index
    %c0_8 = arith.constant 0 : index
    %c0_9 = arith.constant 0 : index
    %c0_10 = arith.constant 0 : index
    %19 = vector.load %arg4[%c0_7, %c0_8, %c0_9, %c0_10] : memref<1x4x1x512xf32, #tpu.memory_space<vmem>>, vector<1x1x1x512xf32>
    %20 = vector.shape_cast %19 : vector<1x1x1x512xf32> to vector<1x512xf32>
    %21 = arith.truncf %16 : vector<32x512xf32> to vector<32x512xbf16>
    %cst_11 = arith.constant dense<0.000000e+00> : vector<32x512xf32>
    %22 = tpu.matmul %21, %18, %cst_11 {dimension_numbers = #tpu.dot_dimension_numbers<[1], [0], [0], [1], [0, 0, 1, 1], [], []>} : vector<32x512xbf16>, vector<512x512xbf16>, vector<32x512xf32> -> vector<32x512xf32>
    %23 = vector.broadcast %20 : vector<1x512xf32> to vector<32x512xf32>
    %24 = arith.addf %22, %23 : vector<32x512xf32>
    %cst_12 = arith.constant 2.000000e-01 : f32
    %25 = vector.broadcast %cst_12 : f32 to vector<32x512xf32>
    %26 = arith.mulf %25, %24 : vector<32x512xf32>
    %27 = arith.maximumf %24, %26 : vector<32x512xf32>
    %cst_13 = arith.constant 1.41421354 : f32
    %28 = vector.broadcast %cst_13 : f32 to vector<32x512xf32>
    %29 = arith.mulf %27, %28 : vector<32x512xf32>
    %c0_14 = arith.constant 0 : index
    %c1 = arith.constant 1 : index
    %c0_15 = arith.constant 0 : index
    %c0_16 = arith.constant 0 : index
    %30 = vector.load %arg3[%c0_14, %c1, %c0_15, %c0_16] : memref<1x4x512x512xbf16, #tpu.memory_space<vmem>>, vector<1x1x512x512xbf16>
    %31 = vector.shape_cast %30 : vector<1x1x512x512xbf16> to vector<512x512xbf16>
    %c0_17 = arith.constant 0 : index
    %c1_18 = arith.constant 1 : index
    %c0_19 = arith.constant 0 : index
    %c0_20 = arith.constant 0 : index
    %32 = vector.load %arg4[%c0_17, %c1_18, %c0_19, %c0_20] : memref<1x4x1x512xf32, #tpu.memory_space<vmem>>, vector<1x1x1x512xf32>
    %33 = vector.shape_cast %32 : vector<1x1x1x512xf32> to vector<1x512xf32>
    %34 = arith.truncf %29 : vector<32x512xf32> to vector<32x512xbf16>
    %cst_21 = arith.constant dense<0.000000e+00> : vector<32x512xf32>
    %35 = tpu.matmul %34, %31, %cst_21 {dimension_numbers = #tpu.dot_dimension_numbers<[1], [0], [0], [1], [0, 0, 1, 1], [], []>} : vector<32x512xbf16>, vector<512x512xbf16>, vector<32x512xf32> -> vector<32x512xf32>
    %36 = vector.broadcast %33 : vector<1x512xf32> to vector<32x512xf32>
    %37 = arith.addf %35, %36 : vector<32x512xf32>
    %cst_22 = arith.constant 2.000000e-01 : f32
    %38 = vector.broadcast %cst_22 : f32 to vector<32x512xf32>
    %39 = arith.mulf %38, %37 : vector<32x512xf32>
    %40 = arith.maximumf %37, %39 : vector<32x512xf32>
    %cst_23 = arith.constant 1.41421354 : f32
    %41 = vector.broadcast %cst_23 : f32 to vector<32x512xf32>
    %42 = arith.mulf %40, %41 : vector<32x512xf32>
    %c0_24 = arith.constant 0 : index
    %c2 = arith.constant 2 : index
    %c0_25 = arith.constant 0 : index
    %c0_26 = arith.constant 0 : index
    %43 = vector.load %arg3[%c0_24, %c2, %c0_25, %c0_26] : memref<1x4x512x512xbf16, #tpu.memory_space<vmem>>, vector<1x1x512x512xbf16>
    %44 = vector.shape_cast %43 : vector<1x1x512x512xbf16> to vector<512x512xbf16>
    %c0_27 = arith.constant 0 : index
    %c2_28 = arith.constant 2 : index
    %c0_29 = arith.constant 0 : index
    %c0_30 = arith.constant 0 : index
    %45 = vector.load %arg4[%c0_27, %c2_28, %c0_29, %c0_30] : memref<1x4x1x512xf32, #tpu.memory_space<vmem>>, vector<1x1x1x512xf32>
    %46 = vector.shape_cast %45 : vector<1x1x1x512xf32> to vector<1x512xf32>
    %47 = arith.truncf %42 : vector<32x512xf32> to vector<32x512xbf16>
    %cst_31 = arith.constant dense<0.000000e+00> : vector<32x512xf32>
    %48 = tpu.matmul %47, %44, %cst_31 {dimension_numbers = #tpu.dot_dimension_numbers<[1], [0], [0], [1], [0, 0, 1, 1], [], []>} : vector<32x512xbf16>, vector<512x512xbf16>, vector<32x512xf32> -> vector<32x512xf32>
    %49 = vector.broadcast %46 : vector<1x512xf32> to vector<32x512xf32>
    %50 = arith.addf %48, %49 : vector<32x512xf32>
    %cst_32 = arith.constant 2.000000e-01 : f32
    %51 = vector.broadcast %cst_32 : f32 to vector<32x512xf32>
    %52 = arith.mulf %51, %50 : vector<32x512xf32>
    %53 = arith.maximumf %50, %52 : vector<32x512xf32>
    %cst_33 = arith.constant 1.41421354 : f32
    %54 = vector.broadcast %cst_33 : f32 to vector<32x512xf32>
    %55 = arith.mulf %53, %54 : vector<32x512xf32>
    %c0_34 = arith.constant 0 : index
    %c3 = arith.constant 3 : index
    %c0_35 = arith.constant 0 : index
    %c0_36 = arith.constant 0 : index
    %56 = vector.load %arg3[%c0_34, %c3, %c0_35, %c0_36] : memref<1x4x512x512xbf16, #tpu.memory_space<vmem>>, vector<1x1x512x512xbf16>
    %57 = vector.shape_cast %56 : vector<1x1x512x512xbf16> to vector<512x512xbf16>
    %c0_37 = arith.constant 0 : index
    %c3_38 = arith.constant 3 : index
    %c0_39 = arith.constant 0 : index
    %c0_40 = arith.constant 0 : index
    %58 = vector.load %arg4[%c0_37, %c3_38, %c0_39, %c0_40] : memref<1x4x1x512xf32, #tpu.memory_space<vmem>>, vector<1x1x1x512xf32>
    %59 = vector.shape_cast %58 : vector<1x1x1x512xf32> to vector<1x512xf32>
    %60 = arith.truncf %55 : vector<32x512xf32> to vector<32x512xbf16>
    %cst_41 = arith.constant dense<0.000000e+00> : vector<32x512xf32>
    %61 = tpu.matmul %60, %57, %cst_41 {dimension_numbers = #tpu.dot_dimension_numbers<[1], [0], [0], [1], [0, 0, 1, 1], [], []>} : vector<32x512xbf16>, vector<512x512xbf16>, vector<32x512xf32> -> vector<32x512xf32>
    %62 = vector.broadcast %59 : vector<1x512xf32> to vector<32x512xf32>
    %63 = arith.addf %61, %62 : vector<32x512xf32>
    %cst_42 = arith.constant 2.000000e-01 : f32
    %64 = vector.broadcast %cst_42 : f32 to vector<32x512xf32>
    %65 = arith.mulf %64, %63 : vector<32x512xf32>
    %66 = arith.maximumf %63, %65 : vector<32x512xf32>
    %cst_43 = arith.constant 1.41421354 : f32
    %67 = vector.broadcast %cst_43 : f32 to vector<32x512xf32>
    %68 = arith.mulf %66, %67 : vector<32x512xf32>
    %c0_44 = arith.constant 0 : index
    %c0_45 = arith.constant 0 : index
    %c0_46 = arith.constant 0 : index
    %69 = vector.load %arg5[%c0_44, %c0_45, %c0_46] : memref<1x32x512xf32, #tpu.memory_space<vmem>>, vector<1x32x512xf32>
    %70 = vector.shape_cast %69 : vector<1x32x512xf32> to vector<32x512xf32>
    %71 = vector.shape_cast %68 : vector<32x512xf32> to vector<1x32x512xf32>
    tpu.vector_store %arg5[%c0_44, %c0_45, %c0_46], %71 {strides = array<i32>} : memref<1x32x512xf32, #tpu.memory_space<vmem>>, vector<1x32x512xf32>,
    return
  }
  func.func @transform_0(%arg0: i32, %arg1: memref<3xi32, #tpu.memory_space<smem>>) -> (i32, i32, i32) {
    %c0_i32 = arith.constant 0 : i32
    %c0_i32_0 = arith.constant 0 : i32
    %c0_i32_1 = arith.constant 0 : i32
    return %arg0, %c0_i32, %c0_i32_0 : i32, i32, i32
  }
  func.func @transform_1(%arg0: i32, %arg1: memref<3xi32, #tpu.memory_space<smem>>) -> (i32, i32, i32, i32) {
    %c0_i32 = arith.constant 0 : i32
    %c0_i32_0 = arith.constant 0 : i32
    %c0_i32_1 = arith.constant 0 : i32
    %c0_i32_2 = arith.constant 0 : i32
    return %arg0, %c0_i32, %c0_i32_0, %c0_i32_1 : i32, i32, i32, i32
  }
  func.func @transform_2(%arg0: i32, %arg1: memref<3xi32, #tpu.memory_space<smem>>) -> (i32, i32, i32, i32) {
    %c0_i32 = arith.constant 0 : i32
    %c0_i32_0 = arith.constant 0 : i32
    %c0_i32_1 = arith.constant 0 : i32
    %c0_i32_2 = arith.constant 0 : i32
    return %arg0, %c0_i32, %c0_i32_0, %c0_i32_1 : i32, i32, i32, i32
  }
  func.func @transform_3(%arg0: i32, %arg1: memref<3xi32, #tpu.memory_space<smem>>) -> (i32, i32, i32) {
    %c0_i32 = arith.constant 0 : i32
    %c0_i32_0 = arith.constant 0 : i32
    %c0_i32_1 = arith.constant 0 : i32
    return %arg0, %c0_i32, %c0_i32_0 : i32, i32, i32
  }
}

</mosaic_0001>

<llo_original>
// kernel: _lambda_.1
$region0: #{_lambda_.1}
  #allocation0 [shape = 'u32[]', space=smem, size = 0x4, offset = 0x4, fixed_abs, tag = 'smem constant byte address 0x4 - core index']
  #allocation1 [shape = 'u32[144,128]{1,0:T(1,128)}', space=vmem, size = 0x12000, scoped, tag = 'internal scratch']
  #allocation2 [shape = 's32[1]{0}', space=sflag, size = 0x4, scoped, tag = 'scoped memory for _lambda_.1']
  #allocation3 [shape = 'u8[512]{0}', space=smem, size = 0x200, scoped, tag = 'prefetched SMEM operand 0']
  %s0 = inlined_call_operand.vmem [shape: s32[3], index: 0, kind: input, shape index: {}]
  %s1 = inlined_call_operand.vmem [shape: f32[3,32,512], index: 1, kind: input, shape index: {}]
  %s2 = inlined_call_operand.vmem [shape: bf16[3,4,512,512], index: 2, kind: input, shape index: {}]
  %s3 = inlined_call_operand.vmem [shape: f32[3,4,1,512], index: 3, kind: input, shape index: {}]
  %s4 = inlined_call_operand.vmem [shape: f32[3,32,512], index: 4, kind: output, shape index: {}]
  %s5 = sld [smem:[#allocation0]]
  $region45: #{_lambda_.1} parent=0
    _
  %s7 = ssub.s32 1, %s5
  %s8 = scalar_select 0, %s7, %s5
  %s9 = sshll.u32 %s0, 4
  %s10 = int_to_ptr.vmem [resolvable:$true] %s9
  %12 = dma.vmem_to_smem %s10, 16, [#allocation3], [#allocation2]
  %13 = dma.done [#allocation2], 16
  %14 = sfence
  loop: start=0, step=1, limit=5
  $region2: #{_lambda_.1} parent=0 // loop_pre_header
    _
  $region3: #{_lambda_.1} parent=0 // loop_header
    %s16 = sphi 0, %s20
    %p17 = scmp.ge.s32.totalorder %s16, 5
    %s26 = sphi 0, %s28
    %s29 = sphi 0, %s26
    %s30 = sphi 0, %s29
    %s46 = sphi 0, %s30
    %s52 = sphi 0, %s54
    %s55 = sphi 0, %s52
    %s56 = sphi 0, %s55
    %s72 = sphi 0, %s56
    %s78 = sphi 0, %s80
    %s81 = sphi 0, %s78
    %s82 = sphi 0, %s81
    %s98 = sphi 0, %s82
    %s104 = sphi 0, %s106
    %s107 = sphi 0, %s104
    %s108 = sphi 0, %s107
    %s124 = sphi 0, %s108
  $region4: #{_lambda_.1} parent=0 // loop_header_branch
    %19 = sbr.rel (%p17) target = $region8
  $region5: #{_lambda_.1} parent=0 // loop_body
    %s21 = ssub.s32 %s16, 1
    %s22 = ssub.s32 %s16, 2
    %s23 = sadd.s32 %s16, 1
    %s24 = ssub.s32 %s16, %s23
    %p25 = scmp.eq.s32.totalorder %s24, 0
    %s27 = sadd.s32 %s26, 1
    %s28 = scalar_select %p25, %s26, %s27
    %p31 = pneg %p25
    %p32 = scmp.eq.s32.totalorder %s16, 2
    %p33 = por %p31, %p32
    %p34 = scmp.ne.s32.totalorder %s26, %s29
    %p35 = scmp.eq.s32.totalorder %s16, 0
    %p36 = por %p34, %p35
    %p37 = scmp.ne.s32.totalorder %s26, %s29
    %p38 = scmp.eq.s32.totalorder %s21, 2
    %p39 = por %p37, %p38
    %p40 = scmp.ne.s32.totalorder %s29, %s30
    %p41 = scmp.eq.s32.totalorder %s21, 0
    %p42 = por %p40, %p41
    %p43 = scmp.ne.s32.totalorder %s29, %s30
    %p44 = scmp.eq.s32.totalorder %s22, 2
    %p45 = por %p43, %p44
    %p47 = scmp.ne.s32.totalorder %s30, %s46
    %p48 = scmp.eq.s32.totalorder %s22, 0
    %p49 = por %p47, %p48
    %s50 = ssub.s32 %s16, %s23
    %p51 = scmp.eq.s32.totalorder %s50, 0
    %s53 = sadd.s32 %s52, 1
    %s54 = scalar_select %p51, %s52, %s53
    %p57 = pneg %p51
    %p58 = scmp.eq.s32.totalorder %s16, 2
    %p59 = por %p57, %p58
    %p60 = scmp.ne.s32.totalorder %s52, %s55
    %p61 = scmp.eq.s32.totalorder %s16, 0
    %p62 = por %p60, %p61
    %p63 = scmp.ne.s32.totalorder %s52, %s55
    %p64 = scmp.eq.s32.totalorder %s21, 2
    %p65 = por %p63, %p64
    %p66 = scmp.ne.s32.totalorder %s55, %s56
    %p67 = scmp.eq.s32.totalorder %s21, 0
    %p68 = por %p66, %p67
    %p69 = scmp.ne.s32.totalorder %s55, %s56
    %p70 = scmp.eq.s32.totalorder %s22, 2
    %p71 = por %p69, %p70
    %p73 = scmp.ne.s32.totalorder %s56, %s72
    %p74 = scmp.eq.s32.totalorder %s22, 0
    %p75 = por %p73, %p74
    %s76 = ssub.s32 %s16, %s23
    %p77 = scmp.eq.s32.totalorder %s76, 0
    %s79 = sadd.s32 %s78, 1
    %s80 = scalar_select %p77, %s78, %s79
    %p83 = pneg %p77
    %p84 = scmp.eq.s32.totalorder %s16, 2
    %p85 = por %p83, %p84
    %p86 = scmp.ne.s32.totalorder %s78, %s81
    %p87 = scmp.eq.s32.totalorder %s16, 0
    %p88 = por %p86, %p87
    %p89 = scmp.ne.s32.totalorder %s78, %s81
    %p90 = scmp.eq.s32.totalorder %s21, 2
    %p91 = por %p89, %p90
    %p92 = scmp.ne.s32.totalorder %s81, %s82
    %p93 = scmp.eq.s32.totalorder %s21, 0
    %p94 = por %p92, %p93
    %p95 = scmp.ne.s32.totalorder %s81, %s82
    %p96 = scmp.eq.s32.totalorder %s22, 2
    %p97 = por %p95, %p96
    %p99 = scmp.ne.s32.totalorder %s82, %s98
    %p100 = scmp.eq.s32.totalorder %s22, 0
    %p101 = por %p99, %p100
    %s102 = ssub.s32 %s16, %s23
    %p103 = scmp.eq.s32.totalorder %s102, 0
    %s105 = sadd.s32 %s104, 1
    %s106 = scalar_select %p103, %s104, %s105
    %p109 = pneg %p103
    %p110 = scmp.eq.s32.totalorder %s16, 2
    %p111 = por %p109, %p110
    %p112 = scmp.ne.s32.totalorder %s104, %s107
    %p113 = scmp.eq.s32.totalorder %s16, 0
    %p114 = por %p112, %p113
    %p115 = scmp.ne.s32.totalorder %s104, %s107
    %p116 = scmp.eq.s32.totalorder %s21, 2
    %p117 = por %p115, %p116
    %p118 = scmp.ne.s32.totalorder %s107, %s108
    %p119 = scmp.eq.s32.totalorder %s21, 0
    %p120 = por %p118, %p119
    %p121 = scmp.ne.s32.totalorder %s107, %s108
    %p122 = scmp.eq.s32.totalorder %s22, 2
    %p123 = por %p121, %p122
    %p125 = scmp.ne.s32.totalorder %s108, %s124
    %p126 = scmp.eq.s32.totalorder %s22, 0
    %p127 = por %p125, %p126
    %p128 = scmp.le.s32.totalorder 1, %s16
    %p129 = scmp.lt.s32.totalorder %s16, 4
    %p130 = pnand %p128, %p129
    %p131 = pneg %p130
    // Predicated region
    $region9: #{_lambda_.1} parent=5 // pred_check
      _
    $region10: #{_lambda_.1} parent=5 // pred_check_branch
      %133 = sbr.rel (%p130) target = $region12
    $region11: #{_lambda_.1} parent=5 // pred_region
      %s134 = ssub.s32 %s16, 1
    $region12: #{_lambda_.1} parent=5 // pred_fallthru
      _
    %p135 = scmp.lt.s32.totalorder %s16, 3
    // Predicated region
    $region13: #{_lambda_.1} parent=5 // pred_check
      %p136 = pneg %p135
    $region14: #{_lambda_.1} parent=5 // pred_check_branch
      %138 = sbr.rel (%p136) target = $region16
    $region15: #{_lambda_.1} parent=5 // pred_region
      // Predicated region
      $region17: #{_lambda_.1} parent=15 // pred_check
        %p139 = pneg %p36
      $region18: #{_lambda_.1} parent=15 // pred_check_branch
        %141 = sbr.rel (%p139) target = $region20
      $region19: #{_lambda_.1} parent=15 // pred_region
        %p142 = scmp.lt.s32.totalorder %s16, 2
        %s143 = scalar_select %p142, %s16, 2
        %s144 = smul.addr %s143, 16
        %s145 = smul.addr %s144, 8
        %s146 = scalar_lea.vmem %s1, %s145
      $region20: #{_lambda_.1} parent=15 // pred_fallthru
        _
      // Predicated region
      $region21: #{_lambda_.1} parent=15 // pred_check
        %p147 = pneg %p62
      $region22: #{_lambda_.1} parent=15 // pred_check_branch
        %149 = sbr.rel (%p147) target = $region24
      $region23: #{_lambda_.1} parent=15 // pred_region
        %p150 = scmp.lt.s32.totalorder %s16, 2
        %s151 = scalar_select %p150, %s16, 2
        %s152 = smul.addr %s151, 1024
        %s153 = smul.addr %s152, 4
        %s154 = scalar_lea.vmem %s2, %s153
      $region24: #{_lambda_.1} parent=15 // pred_fallthru
        _
      // Predicated region
      $region25: #{_lambda_.1} parent=15 // pred_check
        %p155 = pneg %p88
      $region26: #{_lambda_.1} parent=15 // pred_check_branch
        %157 = sbr.rel (%p155) target = $region28
      $region27: #{_lambda_.1} parent=15 // pred_region
        %p158 = scmp.lt.s32.totalorder %s16, 2
        %s159 = scalar_select %p158, %s16, 2
        %s160 = smul.addr %s159, 16
        %s161 = scalar_lea.vmem %s3, %s160
      $region28: #{_lambda_.1} parent=15 // pred_fallthru
        _
    $region16: #{_lambda_.1} parent=5 // pred_fallthru
      _
    %p162 = scmp.le.s32.totalorder 1, %s16
    %p163 = scmp.lt.s32.totalorder %s16, 4
    %p164 = pnand %p162, %p163
    %p165 = pneg %p164
    // Predicated region
    $region29: #{_lambda_.1} parent=5 // pred_check
      _
    $region30: #{_lambda_.1} parent=5 // pred_check_branch
      %167 = sbr.rel (%p164) target = $region32
    $region31: #{_lambda_.1} parent=5 // pred_region
      %s168 = ssub.s32 %s16, 1
      %p169 = scmp.lt.s32.totalorder %s21, 2
      %s170 = scalar_select %p169, %s21, 2
      %s171 = smul.addr %s170, 16
      %s172 = smul.addr %s171, 8
      %s173 = scalar_lea.vmem %s1, %s172
      %p174 = pneg %p42
      %p175 = pneg %p39
      %p176 = scmp.lt.s32.totalorder %s21, 2
      %s177 = scalar_select %p176, %s21, 2
      %s178 = smul.addr %s177, 1024
      %s179 = smul.addr %s178, 4
      %s180 = scalar_lea.vmem %s2, %s179
      %p181 = pneg %p68
      %p182 = pneg %p65
      %p183 = scmp.lt.s32.totalorder %s21, 2
      %s184 = scalar_select %p183, %s21, 2
      %s185 = smul.addr %s184, 16
      %s186 = scalar_lea.vmem %s3, %s185
      %p187 = pneg %p94
      %p188 = pneg %p91
      %p189 = pneg %p120
      %p190 = pneg %p117
      %p191 = scmp.lt.s32.totalorder %s21, 2
      %s192 = scalar_select %p191, %s21, 2
      %s193 = smul.addr %s192, 16
      %s194 = smul.addr %s193, 8
      %s195 = scalar_lea.vmem %s4, %s194
      %p196 = scmp.lt.s32.totalorder %s21, 2
      %s197 = scalar_select %p196, %s21, 2
      %s198 = smul.addr %s197, 16
      %s199 = smul.addr %s198, 8
      %s200 = scalar_lea.vmem %s1, %s199
      %p201 = scmp.lt.s32.totalorder %s21, 2
      %s202 = scalar_select %p201, %s21, 2
      %s203 = smul.addr %s202, 1024
      %s204 = smul.addr %s203, 4
      %s205 = scalar_lea.vmem %s2, %s204
      %p206 = scmp.lt.s32.totalorder %s21, 2
      %s207 = scalar_select %p206, %s21, 2
      %s208 = smul.addr %s207, 16
      %s209 = scalar_lea.vmem %s3, %s208
      %p210 = scmp.lt.s32.totalorder %s21, 2
      %s211 = scalar_select %p210, %s21, 2
      %s212 = smul.addr %s211, 16
      %s213 = smul.addr %s212, 8
      %s214 = scalar_lea.vmem %s4, %s213
      %v215 = vld [vmem:[%s200] sm:$0xff]
      %v216 = vld [vmem:[%s200 + $0x8] sm:$0xff]
      %v217 = vld [vmem:[%s200 + $0x10] sm:$0xff]
      %v218 = vld [vmem:[%s200 + $0x18] sm:$0xff]
      %v219 = vld [vmem:[%s200 + $0x20] sm:$0xff]
      %v220 = vld [vmem:[%s200 + $0x28] sm:$0xff]
      %v221 = vld [vmem:[%s200 + $0x30] sm:$0xff]
      %v222 = vld [vmem:[%s200 + $0x38] sm:$0xff]
      %v223 = vld [vmem:[%s200 + $0x40] sm:$0xff]
      %v224 = vld [vmem:[%s200 + $0x48] sm:$0xff]
      %v225 = vld [vmem:[%s200 + $0x50] sm:$0xff]
      %v226 = vld [vmem:[%s200 + $0x58] sm:$0xff]
      %v227 = vld [vmem:[%s200 + $0x60] sm:$0xff]
      %v228 = vld [vmem:[%s200 + $0x68] sm:$0xff]
      %v229 = vld [vmem:[%s200 + $0x70] sm:$0xff]
      %v230 = vld [vmem:[%s200 + $0x78] sm:$0xff]
      %s231 = sld [smem:[#allocation3 + %s21]]
      %s232 = scvt.s32.f32 %s231
      %v233 = vmul.f32 %v215, %v215
      %v234 = vmul.f32 %v216, %v216
      %v235 = vmul.f32 %v217, %v217
      %v236 = vmul.f32 %v218, %v218
      %v237 = vmul.f32 %v219, %v219
      %v238 = vmul.f32 %v220, %v220
      %v239 = vmul.f32 %v221, %v221
      %v240 = vmul.f32 %v222, %v222
      %v241 = vmul.f32 %v223, %v223
      %v242 = vmul.f32 %v224, %v224
      %v243 = vmul.f32 %v225, %v225
      %v244 = vmul.f32 %v226, %v226
      %v245 = vmul.f32 %v227, %v227
      %v246 = vmul.f32 %v228, %v228
      %v247 = vmul.f32 %v229, %v229
      %v248 = vmul.f32 %v230, %v230
      %v249 = vadd.f32 %v233, %v237
      %v250 = vrot.slane %v249, 4
      %v251 = vadd.f32 %v249, %v250
      %v252 = vrot.slane %v251, 2
      %v253 = vadd.f32 %v251, %v252
      %v254 = vrot.slane %v253, 1
      %v255 = vadd.f32 %v253, %v254
      %v256 = vadd.f32 %v234, %v238
      %v257 = vrot.slane %v256, 4
      %v258 = vadd.f32 %v256, %v257
      %v259 = vrot.slane %v258, 2
      %v260 = vadd.f32 %v258, %v259
      %v261 = vrot.slane %v260, 1
      %v262 = vadd.f32 %v260, %v261
      %v263 = vadd.f32 %v235, %v239
      %v264 = vrot.slane %v263, 4
      %v265 = vadd.f32 %v263, %v264
      %v266 = vrot.slane %v265, 2
      %v267 = vadd.f32 %v265, %v266
      %v268 = vrot.slane %v267, 1
      %v269 = vadd.f32 %v267, %v268
      %v270 = vadd.f32 %v236, %v240
      %v271 = vrot.slane %v270, 4
      %v272 = vadd.f32 %v270, %v271
      %v273 = vrot.slane %v272, 2
      %v274 = vadd.f32 %v272, %v273
      %v275 = vrot.slane %v274, 1
      %v276 = vadd.f32 %v274, %v275
      %v277 = vadd.f32 %v241, %v245
      %v278 = vrot.slane %v277, 4
      %v279 = vadd.f32 %v277, %v278
      %v280 = vrot.slane %v279, 2
      %v281 = vadd.f32 %v279, %v280
      %v282 = vrot.slane %v281, 1
      %v283 = vadd.f32 %v281, %v282
      %v284 = vadd.f32 %v242, %v246
      %v285 = vrot.slane %v284, 4
      %v286 = vadd.f32 %v284, %v285
      %v287 = vrot.slane %v286, 2
      %v288 = vadd.f32 %v286, %v287
      %v289 = vrot.slane %v288, 1
      %v290 = vadd.f32 %v288, %v289
      %v291 = vadd.f32 %v243, %v247
      %v292 = vrot.slane %v291, 4
      %v293 = vadd.f32 %v291, %v292
      %v294 = vrot.slane %v293, 2
      %v295 = vadd.f32 %v293, %v294
      %v296 = vrot.slane %v295, 1
      %v297 = vadd.f32 %v295, %v296
      %v298 = vadd.f32 %v244, %v248
      %v299 = vrot.slane %v298, 4
      %v300 = vadd.f32 %v298, %v299
      %v301 = vrot.slane %v300, 2
      %v302 = vadd.f32 %v300, %v301
      %v303 = vrot.slane %v302, 1
      %v304 = vadd.f32 %v302, %v303
      %v305 = vstv %s232
      %v306 = vrcp.pop %v305
      %v307 = vmul.f32 %v255, %v306
      %v308 = vmul.f32 %v262, %v306
      %v309 = vmul.f32 %v269, %v306
      %v310 = vmul.f32 %v276, %v306
      %v311 = vmul.f32 %v283, %v306
      %v312 = vmul.f32 %v290, %v306
      %v313 = vmul.f32 %v297, %v306
      %v314 = vmul.f32 %v304, %v306
      %v315 = vadd.f32 %v307, 1e-08
      %v316 = vadd.f32 %v308, 1e-08
      %v317 = vadd.f32 %v309, 1e-08
      %v318 = vadd.f32 %v310, 1e-08
      %v319 = vadd.f32 %v311, 1e-08
      %v320 = vadd.f32 %v312, 1e-08
      %v321 = vadd.f32 %v313, 1e-08
      %v322 = vadd.f32 %v314, 1e-08
      %v323 = vrsqrt.pop %v315
      %v324 = vrsqrt.pop %v316
      %v325 = vrsqrt.pop %v317
      %v326 = vrsqrt.pop %v318
      %v327 = vrsqrt.pop %v319
      %v328 = vrsqrt.pop %v320
      %v329 = vrsqrt.pop %v321
      %v330 = vrsqrt.pop %v322
      %v331 = vmul.f32 %v215, %v323
      %v332 = vmul.f32 %v216, %v324
      %v333 = vmul.f32 %v217, %v325
      %v334 = vmul.f32 %v218, %v326
      %v335 = vmul.f32 %v219, %v323
      %v336 = vmul.f32 %v220, %v324
      %v337 = vmul.f32 %v221, %v325
      %v338 = vmul.f32 %v222, %v326
      %v339 = vmul.f32 %v223, %v327
      %v340 = vmul.f32 %v224, %v328
      %v341 = vmul.f32 %v225, %v329
      %v342 = vmul.f32 %v226, %v330
      %v343 = vmul.f32 %v227, %v327
      %v344 = vmul.f32 %v228, %v328
      %v345 = vmul.f32 %v229, %v329
      %v346 = vmul.f32 %v230, %v330
      %v347 = vld [vmem:[%s205] sm:$0xff]
      %v348 = vld [vmem:[%s205 + $0x8] sm:$0xff]
      %v349 = vld [vmem:[%s205 + $0x10] sm:$0xff]
      %v350 = vld [vmem:[%s205 + $0x18] sm:$0xff]
      %v351 = vld [vmem:[%s205 + $0x20] sm:$0xff]
      %v352 = vld [vmem:[%s205 + $0x28] sm:$0xff]
      %v353 = vld [vmem:[%s205 + $0x30] sm:$0xff]
      %v354 = vld [vmem:[%s205 + $0x38] sm:$0xff]
      %v355 = vld [vmem:[%s205 + $0x40] sm:$0xff]
      %v356 = vld [vmem:[%s205 + $0x48] sm:$0xff]
      %v357 = vld [vmem:[%s205 + $0x50] sm:$0xff]
      %v358 = vld [vmem:[%s205 + $0x58] sm:$0xff]
      %v359 = vld [vmem:[%s205 + $0x60] sm:$0xff]
      %v360 = vld [vmem:[%s205 + $0x68] sm:$0xff]
      %v361 = vld [vmem:[%s205 + $0x70] sm:$0xff]
      %v362 = vld [vmem:[%s205 + $0x78] sm:$0xff]
      %v363 = vld [vmem:[%s205 + $0x80] sm:$0xff]
      %v364 = vld [vmem:[%s205 + $0x88] sm:$0xff]
      %v365 = vld [vmem:[%s205 + $0x90] sm:$0xff]
      %v366 = vld [vmem:[%s205 + $0x98] sm:$0xff]
      %v367 = vld [vmem:[%s205 + $0xa0] sm:$0xff]
      %v368 = vld [vmem:[%s205 + $0xa8] sm:$0xff]
      %v369 = vld [vmem:[%s205 + $0xb0] sm:$0xff]
      %v370 = vld [vmem:[%s205 + $0xb8] sm:$0xff]
      %v371 = vld [vmem:[%s205 + $0xc0] sm:$0xff]
      %v372 = vld [vmem:[%s205 + $0xc8] sm:$0xff]
      %v373 = vld [vmem:[%s205 + $0xd0] sm:$0xff]
      %v374 = vld [vmem:[%s205 + $0xd8] sm:$0xff]
      %v375 = vld [vmem:[%s205 + $0xe0] sm:$0xff]
      %v376 = vld [vmem:[%s205 + $0xe8] sm:$0xff]
      %v377 = vld [vmem:[%s205 + $0xf0] sm:$0xff]
      %v378 = vld [vmem:[%s205 + $0xf8] sm:$0xff]
      %v379 = vld [vmem:[%s205 + $0x100] sm:$0xff]
      %v380 = vld [vmem:[%s205 + $0x108] sm:$0xff]
      %v381 = vld [vmem:[%s205 + $0x110] sm:$0xff]
      %v382 = vld [vmem:[%s205 + $0x118] sm:$0xff]
      %v383 = vld [vmem:[%s205 + $0x120] sm:$0xff]
      %v384 = vld [vmem:[%s205 + $0x128] sm:$0xff]
      %v385 = vld [vmem:[%s205 + $0x130] sm:$0xff]
      %v386 = vld [vmem:[%s205 + $0x138] sm:$0xff]
      %v387 = vld [vmem:[%s205 + $0x140] sm:$0xff]
      %v388 = vld [vmem:[%s205 + $0x148] sm:$0xff]
      %v389 = vld [vmem:[%s205 + $0x150] sm:$0xff]
      %v390 = vld [vmem:[%s205 + $0x158] sm:$0xff]
      %v391 = vld [vmem:[%s205 + $0x160] sm:$0xff]
      %v392 = vld [vmem:[%s205 + $0x168] sm:$0xff]
      %v393 = vld [vmem:[%s205 + $0x170] sm:$0xff]
      %v394 = vld [vmem:[%s205 + $0x178] sm:$0xff]
      %v395 = vld [vmem:[%s205 + $0x180] sm:$0xff]
      %v396 = vld [vmem:[%s205 + $0x188] sm:$0xff]
      %v397 = vld [vmem:[%s205 + $0x190] sm:$0xff]
      %v398 = vld [vmem:[%s205 + $0x198] sm:$0xff]
      %v399 = vld [vmem:[%s205 + $0x1a0] sm:$0xff]
      %v400 = vld [vmem:[%s205 + $0x1a8] sm:$0xff]
      %v401 = vld [vmem:[%s205 + $0x1b0] sm:$0xff]
      %v402 = vld [vmem:[%s205 + $0x1b8] sm:$0xff]
      %v403 = vld [vmem:[%s205 + $0x1c0] sm:$0xff]
      %v404 = vld [vmem:[%s205 + $0x1c8] sm:$0xff]
      %v405 = vld [vmem:[%s205 + $0x1d0] sm:$0xff]
      %v406 = vld [vmem:[%s205 + $0x1d8] sm:$0xff]
      %v407 = vld [vmem:[%s205 + $0x1e0] sm:$0xff]
      %v408 = vld [vmem:[%s205 + $0x1e8] sm:$0xff]
      %v409 = vld [vmem:[%s205 + $0x1f0] sm:$0xff]
      %v410 = vld [vmem:[%s205 + $0x1f8] sm:$0xff]
      %v411 = vld [vmem:[%s205 + $0x200] sm:$0xff]
      %v412 = vld [vmem:[%s205 + $0x208] sm:$0xff]
      %v413 = vld [vmem:[%s205 + $0x210] sm:$0xff]
      %v414 = vld [vmem:[%s205 + $0x218] sm:$0xff]
      %v415 = vld [vmem:[%s205 + $0x220] sm:$0xff]
      %v416 = vld [vmem:[%s205 + $0x228] sm:$0xff]
      %v417 = vld [vmem:[%s205 + $0x230] sm:$0xff]
      %v418 = vld [vmem:[%s205 + $0x238] sm:$0xff]
      %v419 = vld [vmem:[%s205 + $0x240] sm:$0xff]
      %v420 = vld [vmem:[%s205 + $0x248] sm:$0xff]
      %v421 = vld [vmem:[%s205 + $0x250] sm:$0xff]
      %v422 = vld [vmem:[%s205 + $0x258] sm:$0xff]
      %v423 = vld [vmem:[%s205 + $0x260] sm:$0xff]
      %v424 = vld [vmem:[%s205 + $0x268] sm:$0xff]
      %v425 = vld [vmem:[%s205 + $0x270] sm:$0xff]
      %v426 = vld [vmem:[%s205 + $0x278] sm:$0xff]
      %v427 = vld [vmem:[%s205 + $0x280] sm:$0xff]
      %v428 = vld [vmem:[%s205 + $0x288] sm:$0xff]
      %v429 = vld [vmem:[%s205 + $0x290] sm:$0xff]
      %v430 = vld [vmem:[%s205 + $0x298] sm:$0xff]
      %v431 = vld [vmem:[%s205 + $0x2a0] sm:$0xff]
      %v432 = vld [vmem:[%s205 + $0x2a8] sm:$0xff]
      %v433 = vld [vmem:[%s205 + $0x2b0] sm:$0xff]
      %v434 = vld [vmem:[%s205 + $0x2b8] sm:$0xff]
      %v435 = vld [vmem:[%s205 + $0x2c0] sm:$0xff]
      %v436 = vld [vmem:[%s205 + $0x2c8] sm:$0xff]
      %v437 = vld [vmem:[%s205 + $0x2d0] sm:$0xff]
      %v438 = vld [vmem:[%s205 + $0x2d8] sm:$0xff]
      %v439 = vld [vmem:[%s205 + $0x2e0] sm:$0xff]
      %v440 = vld [vmem:[%s205 + $0x2e8] sm:$0xff]
      %v441 = vld [vmem:[%s205 + $0x2f0] sm:$0xff]
      %v442 = vld [vmem:[%s205 + $0x2f8] sm:$0xff]
      %v443 = vld [vmem:[%s205 + $0x300] sm:$0xff]
      %v444 = vld [vmem:[%s205 + $0x308] sm:$0xff]
      %v445 = vld [vmem:[%s205 + $0x310] sm:$0xff]
      %v446 = vld [vmem:[%s205 + $0x318] sm:$0xff]
      %v447 = vld [vmem:[%s205 + $0x320] sm:$0xff]
      %v448 = vld [vmem:[%s205 + $0x328] sm:$0xff]
      %v449 = vld [vmem:[%s205 + $0x330] sm:$0xff]
      %v450 = vld [vmem:[%s205 + $0x338] sm:$0xff]
      %v451 = vld [vmem:[%s205 + $0x340] sm:$0xff]
      %v452 = vld [vmem:[%s205 + $0x348] sm:$0xff]
      %v453 = vld [vmem:[%s205 + $0x350] sm:$0xff]
      %v454 = vld [vmem:[%s205 + $0x358] sm:$0xff]
      %v455 = vld [vmem:[%s205 + $0x360] sm:$0xff]
      %v456 = vld [vmem:[%s205 + $0x368] sm:$0xff]
      %v457 = vld [vmem:[%s205 + $0x370] sm:$0xff]
      %v458 = vld [vmem:[%s205 + $0x378] sm:$0xff]
      %v459 = vld [vmem:[%s205 + $0x380] sm:$0xff]
      %v460 = vld [vmem:[%s205 + $0x388] sm:$0xff]
      %v461 = vld [vmem:[%s205 + $0x390] sm:$0xff]
      %v462 = vld [vmem:[%s205 + $0x398] sm:$0xff]
      %v463 = vld [vmem:[%s205 + $0x3a0] sm:$0xff]
      %v464 = vld [vmem:[%s205 + $0x3a8] sm:$0xff]
      %v465 = vld [vmem:[%s205 + $0x3b0] sm:$0xff]
      %v466 = vld [vmem:[%s205 + $0x3b8] sm:$0xff]
      %v467 = vld [vmem:[%s205 + $0x3c0] sm:$0xff]
      %v468 = vld [vmem:[%s205 + $0x3c8] sm:$0xff]
      %v469 = vld [vmem:[%s205 + $0x3d0] sm:$0xff]
      %v470 = vld [vmem:[%s205 + $0x3d8] sm:$0xff]
      %v471 = vld [vmem:[%s205 + $0x3e0] sm:$0xff]
      %v472 = vld [vmem:[%s205 + $0x3e8] sm:$0xff]
      %v473 = vld [vmem:[%s205 + $0x3f0] sm:$0xff]
      %v474 = vld [vmem:[%s205 + $0x3f8] sm:$0xff]
      %v475 = vld [vmem:[%s209] sm:$0xf]
      %v476 = vpack.c.bf16 %v335, %v331
      %v477 = vpack.c.bf16 %v336, %v332
      %v478 = vpack.c.bf16 %v337, %v333
      %v479 = vpack.c.bf16 %v338, %v334
      %v480 = vpack.c.bf16 %v343, %v339
      %v481 = vpack.c.bf16 %v344, %v340
      %v482 = vpack.c.bf16 %v345, %v341
      %v483 = vpack.c.bf16 %v346, %v342
      %v485 = vlaneseq
      %v486 = vshrl.u32 %v485, 7
      %v487 = vsub.s32 0, %v486
      %v488 = vrot.slane %v475, %v487
      %v489 = vlaneseq
      %v490 = vshrl.u32 %v489, 7
      %v491 = vsub.s32 1, %v490
      %v492 = vrot.slane %v475, %v491
      %v493 = vlaneseq
      %v494 = vshrl.u32 %v493, 7
      %v495 = vsub.s32 2, %v494
      %v496 = vrot.slane %v475, %v495
      %v497 = vlaneseq
      %v498 = vshrl.u32 %v497, 7
      %v499 = vsub.s32 3, %v498
      %v500 = vrot.slane %v475, %v499
      %v633 = vunpack.c.l.b16 %v347
      %v634 = vunpack.c.h.b16 %v347
      %v635 = vunpack.c.l.b16 %v348
      %v636 = vunpack.c.h.b16 %v348
      %v637 = vunpack.c.l.b16 %v349
      %v638 = vunpack.c.h.b16 %v349
      %v639 = vunpack.c.l.b16 %v350
      %v640 = vunpack.c.h.b16 %v350
      %v641 = vunpack.c.l.b16 %v351
      %v642 = vunpack.c.h.b16 %v351
      %v643 = vunpack.c.l.b16 %v352
      %v644 = vunpack.c.h.b16 %v352
      %v645 = vunpack.c.l.b16 %v353
      %v646 = vunpack.c.h.b16 %v353
      %v647 = vunpack.c.l.b16 %v354
      %v648 = vunpack.c.h.b16 %v354
      %v649 = vunpack.c.l.b16 %v355
      %v650 = vunpack.c.h.b16 %v355
      %v651 = vunpack.c.l.b16 %v356
      %v652 = vunpack.c.h.b16 %v356
      %v653 = vunpack.c.l.b16 %v357
      %v654 = vunpack.c.h.b16 %v357
      %v655 = vunpack.c.l.b16 %v358
      %v656 = vunpack.c.h.b16 %v358
      %v657 = vunpack.c.l.b16 %v359
      %v658 = vunpack.c.h.b16 %v359
      %v659 = vunpack.c.l.b16 %v360
      %v660 = vunpack.c.h.b16 %v360
      %v661 = vunpack.c.l.b16 %v361
      %v662 = vunpack.c.h.b16 %v361
      %v663 = vunpack.c.l.b16 %v362
      %v664 = vunpack.c.h.b16 %v362
      %v665 = vunpack.c.l.b16 %v363
      %v666 = vunpack.c.h.b16 %v363
      %v667 = vunpack.c.l.b16 %v364
      %v668 = vunpack.c.h.b16 %v364
      %v669 = vunpack.c.l.b16 %v365
      %v670 = vunpack.c.h.b16 %v365
      %v671 = vunpack.c.l.b16 %v366
      %v672 = vunpack.c.h.b16 %v366
      %v673 = vunpack.c.l.b16 %v367
      %v674 = vunpack.c.h.b16 %v367
      %v675 = vunpack.c.l.b16 %v368
      %v676 = vunpack.c.h.b16 %v368
      %v677 = vunpack.c.l.b16 %v369
      %v678 = vunpack.c.h.b16 %v369
      %v679 = vunpack.c.l.b16 %v370
      %v680 = vunpack.c.h.b16 %v370
      %v681 = vunpack.c.l.b16 %v371
      %v682 = vunpack.c.h.b16 %v371
      %v683 = vunpack.c.l.b16 %v372
      %v684 = vunpack.c.h.b16 %v372
      %v685 = vunpack.c.l.b16 %v373
      %v686 = vunpack.c.h.b16 %v373
      %v687 = vunpack.c.l.b16 %v374
      %v688 = vunpack.c.h.b16 %v374
      %v689 = vunpack.c.l.b16 %v375
      %v690 = vunpack.c.h.b16 %v375
      %v691 = vunpack.c.l.b16 %v376
      %v692 = vunpack.c.h.b16 %v376
      %v693 = vunpack.c.l.b16 %v377
      %v694 = vunpack.c.h.b16 %v377
      %v695 = vunpack.c.l.b16 %v378
      %v696 = vunpack.c.h.b16 %v378
      %v697 = vunpack.c.l.b16 %v379
      %v698 = vunpack.c.h.b16 %v379
      %v699 = vunpack.c.l.b16 %v380
      %v700 = vunpack.c.h.b16 %v380
      %v701 = vunpack.c.l.b16 %v381
      %v702 = vunpack.c.h.b16 %v381
      %v703 = vunpack.c.l.b16 %v382
      %v704 = vunpack.c.h.b16 %v382
      %v705 = vunpack.c.l.b16 %v383
      %v706 = vunpack.c.h.b16 %v383
      %v707 = vunpack.c.l.b16 %v384
      %v708 = vunpack.c.h.b16 %v384
      %v709 = vunpack.c.l.b16 %v385
      %v710 = vunpack.c.h.b16 %v385
      %v711 = vunpack.c.l.b16 %v386
      %v712 = vunpack.c.h.b16 %v386
      %v713 = vunpack.c.l.b16 %v387
      %v714 = vunpack.c.h.b16 %v387
      %v715 = vunpack.c.l.b16 %v388
      %v716 = vunpack.c.h.b16 %v388
      %v717 = vunpack.c.l.b16 %v389
      %v718 = vunpack.c.h.b16 %v389
      %v719 = vunpack.c.l.b16 %v390
      %v720 = vunpack.c.h.b16 %v390
      %v721 = vunpack.c.l.b16 %v391
      %v722 = vunpack.c.h.b16 %v391
      %v723 = vunpack.c.l.b16 %v392
      %v724 = vunpack.c.h.b16 %v392
      %v725 = vunpack.c.l.b16 %v393
      %v726 = vunpack.c.h.b16 %v393
      %v727 = vunpack.c.l.b16 %v394
      %v728 = vunpack.c.h.b16 %v394
      %v729 = vunpack.c.l.b16 %v395
      %v730 = vunpack.c.h.b16 %v395
      %v731 = vunpack.c.l.b16 %v396
      %v732 = vunpack.c.h.b16 %v396
      %v733 = vunpack.c.l.b16 %v397
      %v734 = vunpack.c.h.b16 %v397
      %v735 = vunpack.c.l.b16 %v398
      %v736 = vunpack.c.h.b16 %v398
      %v737 = vunpack.c.l.b16 %v399
      %v738 = vunpack.c.h.b16 %v399
      %v739 = vunpack.c.l.b16 %v400
      %v740 = vunpack.c.h.b16 %v400
      %v741 = vunpack.c.l.b16 %v401
      %v742 = vunpack.c.h.b16 %v401
      %v743 = vunpack.c.l.b16 %v402
      %v744 = vunpack.c.h.b16 %v402
      %v745 = vunpack.c.l.b16 %v403
      %v746 = vunpack.c.h.b16 %v403
      %v747 = vunpack.c.l.b16 %v404
      %v748 = vunpack.c.h.b16 %v404
      %v749 = vunpack.c.l.b16 %v405
      %v750 = vunpack.c.h.b16 %v405
      %v751 = vunpack.c.l.b16 %v406
      %v752 = vunpack.c.h.b16 %v406
      %v753 = vunpack.c.l.b16 %v407
      %v754 = vunpack.c.h.b16 %v407
      %v755 = vunpack.c.l.b16 %v408
      %v756 = vunpack.c.h.b16 %v408
      %v757 = vunpack.c.l.b16 %v409
      %v758 = vunpack.c.h.b16 %v409
      %v759 = vunpack.c.l.b16 %v410
      %v760 = vunpack.c.h.b16 %v410
      %v761 = vunpack.c.l.b16 %v411
      %v762 = vunpack.c.h.b16 %v411
      %v763 = vunpack.c.l.b16 %v412
      %v764 = vunpack.c.h.b16 %v412
      %v765 = vunpack.c.l.b16 %v413
      %v766 = vunpack.c.h.b16 %v413
      %v767 = vunpack.c.l.b16 %v414
      %v768 = vunpack.c.h.b16 %v414
      %v769 = vunpack.c.l.b16 %v415
      %v770 = vunpack.c.h.b16 %v415
      %v771 = vunpack.c.l.b16 %v416
      %v772 = vunpack.c.h.b16 %v416
      %v773 = vunpack.c.l.b16 %v417
      %v774 = vunpack.c.h.b16 %v417
      %v775 = vunpack.c.l.b16 %v418
      %v776 = vunpack.c.h.b16 %v418
      %v777 = vunpack.c.l.b16 %v419
      %v778 = vunpack.c.h.b16 %v419
      %v779 = vunpack.c.l.b16 %v420
      %v780 = vunpack.c.h.b16 %v420
      %v781 = vunpack.c.l.b16 %v421
      %v782 = vunpack.c.h.b16 %v421
      %v783 = vunpack.c.l.b16 %v422
      %v784 = vunpack.c.h.b16 %v422
      %v785 = vunpack.c.l.b16 %v423
      %v786 = vunpack.c.h.b16 %v423
      %v787 = vunpack.c.l.b16 %v424
      %v788 = vunpack.c.h.b16 %v424
      %v789 = vunpack.c.l.b16 %v425
      %v790 = vunpack.c.h.b16 %v425
      %v791 = vunpack.c.l.b16 %v426
      %v792 = vunpack.c.h.b16 %v426
      %v793 = vunpack.c.l.b16 %v427
      %v794 = vunpack.c.h.b16 %v427
      %v795 = vunpack.c.l.b16 %v428
      %v796 = vunpack.c.h.b16 %v428
      %v797 = vunpack.c.l.b16 %v429
      %v798 = vunpack.c.h.b16 %v429
      %v799 = vunpack.c.l.b16 %v430
      %v800 = vunpack.c.h.b16 %v430
      %v801 = vunpack.c.l.b16 %v431
      %v802 = vunpack.c.h.b16 %v431
      %v803 = vunpack.c.l.b16 %v432
      %v804 = vunpack.c.h.b16 %v432
      %v805 = vunpack.c.l.b16 %v433
      %v806 = vunpack.c.h.b16 %v433
      %v807 = vunpack.c.l.b16 %v434
      %v808 = vunpack.c.h.b16 %v434
      %v809 = vunpack.c.l.b16 %v435
      %v810 = vunpack.c.h.b16 %v435
      %v811 = vunpack.c.l.b16 %v436
      %v812 = vunpack.c.h.b16 %v436
      %v813 = vunpack.c.l.b16 %v437
      %v814 = vunpack.c.h.b16 %v437
      %v815 = vunpack.c.l.b16 %v438
      %v816 = vunpack.c.h.b16 %v438
      %v817 = vunpack.c.l.b16 %v439
      %v818 = vunpack.c.h.b16 %v439
      %v819 = vunpack.c.l.b16 %v440
      %v820 = vunpack.c.h.b16 %v440
      %v821 = vunpack.c.l.b16 %v441
      %v822 = vunpack.c.h.b16 %v441
      %v823 = vunpack.c.l.b16 %v442
      %v824 = vunpack.c.h.b16 %v442
      %v825 = vunpack.c.l.b16 %v443
      %v826 = vunpack.c.h.b16 %v443
      %v827 = vunpack.c.l.b16 %v444
      %v828 = vunpack.c.h.b16 %v444
      %v829 = vunpack.c.l.b16 %v445
      %v830 = vunpack.c.h.b16 %v445
      %v831 = vunpack.c.l.b16 %v446
      %v832 = vunpack.c.h.b16 %v446
      %v833 = vunpack.c.l.b16 %v447
      %v834 = vunpack.c.h.b16 %v447
      %v835 = vunpack.c.l.b16 %v448
      %v836 = vunpack.c.h.b16 %v448
      %v837 = vunpack.c.l.b16 %v449
      %v838 = vunpack.c.h.b16 %v449
      %v839 = vunpack.c.l.b16 %v450
      %v840 = vunpack.c.h.b16 %v450
      %v841 = vunpack.c.l.b16 %v451
      %v842 = vunpack.c.h.b16 %v451
      %v843 = vunpack.c.l.b16 %v452
      %v844 = vunpack.c.h.b16 %v452
      %v845 = vunpack.c.l.b16 %v453
      %v846 = vunpack.c.h.b16 %v453
      %v847 = vunpack.c.l.b16 %v454
      %v848 = vunpack.c.h.b16 %v454
      %v849 = vunpack.c.l.b16 %v455
      %v850 = vunpack.c.h.b16 %v455
      %v851 = vunpack.c.l.b16 %v456
      %v852 = vunpack.c.h.b16 %v456
      %v853 = vunpack.c.l.b16 %v457
      %v854 = vunpack.c.h.b16 %v457
      %v855 = vunpack.c.l.b16 %v458
      %v856 = vunpack.c.h.b16 %v458
      %v857 = vunpack.c.l.b16 %v459
      %v858 = vunpack.c.h.b16 %v459
      %v859 = vunpack.c.l.b16 %v460
      %v860 = vunpack.c.h.b16 %v460
      %v861 = vunpack.c.l.b16 %v461
      %v862 = vunpack.c.h.b16 %v461
      %v863 = vunpack.c.l.b16 %v462
      %v864 = vunpack.c.h.b16 %v462
      %v865 = vunpack.c.l.b16 %v463
      %v866 = vunpack.c.h.b16 %v463
      %v867 = vunpack.c.l.b16 %v464
      %v868 = vunpack.c.h.b16 %v464
      %v869 = vunpack.c.l.b16 %v465
      %v870 = vunpack.c.h.b16 %v465
      %v871 = vunpack.c.l.b16 %v466
      %v872 = vunpack.c.h.b16 %v466
      %v873 = vunpack.c.l.b16 %v467
      %v874 = vunpack.c.h.b16 %v467
      %v875 = vunpack.c.l.b16 %v468
      %v876 = vunpack.c.h.b16 %v468
      %v877 = vunpack.c.l.b16 %v469
      %v878 = vunpack.c.h.b16 %v469
      %v879 = vunpack.c.l.b16 %v470
      %v880 = vunpack.c.h.b16 %v470
      %v881 = vunpack.c.l.b16 %v471
      %v882 = vunpack.c.h.b16 %v471
      %v883 = vunpack.c.l.b16 %v472
      %v884 = vunpack.c.h.b16 %v472
      %v885 = vunpack.c.l.b16 %v473
      %v886 = vunpack.c.h.b16 %v473
      %v887 = vunpack.c.l.b16 %v474
      %v888 = vunpack.c.h.b16 %v474
      %v889 = vpack.c.b16 %v637, %v633
      %v890 = vpack.c.b16 %v638, %v634
      %v891 = vpack.c.b16 %v639, %v635
      %v892 = vpack.c.b16 %v640, %v636
      %v893 = vpack.c.b16 %v645, %v641
      %v894 = vpack.c.b16 %v646, %v642
      %v895 = vpack.c.b16 %v647, %v643
      %v896 = vpack.c.b16 %v648, %v644
      %v897 = vpack.c.b16 %v653, %v649
      %v898 = vpack.c.b16 %v654, %v650
      %v899 = vpack.c.b16 %v655, %v651
      %v900 = vpack.c.b16 %v656, %v652
      %v901 = vpack.c.b16 %v661, %v657
      %v902 = vpack.c.b16 %v662, %v658
      %v903 = vpack.c.b16 %v663, %v659
      %v904 = vpack.c.b16 %v664, %v660
      %v905 = vpack.c.b16 %v669, %v665
      %v906 = vpack.c.b16 %v670, %v666
      %v907 = vpack.c.b16 %v671, %v667
      %v908 = vpack.c.b16 %v672, %v668
      %v909 = vpack.c.b16 %v677, %v673
      %v910 = vpack.c.b16 %v678, %v674
      %v911 = vpack.c.b16 %v679, %v675
      %v912 = vpack.c.b16 %v680, %v676
      %v913 = vpack.c.b16 %v685, %v681
      %v914 = vpack.c.b16 %v686, %v682
      %v915 = vpack.c.b16 %v687, %v683
      %v916 = vpack.c.b16 %v688, %v684
      %v917 = vpack.c.b16 %v693, %v689
      %v918 = vpack.c.b16 %v694, %v690
      %v919 = vpack.c.b16 %v695, %v691
      %v920 = vpack.c.b16 %v696, %v692
      %v921 = vpack.c.b16 %v701, %v697
      %v922 = vpack.c.b16 %v702, %v698
      %v923 = vpack.c.b16 %v703, %v699
      %v924 = vpack.c.b16 %v704, %v700
      %v925 = vpack.c.b16 %v709, %v705
      %v926 = vpack.c.b16 %v710, %v706
      %v927 = vpack.c.b16 %v711, %v707
      %v928 = vpack.c.b16 %v712, %v708
      %v929 = vpack.c.b16 %v717, %v713
      %v930 = vpack.c.b16 %v718, %v714
      %v931 = vpack.c.b16 %v719, %v715
      %v932 = vpack.c.b16 %v720, %v716
      %v933 = vpack.c.b16 %v725, %v721
      %v934 = vpack.c.b16 %v726, %v722
      %v935 = vpack.c.b16 %v727, %v723
      %v936 = vpack.c.b16 %v728, %v724
      %v937 = vpack.c.b16 %v733, %v729
      %v938 = vpack.c.b16 %v734, %v730
      %v939 = vpack.c.b16 %v735, %v731
      %v940 = vpack.c.b16 %v736, %v732
      %v941 = vpack.c.b16 %v741, %v737
      %v942 = vpack.c.b16 %v742, %v738
      %v943 = vpack.c.b16 %v743, %v739
      %v944 = vpack.c.b16 %v744, %v740
      %v945 = vpack.c.b16 %v749, %v745
      %v946 = vpack.c.b16 %v750, %v746
      %v947 = vpack.c.b16 %v751, %v747
      %v948 = vpack.c.b16 %v752, %v748
      %v949 = vpack.c.b16 %v757, %v753
      %v950 = vpack.c.b16 %v758, %v754
      %v951 = vpack.c.b16 %v759, %v755
      %v952 = vpack.c.b16 %v760, %v756
      %v953 = vpack.c.b16 %v765, %v761
      %v954 = vpack.c.b16 %v766, %v762
      %v955 = vpack.c.b16 %v767, %v763
      %v956 = vpack.c.b16 %v768, %v764
      %v957 = vpack.c.b16 %v773, %v769
      %v958 = vpack.c.b16 %v774, %v770
      %v959 = vpack.c.b16 %v775, %v771
      %v960 = vpack.c.b16 %v776, %v772
      %v961 = vpack.c.b16 %v781, %v777
      %v962 = vpack.c.b16 %v782, %v778
      %v963 = vpack.c.b16 %v783, %v779
      %v964 = vpack.c.b16 %v784, %v780
      %v965 = vpack.c.b16 %v789, %v785
      %v966 = vpack.c.b16 %v790, %v786
      %v967 = vpack.c.b16 %v791, %v787
      %v968 = vpack.c.b16 %v792, %v788
      %v969 = vpack.c.b16 %v797, %v793
      %v970 = vpack.c.b16 %v798, %v794
      %v971 = vpack.c.b16 %v799, %v795
      %v972 = vpack.c.b16 %v800, %v796
      %v973 = vpack.c.b16 %v805, %v801
      %v974 = vpack.c.b16 %v806, %v802
      %v975 = vpack.c.b16 %v807, %v803
      %v976 = vpack.c.b16 %v808, %v804
      %v977 = vpack.c.b16 %v813, %v809
      %v978 = vpack.c.b16 %v814, %v810
      %v979 = vpack.c.b16 %v815, %v811
      %v980 = vpack.c.b16 %v816, %v812
      %v981 = vpack.c.b16 %v821, %v817
      %v982 = vpack.c.b16 %v822, %v818
      %v983 = vpack.c.b16 %v823, %v819
      %v984 = vpack.c.b16 %v824, %v820
      %v985 = vpack.c.b16 %v829, %v825
      %v986 = vpack.c.b16 %v830, %v826
      %v987 = vpack.c.b16 %v831, %v827
      %v988 = vpack.c.b16 %v832, %v828
      %v989 = vpack.c.b16 %v837, %v833
      %v990 = vpack.c.b16 %v838, %v834
      %v991 = vpack.c.b16 %v839, %v835
      %v992 = vpack.c.b16 %v840, %v836
      %v993 = vpack.c.b16 %v845, %v841
      %v994 = vpack.c.b16 %v846, %v842
      %v995 = vpack.c.b16 %v847, %v843
      %v996 = vpack.c.b16 %v848, %v844
      %v997 = vpack.c.b16 %v853, %v849
      %v998 = vpack.c.b16 %v854, %v850
      %v999 = vpack.c.b16 %v855, %v851
      %v1000 = vpack.c.b16 %v856, %v852
      %v1001 = vpack.c.b16 %v861, %v857
      %v1002 = vpack.c.b16 %v862, %v858
      %v1003 = vpack.c.b16 %v863, %v859
      %v1004 = vpack.c.b16 %v864, %v860
      %v1005 = vpack.c.b16 %v869, %v865
      %v1006 = vpack.c.b16 %v870, %v866
      %v1007 = vpack.c.b16 %v871, %v867
      %v1008 = vpack.c.b16 %v872, %v868
      %v1009 = vpack.c.b16 %v877, %v873
      %v1010 = vpack.c.b16 %v878, %v874
      %v1011 = vpack.c.b16 %v879, %v875
      %v1012 = vpack.c.b16 %v880, %v876
      %v1013 = vpack.c.b16 %v885, %v881
      %v1014 = vpack.c.b16 %v886, %v882
      %v1015 = vpack.c.b16 %v887, %v883
      %v1016 = vpack.c.b16 %v888, %v884
      %1145 = vmatprep.subr.bf16.mxu0 %v890
      %1146 = vmatpush1.bf16.msra.mxu0 %v889
      %1147 = vmatprep.subr.bf16.mxu0 %v894
      %1148 = vmatpush1.bf16.msra.mxu0 %v893
      %1149 = vmatprep.subr.bf16.mxu0 %v898
      %1150 = vmatpush1.bf16.msra.mxu0 %v897
      %1151 = vmatprep.subr.bf16.mxu0 %v902
      %1152 = vmatpush1.bf16.msra.mxu0 %v901
      %1153 = vmatprep.subr.bf16.mxu0 %v906
      %1154 = vmatpush1.bf16.msra.mxu0 %v905
      %1155 = vmatprep.subr.bf16.mxu0 %v910
      %1156 = vmatpush1.bf16.msra.mxu0 %v909
      %1157 = vmatprep.subr.bf16.mxu0 %v914
      %1158 = vmatpush1.bf16.msra.mxu0 %v913
      %1159 = vmatprep.subr.bf16.mxu0 %v918
      %1160 = vmatpush1.bf16.msra.mxu0 %v917
      %1161 = vmatprep.subr.bf16.mxu0 %v922
      %1162 = vmatpush1.bf16.msra.mxu0 %v921
      %1163 = vmatprep.subr.bf16.mxu0 %v926
      %1164 = vmatpush1.bf16.msra.mxu0 %v925
      %1165 = vmatprep.subr.bf16.mxu0 %v930
      %1166 = vmatpush1.bf16.msra.mxu0 %v929
      %1167 = vmatprep.subr.bf16.mxu0 %v934
      %1168 = vmatpush1.bf16.msra.mxu0 %v933
      %1169 = vmatprep.subr.bf16.mxu0 %v938
      %1170 = vmatpush1.bf16.msra.mxu0 %v937
      %1171 = vmatprep.subr.bf16.mxu0 %v942
      %1172 = vmatpush1.bf16.msra.mxu0 %v941
      %1173 = vmatprep.subr.bf16.mxu0 %v946
      %1174 = vmatpush1.bf16.msra.mxu0 %v945
      %1175 = vmatprep.subr.bf16.mxu0 %v950
      %1176 = vmatpush1.bf16.msra.mxu0 %v949
      %1177 = vmatprep.mubr.bf16.mxu0 %v477
      %1178 = vmatmul.mubr.bf16.gmra.mrb[0].mxu0 %v476
      %v1179 = vpop.f32.mrb[0].mxu0
      %v1180 = vadd.f32 %v488, %v1179
      %v1181 = vpop.f32.mrb[0].mxu0
      %v1182 = vadd.f32 %v492, %v1181
      %v1183 = vpop.f32.mrb[0].mxu0
      %v1184 = vadd.f32 %v488, %v1183
      %v1185 = vpop.f32.mrb[0].mxu0
      %v1186 = vadd.f32 %v492, %v1185
      %1187 = vmatprep.mubr.bf16.mxu0 %v481
      %1188 = vmatmul.mubr.bf16.gmra.mrb[0].mxu0 %v480
      %v1189 = vpop.f32.mrb[0].mxu0
      %v1190 = vadd.f32 %v488, %v1189
      %v1191 = vpop.f32.mrb[0].mxu0
      %v1192 = vadd.f32 %v492, %v1191
      %v1193 = vpop.f32.mrb[0].mxu0
      %v1194 = vadd.f32 %v488, %v1193
      %v1195 = vpop.f32.mrb[0].mxu0
      %v1196 = vadd.f32 %v492, %v1195
      %1197 = vdwg.mxu0
      %1198 = vmatprep.subr.bf16.mxu0 %v954
      %1199 = vmatpush1.bf16.msra.mxu0 %v953
      %1200 = vmatprep.subr.bf16.mxu0 %v958
      %1201 = vmatpush1.bf16.msra.mxu0 %v957
      %1202 = vmatprep.subr.bf16.mxu0 %v962
      %1203 = vmatpush1.bf16.msra.mxu0 %v961
      %1204 = vmatprep.subr.bf16.mxu0 %v966
      %1205 = vmatpush1.bf16.msra.mxu0 %v965
      %1206 = vmatprep.subr.bf16.mxu0 %v970
      %1207 = vmatpush1.bf16.msra.mxu0 %v969
      %1208 = vmatprep.subr.bf16.mxu0 %v974
      %1209 = vmatpush1.bf16.msra.mxu0 %v973
      %1210 = vmatprep.subr.bf16.mxu0 %v978
      %1211 = vmatpush1.bf16.msra.mxu0 %v977
      %1212 = vmatprep.subr.bf16.mxu0 %v982
      %1213 = vmatpush1.bf16.msra.mxu0 %v981
      %1214 = vmatprep.subr.bf16.mxu0 %v986
      %1215 = vmatpush1.bf16.msra.mxu0 %v985
      %1216 = vmatprep.subr.bf16.mxu0 %v990
      %1217 = vmatpush1.bf16.msra.mxu0 %v989
      %1218 = vmatprep.subr.bf16.mxu0 %v994
      %1219 = vmatpush1.bf16.msra.mxu0 %v993
      %1220 = vmatprep.subr.bf16.mxu0 %v998
      %1221 = vmatpush1.bf16.msra.mxu0 %v997
      %1222 = vmatprep.subr.bf16.mxu0 %v1002
      %1223 = vmatpush1.bf16.msra.mxu0 %v1001
      %1224 = vmatprep.subr.bf16.mxu0 %v1006
      %1225 = vmatpush1.bf16.msra.mxu0 %v1005
      %1226 = vmatprep.subr.bf16.mxu0 %v1010
      %1227 = vmatpush1.bf16.msra.mxu0 %v1009
      %1228 = vmatprep.subr.bf16.mxu0 %v1014
      %1229 = vmatpush1.bf16.msra.mxu0 %v1013
      %1230 = vmatprep.mubr.bf16.mxu0 %v479
      %1231 = vmatmul.mubr.bf16.gmra.mrb[0].mxu0 %v478
      %v1232 = vpop.f32.mrb[0].mxu0
      %v1233 = vadd.f32 %v1180, %v1232
      %v1234 = vpop.f32.mrb[0].mxu0
      %v1235 = vadd.f32 %v1182, %v1234
      %v1236 = vpop.f32.mrb[0].mxu0
      %v1237 = vadd.f32 %v1184, %v1236
      %v1238 = vpop.f32.mrb[0].mxu0
      %v1239 = vadd.f32 %v1186, %v1238
      %1240 = vmatprep.mubr.bf16.mxu0 %v483
      %1241 = vmatmul.mubr.bf16.gmra.mrb[0].mxu0 %v482
      %v1242 = vpop.f32.mrb[0].mxu0
      %v1243 = vadd.f32 %v1190, %v1242
      %v1244 = vpop.f32.mrb[0].mxu0
      %v1245 = vadd.f32 %v1192, %v1244
      %v1246 = vpop.f32.mrb[0].mxu0
      %v1247 = vadd.f32 %v1194, %v1246
      %v1248 = vpop.f32.mrb[0].mxu0
      %v1249 = vadd.f32 %v1196, %v1248
      %1250 = vdwg.mxu0
      %1251 = vmatprep.subr.bf16.mxu0 %v892
      %1252 = vmatpush1.bf16.msra.mxu0 %v891
      %1253 = vmatprep.subr.bf16.mxu0 %v896
      %1254 = vmatpush1.bf16.msra.mxu0 %v895
      %1255 = vmatprep.subr.bf16.mxu0 %v900
      %1256 = vmatpush1.bf16.msra.mxu0 %v899
      %1257 = vmatprep.subr.bf16.mxu0 %v904
      %1258 = vmatpush1.bf16.msra.mxu0 %v903
      %1259 = vmatprep.subr.bf16.mxu0 %v908
      %1260 = vmatpush1.bf16.msra.mxu0 %v907
      %1261 = vmatprep.subr.bf16.mxu0 %v912
      %1262 = vmatpush1.bf16.msra.mxu0 %v911
      %1263 = vmatprep.subr.bf16.mxu0 %v916
      %1264 = vmatpush1.bf16.msra.mxu0 %v915
      %1265 = vmatprep.subr.bf16.mxu0 %v920
      %1266 = vmatpush1.bf16.msra.mxu0 %v919
      %1267 = vmatprep.subr.bf16.mxu0 %v924
      %1268 = vmatpush1.bf16.msra.mxu0 %v923
      %1269 = vmatprep.subr.bf16.mxu0 %v928
      %1270 = vmatpush1.bf16.msra.mxu0 %v927
      %1271 = vmatprep.subr.bf16.mxu0 %v932
      %1272 = vmatpush1.bf16.msra.mxu0 %v931
      %1273 = vmatprep.subr.bf16.mxu0 %v936
      %1274 = vmatpush1.bf16.msra.mxu0 %v935
      %1275 = vmatprep.subr.bf16.mxu0 %v940
      %1276 = vmatpush1.bf16.msra.mxu0 %v939
      %1277 = vmatprep.subr.bf16.mxu0 %v944
      %1278 = vmatpush1.bf16.msra.mxu0 %v943
      %1279 = vmatprep.subr.bf16.mxu0 %v948
      %1280 = vmatpush1.bf16.msra.mxu0 %v947
      %1281 = vmatprep.subr.bf16.mxu0 %v952
      %1282 = vmatpush1.bf16.msra.mxu0 %v951
      %1283 = vmatprep.mubr.bf16.mxu0 %v477
      %1284 = vmatmul.mubr.bf16.gmra.mrb[0].mxu0 %v476
      %v1285 = vpop.f32.mrb[0].mxu0
      %v1286 = vadd.f32 %v496, %v1285
      %v1287 = vpop.f32.mrb[0].mxu0
      %v1288 = vadd.f32 %v500, %v1287
      %v1289 = vpop.f32.mrb[0].mxu0
      %v1290 = vadd.f32 %v496, %v1289
      %v1291 = vpop.f32.mrb[0].mxu0
      %v1292 = vadd.f32 %v500, %v1291
      %1293 = vmatprep.mubr.bf16.mxu0 %v481
      %1294 = vmatmul.mubr.bf16.gmra.mrb[0].mxu0 %v480
      %v1295 = vpop.f32.mrb[0].mxu0
      %v1296 = vadd.f32 %v496, %v1295
      %v1297 = vpop.f32.mrb[0].mxu0
      %v1298 = vadd.f32 %v500, %v1297
      %v1299 = vpop.f32.mrb[0].mxu0
      %v1300 = vadd.f32 %v496, %v1299
      %v1301 = vpop.f32.mrb[0].mxu0
      %v1302 = vadd.f32 %v500, %v1301
      %1303 = vdwg.mxu0
      %1304 = vmatprep.subr.bf16.mxu0 %v956
      %1305 = vmatpush1.bf16.msra.mxu0 %v955
      %1306 = vmatprep.subr.bf16.mxu0 %v960
      %1307 = vmatpush1.bf16.msra.mxu0 %v959
      %1308 = vmatprep.subr.bf16.mxu0 %v964
      %1309 = vmatpush1.bf16.msra.mxu0 %v963
      %1310 = vmatprep.subr.bf16.mxu0 %v968
      %1311 = vmatpush1.bf16.msra.mxu0 %v967
      %1312 = vmatprep.subr.bf16.mxu0 %v972
      %1313 = vmatpush1.bf16.msra.mxu0 %v971
      %1314 = vmatprep.subr.bf16.mxu0 %v976
      %1315 = vmatpush1.bf16.msra.mxu0 %v975
      %1316 = vmatprep.subr.bf16.mxu0 %v980
      %1317 = vmatpush1.bf16.msra.mxu0 %v979
      %1318 = vmatprep.subr.bf16.mxu0 %v984
      %1319 = vmatpush1.bf16.msra.mxu0 %v983
      %1320 = vmatprep.subr.bf16.mxu0 %v988
      %1321 = vmatpush1.bf16.msra.mxu0 %v987
      %1322 = vmatprep.subr.bf16.mxu0 %v992
      %1323 = vmatpush1.bf16.msra.mxu0 %v991
      %1324 = vmatprep.subr.bf16.mxu0 %v996
      %1325 = vmatpush1.bf16.msra.mxu0 %v995
      %1326 = vmatprep.subr.bf16.mxu0 %v1000
      %1327 = vmatpush1.bf16.msra.mxu0 %v999
      %1328 = vmatprep.subr.bf16.mxu0 %v1004
      %1329 = vmatpush1.bf16.msra.mxu0 %v1003
      %1330 = vmatprep.subr.bf16.mxu0 %v1008
      %1331 = vmatpush1.bf16.msra.mxu0 %v1007
      %1332 = vmatprep.subr.bf16.mxu0 %v1012
      %1333 = vmatpush1.bf16.msra.mxu0 %v1011
      %1334 = vmatprep.subr.bf16.mxu0 %v1016
      %1335 = vmatpush1.bf16.msra.mxu0 %v1015
      %1336 = vmatprep.mubr.bf16.mxu0 %v479
      %1337 = vmatmul.mubr.bf16.gmra.mrb[0].mxu0 %v478
      %v1338 = vpop.f32.mrb[0].mxu0
      %v1339 = vadd.f32 %v1286, %v1338
      %v1340 = vpop.f32.mrb[0].mxu0
      %v1341 = vadd.f32 %v1288, %v1340
      %v1342 = vpop.f32.mrb[0].mxu0
      %v1343 = vadd.f32 %v1290, %v1342
      %v1344 = vpop.f32.mrb[0].mxu0
      %v1345 = vadd.f32 %v1292, %v1344
      %1346 = vmatprep.mubr.bf16.mxu0 %v483
      %1347 = vmatmul.mubr.bf16.gmra.mrb[0].mxu0 %v482
      %v1348 = vpop.f32.mrb[0].mxu0
      %v1349 = vadd.f32 %v1296, %v1348
      %v1350 = vpop.f32.mrb[0].mxu0
      %v1351 = vadd.f32 %v1298, %v1350
      %v1352 = vpop.f32.mrb[0].mxu0
      %v1353 = vadd.f32 %v1300, %v1352
      %v1354 = vpop.f32.mrb[0].mxu0
      %v1355 = vadd.f32 %v1302, %v1354
      %1356 = vdwg.mxu0
      %v1357 = vmul.f32 %v1233, 0.2
      %v1358 = vmul.f32 %v1235, 0.2
      %v1359 = vmul.f32 %v1339, 0.2
      %v1360 = vmul.f32 %v1341, 0.2
      %v1361 = vmul.f32 %v1237, 0.2
      %v1362 = vmul.f32 %v1239, 0.2
      %v1363 = vmul.f32 %v1343, 0.2
      %v1364 = vmul.f32 %v1345, 0.2
      %v1365 = vmul.f32 %v1243, 0.2
      %v1366 = vmul.f32 %v1245, 0.2
      %v1367 = vmul.f32 %v1349, 0.2
      %v1368 = vmul.f32 %v1351, 0.2
      %v1369 = vmul.f32 %v1247, 0.2
      %v1370 = vmul.f32 %v1249, 0.2
      %v1371 = vmul.f32 %v1353, 0.2
      %v1372 = vmul.f32 %v1355, 0.2
      %v1373 = vmax.f32 %v1233, %v1357
      %v1374 = vmax.f32 %v1235, %v1358
      %v1375 = vmax.f32 %v1339, %v1359
      %v1376 = vmax.f32 %v1341, %v1360
      %v1377 = vmax.f32 %v1237, %v1361
      %v1378 = vmax.f32 %v1239, %v1362
      %v1379 = vmax.f32 %v1343, %v1363
      %v1380 = vmax.f32 %v1345, %v1364
      %v1381 = vmax.f32 %v1243, %v1365
      %v1382 = vmax.f32 %v1245, %v1366
      %v1383 = vmax.f32 %v1349, %v1367
      %v1384 = vmax.f32 %v1351, %v1368
      %v1385 = vmax.f32 %v1247, %v1369
      %v1386 = vmax.f32 %v1249, %v1370
      %v1387 = vmax.f32 %v1353, %v1371
      %v1388 = vmax.f32 %v1355, %v1372
      %v1389 = vmul.f32 %v1373, 1.4142135
      %v1390 = vmul.f32 %v1374, 1.4142135
      %v1391 = vmul.f32 %v1375, 1.4142135
      %v1392 = vmul.f32 %v1376, 1.4142135
      %v1393 = vmul.f32 %v1377, 1.4142135
      %v1394 = vmul.f32 %v1378, 1.4142135
      %v1395 = vmul.f32 %v1379, 1.4142135
      %v1396 = vmul.f32 %v1380, 1.4142135
      %v1397 = vmul.f32 %v1381, 1.4142135
      %v1398 = vmul.f32 %v1382, 1.4142135
      %v1399 = vmul.f32 %v1383, 1.4142135
      %v1400 = vmul.f32 %v1384, 1.4142135
      %v1401 = vmul.f32 %v1385, 1.4142135
      %v1402 = vmul.f32 %v1386, 1.4142135
      %v1403 = vmul.f32 %v1387, 1.4142135
      %v1404 = vmul.f32 %v1388, 1.4142135
      %s1405 = scalar_lea.vmem %s205, 1024
      %v1406 = vld [vmem:[%s1405] sm:$0xff]
      %v1407 = vld [vmem:[%s1405 + $0x8] sm:$0xff]
      %v1408 = vld [vmem:[%s1405 + $0x10] sm:$0xff]
      %v1409 = vld [vmem:[%s1405 + $0x18] sm:$0xff]
      %v1410 = vld [vmem:[%s1405 + $0x20] sm:$0xff]
      %v1411 = vld [vmem:[%s1405 + $0x28] sm:$0xff]
      %v1412 = vld [vmem:[%s1405 + $0x30] sm:$0xff]
      %v1413 = vld [vmem:[%s1405 + $0x38] sm:$0xff]
      %v1414 = vld [vmem:[%s1405 + $0x40] sm:$0xff]
      %v1415 = vld [vmem:[%s1405 + $0x48] sm:$0xff]
      %v1416 = vld [vmem:[%s1405 + $0x50] sm:$0xff]
      %v1417 = vld [vmem:[%s1405 + $0x58] sm:$0xff]
      %v1418 = vld [vmem:[%s1405 + $0x60] sm:$0xff]
      %v1419 = vld [vmem:[%s1405 + $0x68] sm:$0xff]
      %v1420 = vld [vmem:[%s1405 + $0x70] sm:$0xff]
      %v1421 = vld [vmem:[%s1405 + $0x78] sm:$0xff]
      %v1422 = vld [vmem:[%s1405 + $0x80] sm:$0xff]
      %v1423 = vld [vmem:[%s1405 + $0x88] sm:$0xff]
      %v1424 = vld [vmem:[%s1405 + $0x90] sm:$0xff]
      %v1425 = vld [vmem:[%s1405 + $0x98] sm:$0xff]
      %v1426 = vld [vmem:[%s1405 + $0xa0] sm:$0xff]
      %v1427 = vld [vmem:[%s1405 + $0xa8] sm:$0xff]
      %v1428 = vld [vmem:[%s1405 + $0xb0] sm:$0xff]
      %v1429 = vld [vmem:[%s1405 + $0xb8] sm:$0xff]
      %v1430 = vld [vmem:[%s1405 + $0xc0] sm:$0xff]
      %v1431 = vld [vmem:[%s1405 + $0xc8] sm:$0xff]
      %v1432 = vld [vmem:[%s1405 + $0xd0] sm:$0xff]
      %v1433 = vld [vmem:[%s1405 + $0xd8] sm:$0xff]
      %v1434 = vld [vmem:[%s1405 + $0xe0] sm:$0xff]
      %v1435 = vld [vmem:[%s1405 + $0xe8] sm:$0xff]
      %v1436 = vld [vmem:[%s1405 + $0xf0] sm:$0xff]
      %v1437 = vld [vmem:[%s1405 + $0xf8] sm:$0xff]
      %v1438 = vld [vmem:[%s1405 + $0x100] sm:$0xff]
      %v1439 = vld [vmem:[%s1405 + $0x108] sm:$0xff]
      %v1440 = vld [vmem:[%s1405 + $0x110] sm:$0xff]
      %v1441 = vld [vmem:[%s1405 + $0x118] sm:$0xff]
      %v1442 = vld [vmem:[%s1405 + $0x120] sm:$0xff]
      %v1443 = vld [vmem:[%s1405 + $0x128] sm:$0xff]
      %v1444 = vld [vmem:[%s1405 + $0x130] sm:$0xff]
      %v1445 = vld [vmem:[%s1405 + $0x138] sm:$0xff]
      %v1446 = vld [vmem:[%s1405 + $0x140] sm:$0xff]
      %v1447 = vld [vmem:[%s1405 + $0x148] sm:$0xff]
      %v1448 = vld [vmem:[%s1405 + $0x150] sm:$0xff]
      %v1449 = vld [vmem:[%s1405 + $0x158] sm:$0xff]
      %v1450 = vld [vmem:[%s1405 + $0x160] sm:$0xff]
      %v1451 = vld [vmem:[%s1405 + $0x168] sm:$0xff]
      %v1452 = vld [vmem:[%s1405 + $0x170] sm:$0xff]
      %v1453 = vld [vmem:[%s1405 + $0x178] sm:$0xff]
      %v1454 = vld [vmem:[%s1405 + $0x180] sm:$0xff]
      %v1455 = vld [vmem:[%s1405 + $0x188] sm:$0xff]
      %v1456 = vld [vmem:[%s1405 + $0x190] sm:$0xff]
      %v1457 = vld [vmem:[%s1405 + $0x198] sm:$0xff]
      %v1458 = vld [vmem:[%s1405 + $0x1a0] sm:$0xff]
      %v1459 = vld [vmem:[%s1405 + $0x1a8] sm:$0xff]
      %v1460 = vld [vmem:[%s1405 + $0x1b0] sm:$0xff]
      %v1461 = vld [vmem:[%s1405 + $0x1b8] sm:$0xff]
      %v1462 = vld [vmem:[%s1405 + $0x1c0] sm:$0xff]
      %v1463 = vld [vmem:[%s1405 + $0x1c8] sm:$0xff]
      %v1464 = vld [vmem:[%s1405 + $0x1d0] sm:$0xff]
      %v1465 = vld [vmem:[%s1405 + $0x1d8] sm:$0xff]
      %v1466 = vld [vmem:[%s1405 + $0x1e0] sm:$0xff]
      %v1467 = vld [vmem:[%s1405 + $0x1e8] sm:$0xff]
      %v1468 = vld [vmem:[%s1405 + $0x1f0] sm:$0xff]
      %v1469 = vld [vmem:[%s1405 + $0x1f8] sm:$0xff]
      %v1470 = vld [vmem:[%s1405 + $0x200] sm:$0xff]
      %v1471 = vld [vmem:[%s1405 + $0x208] sm:$0xff]
      %v1472 = vld [vmem:[%s1405 + $0x210] sm:$0xff]
      %v1473 = vld [vmem:[%s1405 + $0x218] sm:$0xff]
      %v1474 = vld [vmem:[%s1405 + $0x220] sm:$0xff]
      %v1475 = vld [vmem:[%s1405 + $0x228] sm:$0xff]
      %v1476 = vld [vmem:[%s1405 + $0x230] sm:$0xff]
      %v1477 = vld [vmem:[%s1405 + $0x238] sm:$0xff]
      %v1478 = vld [vmem:[%s1405 + $0x240] sm:$0xff]
      %v1479 = vld [vmem:[%s1405 + $0x248] sm:$0xff]
      %v1480 = vld [vmem:[%s1405 + $0x250] sm:$0xff]
      %v1481 = vld [vmem:[%s1405 + $0x258] sm:$0xff]
      %v1482 = vld [vmem:[%s1405 + $0x260] sm:$0xff]
      %v1483 = vld [vmem:[%s1405 + $0x268] sm:$0xff]
      %v1484 = vld [vmem:[%s1405 + $0x270] sm:$0xff]
      %v1485 = vld [vmem:[%s1405 + $0x278] sm:$0xff]
      %v1486 = vld [vmem:[%s1405 + $0x280] sm:$0xff]
      %v1487 = vld [vmem:[%s1405 + $0x288] sm:$0xff]
      %v1488 = vld [vmem:[%s1405 + $0x290] sm:$0xff]
      %v1489 = vld [vmem:[%s1405 + $0x298] sm:$0xff]
      %v1490 = vld [vmem:[%s1405 + $0x2a0] sm:$0xff]
      %v1491 = vld [vmem:[%s1405 + $0x2a8] sm:$0xff]
      %v1492 = vld [vmem:[%s1405 + $0x2b0] sm:$0xff]
      %v1493 = vld [vmem:[%s1405 + $0x2b8] sm:$0xff]
      %v1494 = vld [vmem:[%s1405 + $0x2c0] sm:$0xff]
      %v1495 = vld [vmem:[%s1405 + $0x2c8] sm:$0xff]
      %v1496 = vld [vmem:[%s1405 + $0x2d0] sm:$0xff]
      %v1497 = vld [vmem:[%s1405 + $0x2d8] sm:$0xff]
      %v1498 = vld [vmem:[%s1405 + $0x2e0] sm:$0xff]
      %v1499 = vld [vmem:[%s1405 + $0x2e8] sm:$0xff]
      %v1500 = vld [vmem:[%s1405 + $0x2f0] sm:$0xff]
      %v1501 = vld [vmem:[%s1405 + $0x2f8] sm:$0xff]
      %v1502 = vld [vmem:[%s1405 + $0x300] sm:$0xff]
      %v1503 = vld [vmem:[%s1405 + $0x308] sm:$0xff]
      %v1504 = vld [vmem:[%s1405 + $0x310] sm:$0xff]
      %v1505 = vld [vmem:[%s1405 + $0x318] sm:$0xff]
      %v1506 = vld [vmem:[%s1405 + $0x320] sm:$0xff]
      %v1507 = vld [vmem:[%s1405 + $0x328] sm:$0xff]
      %v1508 = vld [vmem:[%s1405 + $0x330] sm:$0xff]
      %v1509 = vld [vmem:[%s1405 + $0x338] sm:$0xff]
      %v1510 = vld [vmem:[%s1405 + $0x340] sm:$0xff]
      %v1511 = vld [vmem:[%s1405 + $0x348] sm:$0xff]
      %v1512 = vld [vmem:[%s1405 + $0x350] sm:$0xff]
      %v1513 = vld [vmem:[%s1405 + $0x358] sm:$0xff]
      %v1514 = vld [vmem:[%s1405 + $0x360] sm:$0xff]
      %v1515 = vld [vmem:[%s1405 + $0x368] sm:$0xff]
      %v1516 = vld [vmem:[%s1405 + $0x370] sm:$0xff]
      %v1517 = vld [vmem:[%s1405 + $0x378] sm:$0xff]
      %v1518 = vld [vmem:[%s1405 + $0x380] sm:$0xff]
      %v1519 = vld [vmem:[%s1405 + $0x388] sm:$0xff]
      %v1520 = vld [vmem:[%s1405 + $0x390] sm:$0xff]
      %v1521 = vld [vmem:[%s1405 + $0x398] sm:$0xff]
      %v1522 = vld [vmem:[%s1405 + $0x3a0] sm:$0xff]
      %v1523 = vld [vmem:[%s1405 + $0x3a8] sm:$0xff]
      %v1524 = vld [vmem:[%s1405 + $0x3b0] sm:$0xff]
      %v1525 = vld [vmem:[%s1405 + $0x3b8] sm:$0xff]
      %v1526 = vld [vmem:[%s1405 + $0x3c0] sm:$0xff]
      %v1527 = vld [vmem:[%s1405 + $0x3c8] sm:$0xff]
      %v1528 = vld [vmem:[%s1405 + $0x3d0] sm:$0xff]
      %v1529 = vld [vmem:[%s1405 + $0x3d8] sm:$0xff]
      %v1530 = vld [vmem:[%s1405 + $0x3e0] sm:$0xff]
      %v1531 = vld [vmem:[%s1405 + $0x3e8] sm:$0xff]
      %v1532 = vld [vmem:[%s1405 + $0x3f0] sm:$0xff]
      %v1533 = vld [vmem:[%s1405 + $0x3f8] sm:$0xff]
      %s1534 = scalar_lea.vmem %s209, 4
      %v1535 = vld [vmem:[%s1534] sm:$0xf]
      %v1536 = vpack.c.bf16 %v1393, %v1389
      %v1537 = vpack.c.bf16 %v1394, %v1390
      %v1538 = vpack.c.bf16 %v1395, %v1391
      %v1539 = vpack.c.bf16 %v1396, %v1392
      %v1540 = vpack.c.bf16 %v1401, %v1397
      %v1541 = vpack.c.bf16 %v1402, %v1398
      %v1542 = vpack.c.bf16 %v1403, %v1399
      %v1543 = vpack.c.bf16 %v1404, %v1400
      %v1545 = vlaneseq
      %v1546 = vshrl.u32 %v1545, 7
      %v1547 = vsub.s32 0, %v1546
      %v1548 = vrot.slane %v1535, %v1547
      %v1549 = vlaneseq
      %v1550 = vshrl.u32 %v1549, 7
      %v1551 = vsub.s32 1, %v1550
      %v1552 = vrot.slane %v1535, %v1551
      %v1553 = vlaneseq
      %v1554 = vshrl.u32 %v1553, 7
      %v1555 = vsub.s32 2, %v1554
      %v1556 = vrot.slane %v1535, %v1555
      %v1557 = vlaneseq
      %v1558 = vshrl.u32 %v1557, 7
      %v1559 = vsub.s32 3, %v1558
      %v1560 = vrot.slane %v1535, %v1559
      %v1693 = vunpack.c.l.b16 %v1406
      %v1694 = vunpack.c.h.b16 %v1406
      %v1695 = vunpack.c.l.b16 %v1407
      %v1696 = vunpack.c.h.b16 %v1407
      %v1697 = vunpack.c.l.b16 %v1408
      %v1698 = vunpack.c.h.b16 %v1408
      %v1699 = vunpack.c.l.b16 %v1409
      %v1700 = vunpack.c.h.b16 %v1409
      %v1701 = vunpack.c.l.b16 %v1410
      %v1702 = vunpack.c.h.b16 %v1410
      %v1703 = vunpack.c.l.b16 %v1411
      %v1704 = vunpack.c.h.b16 %v1411
      %v1705 = vunpack.c.l.b16 %v1412
      %v1706 = vunpack.c.h.b16 %v1412
      %v1707 = vunpack.c.l.b16 %v1413
      %v1708 = vunpack.c.h.b16 %v1413
      %v1709 = vunpack.c.l.b16 %v1414
      %v1710 = vunpack.c.h.b16 %v1414
      %v1711 = vunpack.c.l.b16 %v1415
      %v1712 = vunpack.c.h.b16 %v1415
      %v1713 = vunpack.c.l.b16 %v1416
      %v1714 = vunpack.c.h.b16 %v1416
      %v1715 = vunpack.c.l.b16 %v1417
      %v1716 = vunpack.c.h.b16 %v1417
      %v1717 = vunpack.c.l.b16 %v1418
      %v1718 = vunpack.c.h.b16 %v1418
      %v1719 = vunpack.c.l.b16 %v1419
      %v1720 = vunpack.c.h.b16 %v1419
      %v1721 = vunpack.c.l.b16 %v1420
      %v1722 = vunpack.c.h.b16 %v1420
      %v1723 = vunpack.c.l.b16 %v1421
      %v1724 = vunpack.c.h.b16 %v1421
      %v1725 = vunpack.c.l.b16 %v1422
      %v1726 = vunpack.c.h.b16 %v1422
      %v1727 = vunpack.c.l.b16 %v1423
      %v1728 = vunpack.c.h.b16 %v1423
      %v1729 = vunpack.c.l.b16 %v1424
      %v1730 = vunpack.c.h.b16 %v1424
      %v1731 = vunpack.c.l.b16 %v1425
      %v1732 = vunpack.c.h.b16 %v1425
      %v1733 = vunpack.c.l.b16 %v1426
      %v1734 = vunpack.c.h.b16 %v1426
      %v1735 = vunpack.c.l.b16 %v1427
      %v1736 = vunpack.c.h.b16 %v1427
      %v1737 = vunpack.c.l.b16 %v1428
      %v1738 = vunpack.c.h.b16 %v1428
      %v1739 = vunpack.c.l.b16 %v1429
      %v1740 = vunpack.c.h.b16 %v1429
      %v1741 = vunpack.c.l.b16 %v1430
      %v1742 = vunpack.c.h.b16 %v1430
      %v1743 = vunpack.c.l.b16 %v1431
      %v1744 = vunpack.c.h.b16 %v1431
      %v1745 = vunpack.c.l.b16 %v1432
      %v1746 = vunpack.c.h.b16 %v1432
      %v1747 = vunpack.c.l.b16 %v1433
      %v1748 = vunpack.c.h.b16 %v1433
      %v1749 = vunpack.c.l.b16 %v1434
      %v1750 = vunpack.c.h.b16 %v1434
      %v1751 = vunpack.c.l.b16 %v1435
      %v1752 = vunpack.c.h.b16 %v1435
      %v1753 = vunpack.c.l.b16 %v1436
      %v1754 = vunpack.c.h.b16 %v1436
      %v1755 = vunpack.c.l.b16 %v1437
      %v1756 = vunpack.c.h.b16 %v1437
      %v1757 = vunpack.c.l.b16 %v1438
      %v1758 = vunpack.c.h.b16 %v1438
      %v1759 = vunpack.c.l.b16 %v1439
      %v1760 = vunpack.c.h.b16 %v1439
      %v1761 = vunpack.c.l.b16 %v1440
      %v1762 = vunpack.c.h.b16 %v1440
      %v1763 = vunpack.c.l.b16 %v1441
      %v1764 = vunpack.c.h.b16 %v1441
      %v1765 = vunpack.c.l.b16 %v1442
      %v1766 = vunpack.c.h.b16 %v1442
      %v1767 = vunpack.c.l.b16 %v1443
      %v1768 = vunpack.c.h.b16 %v1443
      %v1769 = vunpack.c.l.b16 %v1444
      %v1770 = vunpack.c.h.b16 %v1444
      %v1771 = vunpack.c.l.b16 %v1445
      %v1772 = vunpack.c.h.b16 %v1445
      %v1773 = vunpack.c.l.b16 %v1446
      %v1774 = vunpack.c.h.b16 %v1446
      %v1775 = vunpack.c.l.b16 %v1447
      %v1776 = vunpack.c.h.b16 %v1447
      %v1777 = vunpack.c.l.b16 %v1448
      %v1778 = vunpack.c.h.b16 %v1448
      %v1779 = vunpack.c.l.b16 %v1449
      %v1780 = vunpack.c.h.b16 %v1449
      %v1781 = vunpack.c.l.b16 %v1450
      %v1782 = vunpack.c.h.b16 %v1450
      %v1783 = vunpack.c.l.b16 %v1451
      %v1784 = vunpack.c.h.b16 %v1451
      %v1785 = vunpack.c.l.b16 %v1452
      %v1786 = vunpack.c.h.b16 %v1452
      %v1787 = vunpack.c.l.b16 %v1453
      %v1788 = vunpack.c.h.b16 %v1453
      %v1789 = vunpack.c.l.b16 %v1454
      %v1790 = vunpack.c.h.b16 %v1454
      %v1791 = vunpack.c.l.b16 %v1455
      %v1792 = vunpack.c.h.b16 %v1455
      %v1793 = vunpack.c.l.b16 %v1456
      %v1794 = vunpack.c.h.b16 %v1456
      %v1795 = vunpack.c.l.b16 %v1457
      %v1796 = vunpack.c.h.b16 %v1457
      %v1797 = vunpack.c.l.b16 %v1458
      %v1798 = vunpack.c.h.b16 %v1458
      %v1799 = vunpack.c.l.b16 %v1459
      %v1800 = vunpack.c.h.b16 %v1459
      %v1801 = vunpack.c.l.b16 %v1460
      %v1802 = vunpack.c.h.b16 %v1460
      %v1803 = vunpack.c.l.b16 %v1461
      %v1804 = vunpack.c.h.b16 %v1461
      %v1805 = vunpack.c.l.b16 %v1462
      %v1806 = vunpack.c.h.b16 %v1462
      %v1807 = vunpack.c.l.b16 %v1463
      %v1808 = vunpack.c.h.b16 %v1463
      %v1809 = vunpack.c.l.b16 %v1464
      %v1810 = vunpack.c.h.b16 %v1464
      %v1811 = vunpack.c.l.b16 %v1465
      %v1812 = vunpack.c.h.b16 %v1465
      %v1813 = vunpack.c.l.b16 %v1466
      %v1814 = vunpack.c.h.b16 %v1466
      %v1815 = vunpack.c.l.b16 %v1467
      %v1816 = vunpack.c.h.b16 %v1467
      %v1817 = vunpack.c.l.b16 %v1468
      %v1818 = vunpack.c.h.b16 %v1468
      %v1819 = vunpack.c.l.b16 %v1469
      %v1820 = vunpack.c.h.b16 %v1469
      %v1821 = vunpack.c.l.b16 %v1470
      %v1822 = vunpack.c.h.b16 %v1470
      %v1823 = vunpack.c.l.b16 %v1471
      %v1824 = vunpack.c.h.b16 %v1471
      %v1825 = vunpack.c.l.b16 %v1472
      %v1826 = vunpack.c.h.b16 %v1472
      %v1827 = vunpack.c.l.b16 %v1473
      %v1828 = vunpack.c.h.b16 %v1473
      %v1829 = vunpack.c.l.b16 %v1474
      %v1830 = vunpack.c.h.b16 %v1474
      %v1831 = vunpack.c.l.b16 %v1475
      %v1832 = vunpack.c.h.b16 %v1475
      %v1833 = vunpack.c.l.b16 %v1476
      %v1834 = vunpack.c.h.b16 %v1476
      %v1835 = vunpack.c.l.b16 %v1477
      %v1836 = vunpack.c.h.b16 %v1477
      %v1837 = vunpack.c.l.b16 %v1478
      %v1838 = vunpack.c.h.b16 %v1478
      %v1839 = vunpack.c.l.b16 %v1479
      %v1840 = vunpack.c.h.b16 %v1479
      %v1841 = vunpack.c.l.b16 %v1480
      %v1842 = vunpack.c.h.b16 %v1480
      %v1843 = vunpack.c.l.b16 %v1481
      %v1844 = vunpack.c.h.b16 %v1481
      %v1845 = vunpack.c.l.b16 %v1482
      %v1846 = vunpack.c.h.b16 %v1482
      %v1847 = vunpack.c.l.b16 %v1483
      %v1848 = vunpack.c.h.b16 %v1483
      %v1849 = vunpack.c.l.b16 %v1484
      %v1850 = vunpack.c.h.b16 %v1484
      %v1851 = vunpack.c.l.b16 %v1485
      %v1852 = vunpack.c.h.b16 %v1485
      %v1853 = vunpack.c.l.b16 %v1486
      %v1854 = vunpack.c.h.b16 %v1486
      %v1855 = vunpack.c.l.b16 %v1487
      %v1856 = vunpack.c.h.b16 %v1487
      %v1857 = vunpack.c.l.b16 %v1488
      %v1858 = vunpack.c.h.b16 %v1488
      %v1859 = vunpack.c.l.b16 %v1489
      %v1860 = vunpack.c.h.b16 %v1489
      %v1861 = vunpack.c.l.b16 %v1490
      %v1862 = vunpack.c.h.b16 %v1490
      %v1863 = vunpack.c.l.b16 %v1491
      %v1864 = vunpack.c.h.b16 %v1491
      %v1865 = vunpack.c.l.b16 %v1492
      %v1866 = vunpack.c.h.b16 %v1492
      %v1867 = vunpack.c.l.b16 %v1493
      %v1868 = vunpack.c.h.b16 %v1493
      %v1869 = vunpack.c.l.b16 %v1494
      %v1870 = vunpack.c.h.b16 %v1494
      %v1871 = vunpack.c.l.b16 %v1495
      %v1872 = vunpack.c.h.b16 %v1495
      %v1873 = vunpack.c.l.b16 %v1496
      %v1874 = vunpack.c.h.b16 %v1496
      %v1875 = vunpack.c.l.b16 %v1497
      %v1876 = vunpack.c.h.b16 %v1497
      %v1877 = vunpack.c.l.b16 %v1498
      %v1878 = vunpack.c.h.b16 %v1498
      %v1879 = vunpack.c.l.b16 %v1499
      %v1880 = vunpack.c.h.b16 %v1499
      %v1881 = vunpack.c.l.b16 %v1500
      %v1882 = vunpack.c.h.b16 %v1500
      %v1883 = vunpack.c.l.b16 %v1501
      %v1884 = vunpack.c.h.b16 %v1501
      %v1885 = vunpack.c.l.b16 %v1502
      %v1886 = vunpack.c.h.b16 %v1502
      %v1887 = vunpack.c.l.b16 %v1503
      %v1888 = vunpack.c.h.b16 %v1503
      %v1889 = vunpack.c.l.b16 %v1504
      %v1890 = vunpack.c.h.b16 %v1504
      %v1891 = vunpack.c.l.b16 %v1505
      %v1892 = vunpack.c.h.b16 %v1505
      %v1893 = vunpack.c.l.b16 %v1506
      %v1894 = vunpack.c.h.b16 %v1506
      %v1895 = vunpack.c.l.b16 %v1507
      %v1896 = vunpack.c.h.b16 %v1507
      %v1897 = vunpack.c.l.b16 %v1508
      %v1898 = vunpack.c.h.b16 %v1508
      %v1899 = vunpack.c.l.b16 %v1509
      %v1900 = vunpack.c.h.b16 %v1509
      %v1901 = vunpack.c.l.b16 %v1510
      %v1902 = vunpack.c.h.b16 %v1510
      %v1903 = vunpack.c.l.b16 %v1511
      %v1904 = vunpack.c.h.b16 %v1511
      %v1905 = vunpack.c.l.b16 %v1512
      %v1906 = vunpack.c.h.b16 %v1512
      %v1907 = vunpack.c.l.b16 %v1513
      %v1908 = vunpack.c.h.b16 %v1513
      %v1909 = vunpack.c.l.b16 %v1514
      %v1910 = vunpack.c.h.b16 %v1514
      %v1911 = vunpack.c.l.b16 %v1515
      %v1912 = vunpack.c.h.b16 %v1515
      %v1913 = vunpack.c.l.b16 %v1516
      %v1914 = vunpack.c.h.b16 %v1516
      %v1915 = vunpack.c.l.b16 %v1517
      %v1916 = vunpack.c.h.b16 %v1517
      %v1917 = vunpack.c.l.b16 %v1518
      %v1918 = vunpack.c.h.b16 %v1518
      %v1919 = vunpack.c.l.b16 %v1519
      %v1920 = vunpack.c.h.b16 %v1519
      %v1921 = vunpack.c.l.b16 %v1520
      %v1922 = vunpack.c.h.b16 %v1520
      %v1923 = vunpack.c.l.b16 %v1521
      %v1924 = vunpack.c.h.b16 %v1521
      %v1925 = vunpack.c.l.b16 %v1522
      %v1926 = vunpack.c.h.b16 %v1522
      %v1927 = vunpack.c.l.b16 %v1523
      %v1928 = vunpack.c.h.b16 %v1523
      %v1929 = vunpack.c.l.b16 %v1524
      %v1930 = vunpack.c.h.b16 %v1524
      %v1931 = vunpack.c.l.b16 %v1525
      %v1932 = vunpack.c.h.b16 %v1525
      %v1933 = vunpack.c.l.b16 %v1526
      %v1934 = vunpack.c.h.b16 %v1526
      %v1935 = vunpack.c.l.b16 %v1527
      %v1936 = vunpack.c.h.b16 %v1527
      %v1937 = vunpack.c.l.b16 %v1528
      %v1938 = vunpack.c.h.b16 %v1528
      %v1939 = vunpack.c.l.b16 %v1529
      %v1940 = vunpack.c.h.b16 %v1529
      %v1941 = vunpack.c.l.b16 %v1530
      %v1942 = vunpack.c.h.b16 %v1530
      %v1943 = vunpack.c.l.b16 %v1531
      %v1944 = vunpack.c.h.b16 %v1531
      %v1945 = vunpack.c.l.b16 %v1532
      %v1946 = vunpack.c.h.b16 %v1532
      %v1947 = vunpack.c.l.b16 %v1533
      %v1948 = vunpack.c.h.b16 %v1533
      %v1949 = vpack.c.b16 %v1697, %v1693
      %v1950 = vpack.c.b16 %v1698, %v1694
      %v1951 = vpack.c.b16 %v1699, %v1695
      %v1952 = vpack.c.b16 %v1700, %v1696
      %v1953 = vpack.c.b16 %v1705, %v1701
      %v1954 = vpack.c.b16 %v1706, %v1702
      %v1955 = vpack.c.b16 %v1707, %v1703
      %v1956 = vpack.c.b16 %v1708, %v1704
      %v1957 = vpack.c.b16 %v1713, %v1709
      %v1958 = vpack.c.b16 %v1714, %v1710
      %v1959 = vpack.c.b16 %v1715, %v1711
      %v1960 = vpack.c.b16 %v1716, %v1712
      %v1961 = vpack.c.b16 %v1721, %v1717
      %v1962 = vpack.c.b16 %v1722, %v1718
      %v1963 = vpack.c.b16 %v1723, %v1719
      %v1964 = vpack.c.b16 %v1724, %v1720
      %v1965 = vpack.c.b16 %v1729, %v1725
      %v1966 = vpack.c.b16 %v1730, %v1726
      %v1967 = vpack.c.b16 %v1731, %v1727
      %v1968 = vpack.c.b16 %v1732, %v1728
      %v1969 = vpack.c.b16 %v1737, %v1733
      %v1970 = vpack.c.b16 %v1738, %v1734
      %v1971 = vpack.c.b16 %v1739, %v1735
      %v1972 = vpack.c.b16 %v1740, %v1736
      %v1973 = vpack.c.b16 %v1745, %v1741
      %v1974 = vpack.c.b16 %v1746, %v1742
      %v1975 = vpack.c.b16 %v1747, %v1743
      %v1976 = vpack.c.b16 %v1748, %v1744
      %v1977 = vpack.c.b16 %v1753, %v1749
      %v1978 = vpack.c.b16 %v1754, %v1750
      %v1979 = vpack.c.b16 %v1755, %v1751
      %v1980 = vpack.c.b16 %v1756, %v1752
      %v1981 = vpack.c.b16 %v1761, %v1757
      %v1982 = vpack.c.b16 %v1762, %v1758
      %v1983 = vpack.c.b16 %v1763, %v1759
      %v1984 = vpack.c.b16 %v1764, %v1760
      %v1985 = vpack.c.b16 %v1769, %v1765
      %v1986 = vpack.c.b16 %v1770, %v1766
      %v1987 = vpack.c.b16 %v1771, %v1767
      %v1988 = vpack.c.b16 %v1772, %v1768
      %v1989 = vpack.c.b16 %v1777, %v1773
      %v1990 = vpack.c.b16 %v1778, %v1774
      %v1991 = vpack.c.b16 %v1779, %v1775
      %v1992 = vpack.c.b16 %v1780, %v1776
      %v1993 = vpack.c.b16 %v1785, %v1781
      %v1994 = vpack.c.b16 %v1786, %v1782
      %v1995 = vpack.c.b16 %v1787, %v1783
      %v1996 = vpack.c.b16 %v1788, %v1784
      %v1997 = vpack.c.b16 %v1793, %v1789
      %v1998 = vpack.c.b16 %v1794, %v1790
      %v1999 = vpack.c.b16 %v1795, %v1791
      %v2000 = vpack.c.b16 %v1796, %v1792
      %v2001 = vpack.c.b16 %v1801, %v1797
      %v2002 = vpack.c.b16 %v1802, %v1798
      %v2003 = vpack.c.b16 %v1803, %v1799
      %v2004 = vpack.c.b16 %v1804, %v1800
      %v2005 = vpack.c.b16 %v1809, %v1805
      %v2006 = vpack.c.b16 %v1810, %v1806
      %v2007 = vpack.c.b16 %v1811, %v1807
      %v2008 = vpack.c.b16 %v1812, %v1808
      %v2009 = vpack.c.b16 %v1817, %v1813
      %v2010 = vpack.c.b16 %v1818, %v1814
      %v2011 = vpack.c.b16 %v1819, %v1815
      %v2012 = vpack.c.b16 %v1820, %v1816
      %v2013 = vpack.c.b16 %v1825, %v1821
      %v2014 = vpack.c.b16 %v1826, %v1822
      %v2015 = vpack.c.b16 %v1827, %v1823
      %v2016 = vpack.c.b16 %v1828, %v1824
      %v2017 = vpack.c.b16 %v1833, %v1829
      %v2018 = vpack.c.b16 %v1834, %v1830
      %v2019 = vpack.c.b16 %v1835, %v1831
      %v2020 = vpack.c.b16 %v1836, %v1832
      %v2021 = vpack.c.b16 %v1841, %v1837
      %v2022 = vpack.c.b16 %v1842, %v1838
      %v2023 = vpack.c.b16 %v1843, %v1839
      %v2024 = vpack.c.b16 %v1844, %v1840
      %v2025 = vpack.c.b16 %v1849, %v1845
      %v2026 = vpack.c.b16 %v1850, %v1846
      %v2027 = vpack.c.b16 %v1851, %v1847
      %v2028 = vpack.c.b16 %v1852, %v1848
      %v2029 = vpack.c.b16 %v1857, %v1853
      %v2030 = vpack.c.b16 %v1858, %v1854
      %v2031 = vpack.c.b16 %v1859, %v1855
      %v2032 = vpack.c.b16 %v1860, %v1856
      %v2033 = vpack.c.b16 %v1865, %v1861
      %v2034 = vpack.c.b16 %v1866, %v1862
      %v2035 = vpack.c.b16 %v1867, %v1863
      %v2036 = vpack.c.b16 %v1868, %v1864
      %v2037 = vpack.c.b16 %v1873, %v1869
      %v2038 = vpack.c.b16 %v1874, %v1870
      %v2039 = vpack.c.b16 %v1875, %v1871
      %v2040 = vpack.c.b16 %v1876, %v1872
      %v2041 = vpack.c.b16 %v1881, %v1877
      %v2042 = vpack.c.b16 %v1882, %v1878
      %v2043 = vpack.c.b16 %v1883, %v1879
      %v2044 = vpack.c.b16 %v1884, %v1880
      %v2045 = vpack.c.b16 %v1889, %v1885
      %v2046 = vpack.c.b16 %v1890, %v1886
      %v2047 = vpack.c.b16 %v1891, %v1887
      %v2048 = vpack.c.b16 %v1892, %v1888
      %v2049 = vpack.c.b16 %v1897, %v1893
      %v2050 = vpack.c.b16 %v1898, %v1894
      %v2051 = vpack.c.b16 %v1899, %v1895
      %v2052 = vpack.c.b16 %v1900, %v1896
      %v2053 = vpack.c.b16 %v1905, %v1901
      %v2054 = vpack.c.b16 %v1906, %v1902
      %v2055 = vpack.c.b16 %v1907, %v1903
      %v2056 = vpack.c.b16 %v1908, %v1904
      %v2057 = vpack.c.b16 %v1913, %v1909
      %v2058 = vpack.c.b16 %v1914, %v1910
      %v2059 = vpack.c.b16 %v1915, %v1911
      %v2060 = vpack.c.b16 %v1916, %v1912
      %v2061 = vpack.c.b16 %v1921, %v1917
      %v2062 = vpack.c.b16 %v1922, %v1918
      %v2063 = vpack.c.b16 %v1923, %v1919
      %v2064 = vpack.c.b16 %v1924, %v1920
      %v2065 = vpack.c.b16 %v1929, %v1925
      %v2066 = vpack.c.b16 %v1930, %v1926
      %v2067 = vpack.c.b16 %v1931, %v1927
      %v2068 = vpack.c.b16 %v1932, %v1928
      %v2069 = vpack.c.b16 %v1937, %v1933
      %v2070 = vpack.c.b16 %v1938, %v1934
      %v2071 = vpack.c.b16 %v1939, %v1935
      %v2072 = vpack.c.b16 %v1940, %v1936
      %v2073 = vpack.c.b16 %v1945, %v1941
      %v2074 = vpack.c.b16 %v1946, %v1942
      %v2075 = vpack.c.b16 %v1947, %v1943
      %v2076 = vpack.c.b16 %v1948, %v1944
      %2205 = vmatprep.subr.bf16.mxu0 %v1950
      %2206 = vmatpush1.bf16.msra.mxu0 %v1949
      %2207 = vmatprep.subr.bf16.mxu0 %v1954
      %2208 = vmatpush1.bf16.msra.mxu0 %v1953
      %2209 = vmatprep.subr.bf16.mxu0 %v1958
      %2210 = vmatpush1.bf16.msra.mxu0 %v1957
      %2211 = vmatprep.subr.bf16.mxu0 %v1962
      %2212 = vmatpush1.bf16.msra.mxu0 %v1961
      %2213 = vmatprep.subr.bf16.mxu0 %v1966
      %2214 = vmatpush1.bf16.msra.mxu0 %v1965
      %2215 = vmatprep.subr.bf16.mxu0 %v1970
      %2216 = vmatpush1.bf16.msra.mxu0 %v1969
      %2217 = vmatprep.subr.bf16.mxu0 %v1974
      %2218 = vmatpush1.bf16.msra.mxu0 %v1973
      %2219 = vmatprep.subr.bf16.mxu0 %v1978
      %2220 = vmatpush1.bf16.msra.mxu0 %v1977
      %2221 = vmatprep.subr.bf16.mxu0 %v1982
      %2222 = vmatpush1.bf16.msra.mxu0 %v1981
      %2223 = vmatprep.subr.bf16.mxu0 %v1986
      %2224 = vmatpush1.bf16.msra.mxu0 %v1985
      %2225 = vmatprep.subr.bf16.mxu0 %v1990
      %2226 = vmatpush1.bf16.msra.mxu0 %v1989
      %2227 = vmatprep.subr.bf16.mxu0 %v1994
      %2228 = vmatpush1.bf16.msra.mxu0 %v1993
      %2229 = vmatprep.subr.bf16.mxu0 %v1998
      %2230 = vmatpush1.bf16.msra.mxu0 %v1997
      %2231 = vmatprep.subr.bf16.mxu0 %v2002
      %2232 = vmatpush1.bf16.msra.mxu0 %v2001
      %2233 = vmatprep.subr.bf16.mxu0 %v2006
      %2234 = vmatpush1.bf16.msra.mxu0 %v2005
      %2235 = vmatprep.subr.bf16.mxu0 %v2010
      %2236 = vmatpush1.bf16.msra.mxu0 %v2009
      %2237 = vmatprep.mubr.bf16.mxu0 %v1537
      %2238 = vmatmul.mubr.bf16.gmra.mrb[0].mxu0 %v1536
      %v2239 = vpop.f32.mrb[0].mxu0
      %v2240 = vadd.f32 %v1548, %v2239
      %v2241 = vpop.f32.mrb[0].mxu0
      %v2242 = vadd.f32 %v1552, %v2241
      %v2243 = vpop.f32.mrb[0].mxu0
      %v2244 = vadd.f32 %v1548, %v2243
      %v2245 = vpop.f32.mrb[0].mxu0
      %v2246 = vadd.f32 %v1552, %v2245
      %2247 = vmatprep.mubr.bf16.mxu0 %v1541
      %2248 = vmatmul.mubr.bf16.gmra.mrb[0].mxu0 %v1540
      %v2249 = vpop.f32.mrb[0].mxu0
      %v2250 = vadd.f32 %v1548, %v2249
      %v2251 = vpop.f32.mrb[0].mxu0
      %v2252 = vadd.f32 %v1552, %v2251
      %v2253 = vpop.f32.mrb[0].mxu0
      %v2254 = vadd.f32 %v1548, %v2253
      %v2255 = vpop.f32.mrb[0].mxu0
      %v2256 = vadd.f32 %v1552, %v2255
      %2257 = vdwg.mxu0
      %2258 = vmatprep.subr.bf16.mxu0 %v2014
      %2259 = vmatpush1.bf16.msra.mxu0 %v2013
      %2260 = vmatprep.subr.bf16.mxu0 %v2018
      %2261 = vmatpush1.bf16.msra.mxu0 %v2017
      %2262 = vmatprep.subr.bf16.mxu0 %v2022
      %2263 = vmatpush1.bf16.msra.mxu0 %v2021
      %2264 = vmatprep.subr.bf16.mxu0 %v2026
      %2265 = vmatpush1.bf16.msra.mxu0 %v2025
      %2266 = vmatprep.subr.bf16.mxu0 %v2030
      %2267 = vmatpush1.bf16.msra.mxu0 %v2029
      %2268 = vmatprep.subr.bf16.mxu0 %v2034
      %2269 = vmatpush1.bf16.msra.mxu0 %v2033
      %2270 = vmatprep.subr.bf16.mxu0 %v2038
      %2271 = vmatpush1.bf16.msra.mxu0 %v2037
      %2272 = vmatprep.subr.bf16.mxu0 %v2042
      %2273 = vmatpush1.bf16.msra.mxu0 %v2041
      %2274 = vmatprep.subr.bf16.mxu0 %v2046
      %2275 = vmatpush1.bf16.msra.mxu0 %v2045
      %2276 = vmatprep.subr.bf16.mxu0 %v2050
      %2277 = vmatpush1.bf16.msra.mxu0 %v2049
      %2278 = vmatprep.subr.bf16.mxu0 %v2054
      %2279 = vmatpush1.bf16.msra.mxu0 %v2053
      %2280 = vmatprep.subr.bf16.mxu0 %v2058
      %2281 = vmatpush1.bf16.msra.mxu0 %v2057
      %2282 = vmatprep.subr.bf16.mxu0 %v2062
      %2283 = vmatpush1.bf16.msra.mxu0 %v2061
      %2284 = vmatprep.subr.bf16.mxu0 %v2066
      %2285 = vmatpush1.bf16.msra.mxu0 %v2065
      %2286 = vmatprep.subr.bf16.mxu0 %v2070
      %2287 = vmatpush1.bf16.msra.mxu0 %v2069
      %2288 = vmatprep.subr.bf16.mxu0 %v2074
      %2289 = vmatpush1.bf16.msra.mxu0 %v2073
      %2290 = vmatprep.mubr.bf16.mxu0 %v1539
      %2291 = vmatmul.mubr.bf16.gmra.mrb[0].mxu0 %v1538
      %v2292 = vpop.f32.mrb[0].mxu0
      %v2293 = vadd.f32 %v2240, %v2292
      %v2294 = vpop.f32.mrb[0].mxu0
      %v2295 = vadd.f32 %v2242, %v2294
      %v2296 = vpop.f32.mrb[0].mxu0
      %v2297 = vadd.f32 %v2244, %v2296
      %v2298 = vpop.f32.mrb[0].mxu0
      %v2299 = vadd.f32 %v2246, %v2298
      %2300 = vmatprep.mubr.bf16.mxu0 %v1543
      %2301 = vmatmul.mubr.bf16.gmra.mrb[0].mxu0 %v1542
      %v2302 = vpop.f32.mrb[0].mxu0
      %v2303 = vadd.f32 %v2250, %v2302
      %v2304 = vpop.f32.mrb[0].mxu0
      %v2305 = vadd.f32 %v2252, %v2304
      %v2306 = vpop.f32.mrb[0].mxu0
      %v2307 = vadd.f32 %v2254, %v2306
      %v2308 = vpop.f32.mrb[0].mxu0
      %v2309 = vadd.f32 %v2256, %v2308
      %2310 = vdwg.mxu0
      %2311 = vmatprep.subr.bf16.mxu0 %v1952
      %2312 = vmatpush1.bf16.msra.mxu0 %v1951
      %2313 = vmatprep.subr.bf16.mxu0 %v1956
      %2314 = vmatpush1.bf16.msra.mxu0 %v1955
      %2315 = vmatprep.subr.bf16.mxu0 %v1960
      %2316 = vmatpush1.bf16.msra.mxu0 %v1959
      %2317 = vmatprep.subr.bf16.mxu0 %v1964
      %2318 = vmatpush1.bf16.msra.mxu0 %v1963
      %2319 = vmatprep.subr.bf16.mxu0 %v1968
      %2320 = vmatpush1.bf16.msra.mxu0 %v1967
      %2321 = vmatprep.subr.bf16.mxu0 %v1972
      %2322 = vmatpush1.bf16.msra.mxu0 %v1971
      %2323 = vmatprep.subr.bf16.mxu0 %v1976
      %2324 = vmatpush1.bf16.msra.mxu0 %v1975
      %2325 = vmatprep.subr.bf16.mxu0 %v1980
      %2326 = vmatpush1.bf16.msra.mxu0 %v1979
      %2327 = vmatprep.subr.bf16.mxu0 %v1984
      %2328 = vmatpush1.bf16.msra.mxu0 %v1983
      %2329 = vmatprep.subr.bf16.mxu0 %v1988
      %2330 = vmatpush1.bf16.msra.mxu0 %v1987
      %2331 = vmatprep.subr.bf16.mxu0 %v1992
      %2332 = vmatpush1.bf16.msra.mxu0 %v1991
      %2333 = vmatprep.subr.bf16.mxu0 %v1996
      %2334 = vmatpush1.bf16.msra.mxu0 %v1995
      %2335 = vmatprep.subr.bf16.mxu0 %v2000
      %2336 = vmatpush1.bf16.msra.mxu0 %v1999
      %2337 = vmatprep.subr.bf16.mxu0 %v2004
      %2338 = vmatpush1.bf16.msra.mxu0 %v2003
      %2339 = vmatprep.subr.bf16.mxu0 %v2008
      %2340 = vmatpush1.bf16.msra.mxu0 %v2007
      %2341 = vmatprep.subr.bf16.mxu0 %v2012
      %2342 = vmatpush1.bf16.msra.mxu0 %v2011
      %2343 = vmatprep.mubr.bf16.mxu0 %v1537
      %2344 = vmatmul.mubr.bf16.gmra.mrb[0].mxu0 %v1536
      %v2345 = vpop.f32.mrb[0].mxu0
      %v2346 = vadd.f32 %v1556, %v2345
      %v2347 = vpop.f32.mrb[0].mxu0
      %v2348 = vadd.f32 %v1560, %v2347
      %v2349 = vpop.f32.mrb[0].mxu0
      %v2350 = vadd.f32 %v1556, %v2349
      %v2351 = vpop.f32.mrb[0].mxu0
      %v2352 = vadd.f32 %v1560, %v2351
      %2353 = vmatprep.mubr.bf16.mxu0 %v1541
      %2354 = vmatmul.mubr.bf16.gmra.mrb[0].mxu0 %v1540
      %v2355 = vpop.f32.mrb[0].mxu0
      %v2356 = vadd.f32 %v1556, %v2355
      %v2357 = vpop.f32.mrb[0].mxu0
      %v2358 = vadd.f32 %v1560, %v2357
      %v2359 = vpop.f32.mrb[0].mxu0
      %v2360 = vadd.f32 %v1556, %v2359
      %v2361 = vpop.f32.mrb[0].mxu0
      %v2362 = vadd.f32 %v1560, %v2361
      %2363 = vdwg.mxu0
      %2364 = vmatprep.subr.bf16.mxu0 %v2016
      %2365 = vmatpush1.bf16.msra.mxu0 %v2015
      %2366 = vmatprep.subr.bf16.mxu0 %v2020
      %2367 = vmatpush1.bf16.msra.mxu0 %v2019
      %2368 = vmatprep.subr.bf16.mxu0 %v2024
      %2369 = vmatpush1.bf16.msra.mxu0 %v2023
      %2370 = vmatprep.subr.bf16.mxu0 %v2028
      %2371 = vmatpush1.bf16.msra.mxu0 %v2027
      %2372 = vmatprep.subr.bf16.mxu0 %v2032
      %2373 = vmatpush1.bf16.msra.mxu0 %v2031
      %2374 = vmatprep.subr.bf16.mxu0 %v2036
      %2375 = vmatpush1.bf16.msra.mxu0 %v2035
      %2376 = vmatprep.subr.bf16.mxu0 %v2040
      %2377 = vmatpush1.bf16.msra.mxu0 %v2039
      %2378 = vmatprep.subr.bf16.mxu0 %v2044
      %2379 = vmatpush1.bf16.msra.mxu0 %v2043
      %2380 = vmatprep.subr.bf16.mxu0 %v2048
      %2381 = vmatpush1.bf16.msra.mxu0 %v2047
      %2382 = vmatprep.subr.bf16.mxu0 %v2052
      %2383 = vmatpush1.bf16.msra.mxu0 %v2051
      %2384 = vmatprep.subr.bf16.mxu0 %v2056
      %2385 = vmatpush1.bf16.msra.mxu0 %v2055
      %2386 = vmatprep.subr.bf16.mxu0 %v2060
      %2387 = vmatpush1.bf16.msra.mxu0 %v2059
      %2388 = vmatprep.subr.bf16.mxu0 %v2064
      %2389 = vmatpush1.bf16.msra.mxu0 %v2063
      %2390 = vmatprep.subr.bf16.mxu0 %v2068
      %2391 = vmatpush1.bf16.msra.mxu0 %v2067
      %2392 = vmatprep.subr.bf16.mxu0 %v2072
      %2393 = vmatpush1.bf16.msra.mxu0 %v2071
      %2394 = vmatprep.subr.bf16.mxu0 %v2076
      %2395 = vmatpush1.bf16.msra.mxu0 %v2075
      %2396 = vmatprep.mubr.bf16.mxu0 %v1539
      %2397 = vmatmul.mubr.bf16.gmra.mrb[0].mxu0 %v1538
      %v2398 = vpop.f32.mrb[0].mxu0
      %v2399 = vadd.f32 %v2346, %v2398
      %v2400 = vpop.f32.mrb[0].mxu0
      %v2401 = vadd.f32 %v2348, %v2400
      %v2402 = vpop.f32.mrb[0].mxu0
      %v2403 = vadd.f32 %v2350, %v2402
      %v2404 = vpop.f32.mrb[0].mxu0
      %v2405 = vadd.f32 %v2352, %v2404
      %2406 = vmatprep.mubr.bf16.mxu0 %v1543
      %2407 = vmatmul.mubr.bf16.gmra.mrb[0].mxu0 %v1542
      %v2408 = vpop.f32.mrb[0].mxu0
      %v2409 = vadd.f32 %v2356, %v2408
      %v2410 = vpop.f32.mrb[0].mxu0
      %v2411 = vadd.f32 %v2358, %v2410
      %v2412 = vpop.f32.mrb[0].mxu0
      %v2413 = vadd.f32 %v2360, %v2412
      %v2414 = vpop.f32.mrb[0].mxu0
      %v2415 = vadd.f32 %v2362, %v2414
      %2416 = vdwg.mxu0
      %v2417 = vmul.f32 %v2293, 0.2
      %v2418 = vmul.f32 %v2295, 0.2
      %v2419 = vmul.f32 %v2399, 0.2
      %v2420 = vmul.f32 %v2401, 0.2
      %v2421 = vmul.f32 %v2297, 0.2
      %v2422 = vmul.f32 %v2299, 0.2
      %v2423 = vmul.f32 %v2403, 0.2
      %v2424 = vmul.f32 %v2405, 0.2
      %v2425 = vmul.f32 %v2303, 0.2
      %v2426 = vmul.f32 %v2305, 0.2
      %v2427 = vmul.f32 %v2409, 0.2
      %v2428 = vmul.f32 %v2411, 0.2
      %v2429 = vmul.f32 %v2307, 0.2
      %v2430 = vmul.f32 %v2309, 0.2
      %v2431 = vmul.f32 %v2413, 0.2
      %v2432 = vmul.f32 %v2415, 0.2
      %v2433 = vmax.f32 %v2293, %v2417
      %v2434 = vmax.f32 %v2295, %v2418
      %v2435 = vmax.f32 %v2399, %v2419
      %v2436 = vmax.f32 %v2401, %v2420
      %v2437 = vmax.f32 %v2297, %v2421
      %v2438 = vmax.f32 %v2299, %v2422
      %v2439 = vmax.f32 %v2403, %v2423
      %v2440 = vmax.f32 %v2405, %v2424
      %v2441 = vmax.f32 %v2303, %v2425
      %v2442 = vmax.f32 %v2305, %v2426
      %v2443 = vmax.f32 %v2409, %v2427
      %v2444 = vmax.f32 %v2411, %v2428
      %v2445 = vmax.f32 %v2307, %v2429
      %v2446 = vmax.f32 %v2309, %v2430
      %v2447 = vmax.f32 %v2413, %v2431
      %v2448 = vmax.f32 %v2415, %v2432
      %v2449 = vmul.f32 %v2433, 1.4142135
      %v2450 = vmul.f32 %v2434, 1.4142135
      %v2451 = vmul.f32 %v2435, 1.4142135
      %v2452 = vmul.f32 %v2436, 1.4142135
      %v2453 = vmul.f32 %v2437, 1.4142135
      %v2454 = vmul.f32 %v2438, 1.4142135
      %v2455 = vmul.f32 %v2439, 1.4142135
      %v2456 = vmul.f32 %v2440, 1.4142135
      %v2457 = vmul.f32 %v2441, 1.4142135
      %v2458 = vmul.f32 %v2442, 1.4142135
      %v2459 = vmul.f32 %v2443, 1.4142135
      %v2460 = vmul.f32 %v2444, 1.4142135
      %v2461 = vmul.f32 %v2445, 1.4142135
      %v2462 = vmul.f32 %v2446, 1.4142135
      %v2463 = vmul.f32 %v2447, 1.4142135
      %v2464 = vmul.f32 %v2448, 1.4142135
      %s2465 = scalar_lea.vmem %s205, 2048
      %v2466 = vld [vmem:[%s2465] sm:$0xff]
      %v2467 = vld [vmem:[%s2465 + $0x8] sm:$0xff]
      %v2468 = vld [vmem:[%s2465 + $0x10] sm:$0xff]
      %v2469 = vld [vmem:[%s2465 + $0x18] sm:$0xff]
      %v2470 = vld [vmem:[%s2465 + $0x20] sm:$0xff]
      %v2471 = vld [vmem:[%s2465 + $0x28] sm:$0xff]
      %v2472 = vld [vmem:[%s2465 + $0x30] sm:$0xff]
      %v2473 = vld [vmem:[%s2465 + $0x38] sm:$0xff]
      %v2474 = vld [vmem:[%s2465 + $0x40] sm:$0xff]
      %v2475 = vld [vmem:[%s2465 + $0x48] sm:$0xff]
      %v2476 = vld [vmem:[%s2465 + $0x50] sm:$0xff]
      %v2477 = vld [vmem:[%s2465 + $0x58] sm:$0xff]
      %v2478 = vld [vmem:[%s2465 + $0x60] sm:$0xff]
      %v2479 = vld [vmem:[%s2465 + $0x68] sm:$0xff]
      %v2480 = vld [vmem:[%s2465 + $0x70] sm:$0xff]
      %v2481 = vld [vmem:[%s2465 + $0x78] sm:$0xff]
      %v2482 = vld [vmem:[%s2465 + $0x80] sm:$0xff]
      %v2483 = vld [vmem:[%s2465 + $0x88] sm:$0xff]
      %v2484 = vld [vmem:[%s2465 + $0x90] sm:$0xff]
      %v2485 = vld [vmem:[%s2465 + $0x98] sm:$0xff]
      %v2486 = vld [vmem:[%s2465 + $0xa0] sm:$0xff]
      %v2487 = vld [vmem:[%s2465 + $0xa8] sm:$0xff]
      %v2488 = vld [vmem:[%s2465 + $0xb0] sm:$0xff]
      %v2489 = vld [vmem:[%s2465 + $0xb8] sm:$0xff]
      %v2490 = vld [vmem:[%s2465 + $0xc0] sm:$0xff]
      %v2491 = vld [vmem:[%s2465 + $0xc8] sm:$0xff]
      %v2492 = vld [vmem:[%s2465 + $0xd0] sm:$0xff]
      %v2493 = vld [vmem:[%s2465 + $0xd8] sm:$0xff]
      %v2494 = vld [vmem:[%s2465 + $0xe0] sm:$0xff]
      %v2495 = vld [vmem:[%s2465 + $0xe8] sm:$0xff]
      %v2496 = vld [vmem:[%s2465 + $0xf0] sm:$0xff]
      %v2497 = vld [vmem:[%s2465 + $0xf8] sm:$0xff]
      %v2498 = vld [vmem:[%s2465 + $0x100] sm:$0xff]
      %v2499 = vld [vmem:[%s2465 + $0x108] sm:$0xff]
      %v2500 = vld [vmem:[%s2465 + $0x110] sm:$0xff]
      %v2501 = vld [vmem:[%s2465 + $0x118] sm:$0xff]
      %v2502 = vld [vmem:[%s2465 + $0x120] sm:$0xff]
      %v2503 = vld [vmem:[%s2465 + $0x128] sm:$0xff]
      %v2504 = vld [vmem:[%s2465 + $0x130] sm:$0xff]
      %v2505 = vld [vmem:[%s2465 + $0x138] sm:$0xff]
      %v2506 = vld [vmem:[%s2465 + $0x140] sm:$0xff]
      %v2507 = vld [vmem:[%s2465 + $0x148] sm:$0xff]
      %v2508 = vld [vmem:[%s2465 + $0x150] sm:$0xff]
      %v2509 = vld [vmem:[%s2465 + $0x158] sm:$0xff]
      %v2510 = vld [vmem:[%s2465 + $0x160] sm:$0xff]
      %v2511 = vld [vmem:[%s2465 + $0x168] sm:$0xff]
      %v2512 = vld [vmem:[%s2465 + $0x170] sm:$0xff]
      %v2513 = vld [vmem:[%s2465 + $0x178] sm:$0xff]
      %v2514 = vld [vmem:[%s2465 + $0x180] sm:$0xff]
      %v2515 = vld [vmem:[%s2465 + $0x188] sm:$0xff]
      %v2516 = vld [vmem:[%s2465 + $0x190] sm:$0xff]
      %v2517 = vld [vmem:[%s2465 + $0x198] sm:$0xff]
      %v2518 = vld [vmem:[%s2465 + $0x1a0] sm:$0xff]
      %v2519 = vld [vmem:[%s2465 + $0x1a8] sm:$0xff]
      %v2520 = vld [vmem:[%s2465 + $0x1b0] sm:$0xff]
      %v2521 = vld [vmem:[%s2465 + $0x1b8] sm:$0xff]
      %v2522 = vld [vmem:[%s2465 + $0x1c0] sm:$0xff]
      %v2523 = vld [vmem:[%s2465 + $0x1c8] sm:$0xff]
      %v2524 = vld [vmem:[%s2465 + $0x1d0] sm:$0xff]
      %v2525 = vld [vmem:[%s2465 + $0x1d8] sm:$0xff]
      %v2526 = vld [vmem:[%s2465 + $0x1e0] sm:$0xff]
      %v2527 = vld [vmem:[%s2465 + $0x1e8] sm:$0xff]
      %v2528 = vld [vmem:[%s2465 + $0x1f0] sm:$0xff]
      %v2529 = vld [vmem:[%s2465 + $0x1f8] sm:$0xff]
      %v2530 = vld [vmem:[%s2465 + $0x200] sm:$0xff]
      %v2531 = vld [vmem:[%s2465 + $0x208] sm:$0xff]
      %v2532 = vld [vmem:[%s2465 + $0x210] sm:$0xff]
      %v2533 = vld [vmem:[%s2465 + $0x218] sm:$0xff]
      %v2534 = vld [vmem:[%s2465 + $0x220] sm:$0xff]
      %v2535 = vld [vmem:[%s2465 + $0x228] sm:$0xff]
      %v2536 = vld [vmem:[%s2465 + $0x230] sm:$0xff]
      %v2537 = vld [vmem:[%s2465 + $0x238] sm:$0xff]
      %v2538 = vld [vmem:[%s2465 + $0x240] sm:$0xff]
      %v2539 = vld [vmem:[%s2465 + $0x248] sm:$0xff]
      %v2540 = vld [vmem:[%s2465 + $0x250] sm:$0xff]
      %v2541 = vld [vmem:[%s2465 + $0x258] sm:$0xff]
      %v2542 = vld [vmem:[%s2465 + $0x260] sm:$0xff]
      %v2543 = vld [vmem:[%s2465 + $0x268] sm:$0xff]
      %v2544 = vld [vmem:[%s2465 + $0x270] sm:$0xff]
      %v2545 = vld [vmem:[%s2465 + $0x278] sm:$0xff]
      %v2546 = vld [vmem:[%s2465 + $0x280] sm:$0xff]
      %v2547 = vld [vmem:[%s2465 + $0x288] sm:$0xff]
      %v2548 = vld [vmem:[%s2465 + $0x290] sm:$0xff]
      %v2549 = vld [vmem:[%s2465 + $0x298] sm:$0xff]
      %v2550 = vld [vmem:[%s2465 + $0x2a0] sm:$0xff]
      %v2551 = vld [vmem:[%s2465 + $0x2a8] sm:$0xff]
      %v2552 = vld [vmem:[%s2465 + $0x2b0] sm:$0xff]
      %v2553 = vld [vmem:[%s2465 + $0x2b8] sm:$0xff]
      %v2554 = vld [vmem:[%s2465 + $0x2c0] sm:$0xff]
      %v2555 = vld [vmem:[%s2465 + $0x2c8] sm:$0xff]
      %v2556 = vld [vmem:[%s2465 + $0x2d0] sm:$0xff]
      %v2557 = vld [vmem:[%s2465 + $0x2d8] sm:$0xff]
      %v2558 = vld [vmem:[%s2465 + $0x2e0] sm:$0xff]
      %v2559 = vld [vmem:[%s2465 + $0x2e8] sm:$0xff]
      %v2560 = vld [vmem:[%s2465 + $0x2f0] sm:$0xff]
      %v2561 = vld [vmem:[%s2465 + $0x2f8] sm:$0xff]
      %v2562 = vld [vmem:[%s2465 + $0x300] sm:$0xff]
      %v2563 = vld [vmem:[%s2465 + $0x308] sm:$0xff]
      %v2564 = vld [vmem:[%s2465 + $0x310] sm:$0xff]
      %v2565 = vld [vmem:[%s2465 + $0x318] sm:$0xff]
      %v2566 = vld [vmem:[%s2465 + $0x320] sm:$0xff]
      %v2567 = vld [vmem:[%s2465 + $0x328] sm:$0xff]
      %v2568 = vld [vmem:[%s2465 + $0x330] sm:$0xff]
      %v2569 = vld [vmem:[%s2465 + $0x338] sm:$0xff]
      %v2570 = vld [vmem:[%s2465 + $0x340] sm:$0xff]
      %v2571 = vld [vmem:[%s2465 + $0x348] sm:$0xff]
      %v2572 = vld [vmem:[%s2465 + $0x350] sm:$0xff]
      %v2573 = vld [vmem:[%s2465 + $0x358] sm:$0xff]
      %v2574 = vld [vmem:[%s2465 + $0x360] sm:$0xff]
      %v2575 = vld [vmem:[%s2465 + $0x368] sm:$0xff]
      %v2576 = vld [vmem:[%s2465 + $0x370] sm:$0xff]
      %v2577 = vld [vmem:[%s2465 + $0x378] sm:$0xff]
      %v2578 = vld [vmem:[%s2465 + $0x380] sm:$0xff]
      %v2579 = vld [vmem:[%s2465 + $0x388] sm:$0xff]
      %v2580 = vld [vmem:[%s2465 + $0x390] sm:$0xff]
      %v2581 = vld [vmem:[%s2465 + $0x398] sm:$0xff]
      %v2582 = vld [vmem:[%s2465 + $0x3a0] sm:$0xff]
      %v2583 = vld [vmem:[%s2465 + $0x3a8] sm:$0xff]
      %v2584 = vld [vmem:[%s2465 + $0x3b0] sm:$0xff]
      %v2585 = vld [vmem:[%s2465 + $0x3b8] sm:$0xff]
      %v2586 = vld [vmem:[%s2465 + $0x3c0] sm:$0xff]
      %v2587 = vld [vmem:[%s2465 + $0x3c8] sm:$0xff]
      %v2588 = vld [vmem:[%s2465 + $0x3d0] sm:$0xff]
      %v2589 = vld [vmem:[%s2465 + $0x3d8] sm:$0xff]
      %v2590 = vld [vmem:[%s2465 + $0x3e0] sm:$0xff]
      %v2591 = vld [vmem:[%s2465 + $0x3e8] sm:$0xff]
      %v2592 = vld [vmem:[%s2465 + $0x3f0] sm:$0xff]
      %v2593 = vld [vmem:[%s2465 + $0x3f8] sm:$0xff]
      %s2594 = scalar_lea.vmem %s209, 8
      %v2595 = vld [vmem:[%s2594] sm:$0xf]
      %v2596 = vpack.c.bf16 %v2453, %v2449
      %v2597 = vpack.c.bf16 %v2454, %v2450
      %v2598 = vpack.c.bf16 %v2455, %v2451
      %v2599 = vpack.c.bf16 %v2456, %v2452
      %v2600 = vpack.c.bf16 %v2461, %v2457
      %v2601 = vpack.c.bf16 %v2462, %v2458
      %v2602 = vpack.c.bf16 %v2463, %v2459
      %v2603 = vpack.c.bf16 %v2464, %v2460
      %v2605 = vlaneseq
      %v2606 = vshrl.u32 %v2605, 7
      %v2607 = vsub.s32 0, %v2606
      %v2608 = vrot.slane %v2595, %v2607
      %v2609 = vlaneseq
      %v2610 = vshrl.u32 %v2609, 7
      %v2611 = vsub.s32 1, %v2610
      %v2612 = vrot.slane %v2595, %v2611
      %v2613 = vlaneseq
      %v2614 = vshrl.u32 %v2613, 7
      %v2615 = vsub.s32 2, %v2614
      %v2616 = vrot.slane %v2595, %v2615
      %v2617 = vlaneseq
      %v2618 = vshrl.u32 %v2617, 7
      %v2619 = vsub.s32 3, %v2618
      %v2620 = vrot.slane %v2595, %v2619
      %v2753 = vunpack.c.l.b16 %v2466
      %v2754 = vunpack.c.h.b16 %v2466
      %v2755 = vunpack.c.l.b16 %v2467
      %v2756 = vunpack.c.h.b16 %v2467
      %v2757 = vunpack.c.l.b16 %v2468
      %v2758 = vunpack.c.h.b16 %v2468
      %v2759 = vunpack.c.l.b16 %v2469
      %v2760 = vunpack.c.h.b16 %v2469
      %v2761 = vunpack.c.l.b16 %v2470
      %v2762 = vunpack.c.h.b16 %v2470
      %v2763 = vunpack.c.l.b16 %v2471
      %v2764 = vunpack.c.h.b16 %v2471
      %v2765 = vunpack.c.l.b16 %v2472
      %v2766 = vunpack.c.h.b16 %v2472
      %v2767 = vunpack.c.l.b16 %v2473
      %v2768 = vunpack.c.h.b16 %v2473
      %v2769 = vunpack.c.l.b16 %v2474
      %v2770 = vunpack.c.h.b16 %v2474
      %v2771 = vunpack.c.l.b16 %v2475
      %v2772 = vunpack.c.h.b16 %v2475
      %v2773 = vunpack.c.l.b16 %v2476
      %v2774 = vunpack.c.h.b16 %v2476
      %v2775 = vunpack.c.l.b16 %v2477
      %v2776 = vunpack.c.h.b16 %v2477
      %v2777 = vunpack.c.l.b16 %v2478
      %v2778 = vunpack.c.h.b16 %v2478
      %v2779 = vunpack.c.l.b16 %v2479
      %v2780 = vunpack.c.h.b16 %v2479
      %v2781 = vunpack.c.l.b16 %v2480
      %v2782 = vunpack.c.h.b16 %v2480
      %v2783 = vunpack.c.l.b16 %v2481
      %v2784 = vunpack.c.h.b16 %v2481
      %v2785 = vunpack.c.l.b16 %v2482
      %v2786 = vunpack.c.h.b16 %v2482
      %v2787 = vunpack.c.l.b16 %v2483
      %v2788 = vunpack.c.h.b16 %v2483
      %v2789 = vunpack.c.l.b16 %v2484
      %v2790 = vunpack.c.h.b16 %v2484
      %v2791 = vunpack.c.l.b16 %v2485
      %v2792 = vunpack.c.h.b16 %v2485
      %v2793 = vunpack.c.l.b16 %v2486
      %v2794 = vunpack.c.h.b16 %v2486
      %v2795 = vunpack.c.l.b16 %v2487
      %v2796 = vunpack.c.h.b16 %v2487
      %v2797 = vunpack.c.l.b16 %v2488
      %v2798 = vunpack.c.h.b16 %v2488
      %v2799 = vunpack.c.l.b16 %v2489
      %v2800 = vunpack.c.h.b16 %v2489
      %v2801 = vunpack.c.l.b16 %v2490
      %v2802 = vunpack.c.h.b16 %v2490
      %v2803 = vunpack.c.l.b16 %v2491
      %v2804 = vunpack.c.h.b16 %v2491
      %v2805 = vunpack.c.l.b16 %v2492
      %v2806 = vunpack.c.h.b16 %v2492
      %v2807 = vunpack.c.l.b16 %v2493
      %v2808 = vunpack.c.h.b16 %v2493
      %v2809 = vunpack.c.l.b16 %v2494
      %v2810 = vunpack.c.h.b16 %v2494
      %v2811 = vunpack.c.l.b16 %v2495
      %v2812 = vunpack.c.h.b16 %v2495
      %v2813 = vunpack.c.l.b16 %v2496
      %v2814 = vunpack.c.h.b16 %v2496
      %v2815 = vunpack.c.l.b16 %v2497
      %v2816 = vunpack.c.h.b16 %v2497
      %v2817 = vunpack.c.l.b16 %v2498
      %v2818 = vunpack.c.h.b16 %v2498
      %v2819 = vunpack.c.l.b16 %v2499
      %v2820 = vunpack.c.h.b16 %v2499
      %v2821 = vunpack.c.l.b16 %v2500
      %v2822 = vunpack.c.h.b16 %v2500
      %v2823 = vunpack.c.l.b16 %v2501
      %v2824 = vunpack.c.h.b16 %v2501
      %v2825 = vunpack.c.l.b16 %v2502
      %v2826 = vunpack.c.h.b16 %v2502
      %v2827 = vunpack.c.l.b16 %v2503
      %v2828 = vunpack.c.h.b16 %v2503
      %v2829 = vunpack.c.l.b16 %v2504
      %v2830 = vunpack.c.h.b16 %v2504
      %v2831 = vunpack.c.l.b16 %v2505
      %v2832 = vunpack.c.h.b16 %v2505
      %v2833 = vunpack.c.l.b16 %v2506
      %v2834 = vunpack.c.h.b16 %v2506
      %v2835 = vunpack.c.l.b16 %v2507
      %v2836 = vunpack.c.h.b16 %v2507
      %v2837 = vunpack.c.l.b16 %v2508
      %v2838 = vunpack.c.h.b16 %v2508
      %v2839 = vunpack.c.l.b16 %v2509
      %v2840 = vunpack.c.h.b16 %v2509
      %v2841 = vunpack.c.l.b16 %v2510
      %v2842 = vunpack.c.h.b16 %v2510
      %v2843 = vunpack.c.l.b16 %v2511
      %v2844 = vunpack.c.h.b16 %v2511
      %v2845 = vunpack.c.l.b16 %v2512
      %v2846 = vunpack.c.h.b16 %v2512
      %v2847 = vunpack.c.l.b16 %v2513
      %v2848 = vunpack.c.h.b16 %v2513
      %v2849 = vunpack.c.l.b16 %v2514
      %v2850 = vunpack.c.h.b16 %v2514
      %v2851 = vunpack.c.l.b16 %v2515
      %v2852 = vunpack.c.h.b16 %v2515
      %v2853 = vunpack.c.l.b16 %v2516
      %v2854 = vunpack.c.h.b16 %v2516
      %v2855 = vunpack.c.l.b16 %v2517
      %v2856 = vunpack.c.h.b16 %v2517
      %v2857 = vunpack.c.l.b16 %v2518
      %v2858 = vunpack.c.h.b16 %v2518
      %v2859 = vunpack.c.l.b16 %v2519
      %v2860 = vunpack.c.h.b16 %v2519
      %v2861 = vunpack.c.l.b16 %v2520
      %v2862 = vunpack.c.h.b16 %v2520
      %v2863 = vunpack.c.l.b16 %v2521
      %v2864 = vunpack.c.h.b16 %v2521
      %v2865 = vunpack.c.l.b16 %v2522
      %v2866 = vunpack.c.h.b16 %v2522
      %v2867 = vunpack.c.l.b16 %v2523
      %v2868 = vunpack.c.h.b16 %v2523
      %v2869 = vunpack.c.l.b16 %v2524
      %v2870 = vunpack.c.h.b16 %v2524
      %v2871 = vunpack.c.l.b16 %v2525
      %v2872 = vunpack.c.h.b16 %v2525
      %v2873 = vunpack.c.l.b16 %v2526
      %v2874 = vunpack.c.h.b16 %v2526
      %v2875 = vunpack.c.l.b16 %v2527
      %v2876 = vunpack.c.h.b16 %v2527
      %v2877 = vunpack.c.l.b16 %v2528
      %v2878 = vunpack.c.h.b16 %v2528
      %v2879 = vunpack.c.l.b16 %v2529
      %v2880 = vunpack.c.h.b16 %v2529
      %v2881 = vunpack.c.l.b16 %v2530
      %v2882 = vunpack.c.h.b16 %v2530
      %v2883 = vunpack.c.l.b16 %v2531
      %v2884 = vunpack.c.h.b16 %v2531
      %v2885 = vunpack.c.l.b16 %v2532
      %v2886 = vunpack.c.h.b16 %v2532
      %v2887 = vunpack.c.l.b16 %v2533
      %v2888 = vunpack.c.h.b16 %v2533
      %v2889 = vunpack.c.l.b16 %v2534
      %v2890 = vunpack.c.h.b16 %v2534
      %v2891 = vunpack.c.l.b16 %v2535
      %v2892 = vunpack.c.h.b16 %v2535
      %v2893 = vunpack.c.l.b16 %v2536
      %v2894 = vunpack.c.h.b16 %v2536
      %v2895 = vunpack.c.l.b16 %v2537
      %v2896 = vunpack.c.h.b16 %v2537
      %v2897 = vunpack.c.l.b16 %v2538
      %v2898 = vunpack.c.h.b16 %v2538
      %v2899 = vunpack.c.l.b16 %v2539
      %v2900 = vunpack.c.h.b16 %v2539
      %v2901 = vunpack.c.l.b16 %v2540
      %v2902 = vunpack.c.h.b16 %v2540
      %v2903 = vunpack.c.l.b16 %v2541
      %v2904 = vunpack.c.h.b16 %v2541
      %v2905 = vunpack.c.l.b16 %v2542
      %v2906 = vunpack.c.h.b16 %v2542
      %v2907 = vunpack.c.l.b16 %v2543
      %v2908 = vunpack.c.h.b16 %v2543
      %v2909 = vunpack.c.l.b16 %v2544
      %v2910 = vunpack.c.h.b16 %v2544
      %v2911 = vunpack.c.l.b16 %v2545
      %v2912 = vunpack.c.h.b16 %v2545
      %v2913 = vunpack.c.l.b16 %v2546
      %v2914 = vunpack.c.h.b16 %v2546
      %v2915 = vunpack.c.l.b16 %v2547
      %v2916 = vunpack.c.h.b16 %v2547
      %v2917 = vunpack.c.l.b16 %v2548
      %v2918 = vunpack.c.h.b16 %v2548
      %v2919 = vunpack.c.l.b16 %v2549
      %v2920 = vunpack.c.h.b16 %v2549
      %v2921 = vunpack.c.l.b16 %v2550
      %v2922 = vunpack.c.h.b16 %v2550
      %v2923 = vunpack.c.l.b16 %v2551
      %v2924 = vunpack.c.h.b16 %v2551
      %v2925 = vunpack.c.l.b16 %v2552
      %v2926 = vunpack.c.h.b16 %v2552
      %v2927 = vunpack.c.l.b16 %v2553
      %v2928 = vunpack.c.h.b16 %v2553
      %v2929 = vunpack.c.l.b16 %v2554
      %v2930 = vunpack.c.h.b16 %v2554
      %v2931 = vunpack.c.l.b16 %v2555
      %v2932 = vunpack.c.h.b16 %v2555
      %v2933 = vunpack.c.l.b16 %v2556
      %v2934 = vunpack.c.h.b16 %v2556
      %v2935 = vunpack.c.l.b16 %v2557
      %v2936 = vunpack.c.h.b16 %v2557
      %v2937 = vunpack.c.l.b16 %v2558
      %v2938 = vunpack.c.h.b16 %v2558
      %v2939 = vunpack.c.l.b16 %v2559
      %v2940 = vunpack.c.h.b16 %v2559
      %v2941 = vunpack.c.l.b16 %v2560
      %v2942 = vunpack.c.h.b16 %v2560
      %v2943 = vunpack.c.l.b16 %v2561
      %v2944 = vunpack.c.h.b16 %v2561
      %v2945 = vunpack.c.l.b16 %v2562
      %v2946 = vunpack.c.h.b16 %v2562
      %v2947 = vunpack.c.l.b16 %v2563
      %v2948 = vunpack.c.h.b16 %v2563
      %v2949 = vunpack.c.l.b16 %v2564
      %v2950 = vunpack.c.h.b16 %v2564
      %v2951 = vunpack.c.l.b16 %v2565
      %v2952 = vunpack.c.h.b16 %v2565
      %v2953 = vunpack.c.l.b16 %v2566
      %v2954 = vunpack.c.h.b16 %v2566
      %v2955 = vunpack.c.l.b16 %v2567
      %v2956 = vunpack.c.h.b16 %v2567
      %v2957 = vunpack.c.l.b16 %v2568
      %v2958 = vunpack.c.h.b16 %v2568
      %v2959 = vunpack.c.l.b16 %v2569
      %v2960 = vunpack.c.h.b16 %v2569
      %v2961 = vunpack.c.l.b16 %v2570
      %v2962 = vunpack.c.h.b16 %v2570
      %v2963 = vunpack.c.l.b16 %v2571
      %v2964 = vunpack.c.h.b16 %v2571
      %v2965 = vunpack.c.l.b16 %v2572
      %v2966 = vunpack.c.h.b16 %v2572
      %v2967 = vunpack.c.l.b16 %v2573
      %v2968 = vunpack.c.h.b16 %v2573
      %v2969 = vunpack.c.l.b16 %v2574
      %v2970 = vunpack.c.h.b16 %v2574
      %v2971 = vunpack.c.l.b16 %v2575
      %v2972 = vunpack.c.h.b16 %v2575
      %v2973 = vunpack.c.l.b16 %v2576
      %v2974 = vunpack.c.h.b16 %v2576
      %v2975 = vunpack.c.l.b16 %v2577
      %v2976 = vunpack.c.h.b16 %v2577
      %v2977 = vunpack.c.l.b16 %v2578
      %v2978 = vunpack.c.h.b16 %v2578
      %v2979 = vunpack.c.l.b16 %v2579
      %v2980 = vunpack.c.h.b16 %v2579
      %v2981 = vunpack.c.l.b16 %v2580
      %v2982 = vunpack.c.h.b16 %v2580
      %v2983 = vunpack.c.l.b16 %v2581
      %v2984 = vunpack.c.h.b16 %v2581
      %v2985 = vunpack.c.l.b16 %v2582
      %v2986 = vunpack.c.h.b16 %v2582
      %v2987 = vunpack.c.l.b16 %v2583
      %v2988 = vunpack.c.h.b16 %v2583
      %v2989 = vunpack.c.l.b16 %v2584
      %v2990 = vunpack.c.h.b16 %v2584
      %v2991 = vunpack.c.l.b16 %v2585
      %v2992 = vunpack.c.h.b16 %v2585
      %v2993 = vunpack.c.l.b16 %v2586
      %v2994 = vunpack.c.h.b16 %v2586
      %v2995 = vunpack.c.l.b16 %v2587
      %v2996 = vunpack.c.h.b16 %v2587
      %v2997 = vunpack.c.l.b16 %v2588
      %v2998 = vunpack.c.h.b16 %v2588
      %v2999 = vunpack.c.l.b16 %v2589
      %v3000 = vunpack.c.h.b16 %v2589
      %v3001 = vunpack.c.l.b16 %v2590
      %v3002 = vunpack.c.h.b16 %v2590
      %v3003 = vunpack.c.l.b16 %v2591
      %v3004 = vunpack.c.h.b16 %v2591
      %v3005 = vunpack.c.l.b16 %v2592
      %v3006 = vunpack.c.h.b16 %v2592
      %v3007 = vunpack.c.l.b16 %v2593
      %v3008 = vunpack.c.h.b16 %v2593
      %v3009 = vpack.c.b16 %v2757, %v2753
      %v3010 = vpack.c.b16 %v2758, %v2754
      %v3011 = vpack.c.b16 %v2759, %v2755
      %v3012 = vpack.c.b16 %v2760, %v2756
      %v3013 = vpack.c.b16 %v2765, %v2761
      %v3014 = vpack.c.b16 %v2766, %v2762
      %v3015 = vpack.c.b16 %v2767, %v2763
      %v3016 = vpack.c.b16 %v2768, %v2764
      %v3017 = vpack.c.b16 %v2773, %v2769
      %v3018 = vpack.c.b16 %v2774, %v2770
      %v3019 = vpack.c.b16 %v2775, %v2771
      %v3020 = vpack.c.b16 %v2776, %v2772
      %v3021 = vpack.c.b16 %v2781, %v2777
      %v3022 = vpack.c.b16 %v2782, %v2778
      %v3023 = vpack.c.b16 %v2783, %v2779
      %v3024 = vpack.c.b16 %v2784, %v2780
      %v3025 = vpack.c.b16 %v2789, %v2785
      %v3026 = vpack.c.b16 %v2790, %v2786
      %v3027 = vpack.c.b16 %v2791, %v2787
      %v3028 = vpack.c.b16 %v2792, %v2788
      %v3029 = vpack.c.b16 %v2797, %v2793
      %v3030 = vpack.c.b16 %v2798, %v2794
      %v3031 = vpack.c.b16 %v2799, %v2795
      %v3032 = vpack.c.b16 %v2800, %v2796
      %v3033 = vpack.c.b16 %v2805, %v2801
      %v3034 = vpack.c.b16 %v2806, %v2802
      %v3035 = vpack.c.b16 %v2807, %v2803
      %v3036 = vpack.c.b16 %v2808, %v2804
      %v3037 = vpack.c.b16 %v2813, %v2809
      %v3038 = vpack.c.b16 %v2814, %v2810
      %v3039 = vpack.c.b16 %v2815, %v2811
      %v3040 = vpack.c.b16 %v2816, %v2812
      %v3041 = vpack.c.b16 %v2821, %v2817
      %v3042 = vpack.c.b16 %v2822, %v2818
      %v3043 = vpack.c.b16 %v2823, %v2819
      %v3044 = vpack.c.b16 %v2824, %v2820
      %v3045 = vpack.c.b16 %v2829, %v2825
      %v3046 = vpack.c.b16 %v2830, %v2826
      %v3047 = vpack.c.b16 %v2831, %v2827
      %v3048 = vpack.c.b16 %v2832, %v2828
      %v3049 = vpack.c.b16 %v2837, %v2833
      %v3050 = vpack.c.b16 %v2838, %v2834
      %v3051 = vpack.c.b16 %v2839, %v2835
      %v3052 = vpack.c.b16 %v2840, %v2836
      %v3053 = vpack.c.b16 %v2845, %v2841
      %v3054 = vpack.c.b16 %v2846, %v2842
      %v3055 = vpack.c.b16 %v2847, %v2843
      %v3056 = vpack.c.b16 %v2848, %v2844
      %v3057 = vpack.c.b16 %v2853, %v2849
      %v3058 = vpack.c.b16 %v2854, %v2850
      %v3059 = vpack.c.b16 %v2855, %v2851
      %v3060 = vpack.c.b16 %v2856, %v2852
      %v3061 = vpack.c.b16 %v2861, %v2857
      %v3062 = vpack.c.b16 %v2862, %v2858
      %v3063 = vpack.c.b16 %v2863, %v2859
      %v3064 = vpack.c.b16 %v2864, %v2860
      %v3065 = vpack.c.b16 %v2869, %v2865
      %v3066 = vpack.c.b16 %v2870, %v2866
      %v3067 = vpack.c.b16 %v2871, %v2867
      %v3068 = vpack.c.b16 %v2872, %v2868
      %v3069 = vpack.c.b16 %v2877, %v2873
      %v3070 = vpack.c.b16 %v2878, %v2874
      %v3071 = vpack.c.b16 %v2879, %v2875
      %v3072 = vpack.c.b16 %v2880, %v2876
      %v3073 = vpack.c.b16 %v2885, %v2881
      %v3074 = vpack.c.b16 %v2886, %v2882
      %v3075 = vpack.c.b16 %v2887, %v2883
      %v3076 = vpack.c.b16 %v2888, %v2884
      %v3077 = vpack.c.b16 %v2893, %v2889
      %v3078 = vpack.c.b16 %v2894, %v2890
      %v3079 = vpack.c.b16 %v2895, %v2891
      %v3080 = vpack.c.b16 %v2896, %v2892
      %v3081 = vpack.c.b16 %v2901, %v2897
      %v3082 = vpack.c.b16 %v2902, %v2898
      %v3083 = vpack.c.b16 %v2903, %v2899
      %v3084 = vpack.c.b16 %v2904, %v2900
      %v3085 = vpack.c.b16 %v2909, %v2905
      %v3086 = vpack.c.b16 %v2910, %v2906
      %v3087 = vpack.c.b16 %v2911, %v2907
      %v3088 = vpack.c.b16 %v2912, %v2908
      %v3089 = vpack.c.b16 %v2917, %v2913
      %v3090 = vpack.c.b16 %v2918, %v2914
      %v3091 = vpack.c.b16 %v2919, %v2915
      %v3092 = vpack.c.b16 %v2920, %v2916
      %v3093 = vpack.c.b16 %v2925, %v2921
      %v3094 = vpack.c.b16 %v2926, %v2922
      %v3095 = vpack.c.b16 %v2927, %v2923
      %v3096 = vpack.c.b16 %v2928, %v2924
      %v3097 = vpack.c.b16 %v2933, %v2929
      %v3098 = vpack.c.b16 %v2934, %v2930
      %v3099 = vpack.c.b16 %v2935, %v2931
      %v3100 = vpack.c.b16 %v2936, %v2932
      %v3101 = vpack.c.b16 %v2941, %v2937
      %v3102 = vpack.c.b16 %v2942, %v2938
      %v3103 = vpack.c.b16 %v2943, %v2939
      %v3104 = vpack.c.b16 %v2944, %v2940
      %v3105 = vpack.c.b16 %v2949, %v2945
      %v3106 = vpack.c.b16 %v2950, %v2946
      %v3107 = vpack.c.b16 %v2951, %v2947
      %v3108 = vpack.c.b16 %v2952, %v2948
      %v3109 = vpack.c.b16 %v2957, %v2953
      %v3110 = vpack.c.b16 %v2958, %v2954
      %v3111 = vpack.c.b16 %v2959, %v2955
      %v3112 = vpack.c.b16 %v2960, %v2956
      %v3113 = vpack.c.b16 %v2965, %v2961
      %v3114 = vpack.c.b16 %v2966, %v2962
      %v3115 = vpack.c.b16 %v2967, %v2963
      %v3116 = vpack.c.b16 %v2968, %v2964
      %v3117 = vpack.c.b16 %v2973, %v2969
      %v3118 = vpack.c.b16 %v2974, %v2970
      %v3119 = vpack.c.b16 %v2975, %v2971
      %v3120 = vpack.c.b16 %v2976, %v2972
      %v3121 = vpack.c.b16 %v2981, %v2977
      %v3122 = vpack.c.b16 %v2982, %v2978
      %v3123 = vpack.c.b16 %v2983, %v2979
      %v3124 = vpack.c.b16 %v2984, %v2980
      %v3125 = vpack.c.b16 %v2989, %v2985
      %v3126 = vpack.c.b16 %v2990, %v2986
      %v3127 = vpack.c.b16 %v2991, %v2987
      %v3128 = vpack.c.b16 %v2992, %v2988
      %v3129 = vpack.c.b16 %v2997, %v2993
      %v3130 = vpack.c.b16 %v2998, %v2994
      %v3131 = vpack.c.b16 %v2999, %v2995
      %v3132 = vpack.c.b16 %v3000, %v2996
      %v3133 = vpack.c.b16 %v3005, %v3001
      %v3134 = vpack.c.b16 %v3006, %v3002
      %v3135 = vpack.c.b16 %v3007, %v3003
      %v3136 = vpack.c.b16 %v3008, %v3004
      %3265 = vmatprep.subr.bf16.mxu0 %v3010
      %3266 = vmatpush1.bf16.msra.mxu0 %v3009
      %3267 = vmatprep.subr.bf16.mxu0 %v3014
      %3268 = vmatpush1.bf16.msra.mxu0 %v3013
      %3269 = vmatprep.subr.bf16.mxu0 %v3018
      %3270 = vmatpush1.bf16.msra.mxu0 %v3017
      %3271 = vmatprep.subr.bf16.mxu0 %v3022
      %3272 = vmatpush1.bf16.msra.mxu0 %v3021
      %3273 = vmatprep.subr.bf16.mxu0 %v3026
      %3274 = vmatpush1.bf16.msra.mxu0 %v3025
      %3275 = vmatprep.subr.bf16.mxu0 %v3030
      %3276 = vmatpush1.bf16.msra.mxu0 %v3029
      %3277 = vmatprep.subr.bf16.mxu0 %v3034
      %3278 = vmatpush1.bf16.msra.mxu0 %v3033
      %3279 = vmatprep.subr.bf16.mxu0 %v3038
      %3280 = vmatpush1.bf16.msra.mxu0 %v3037
      %3281 = vmatprep.subr.bf16.mxu0 %v3042
      %3282 = vmatpush1.bf16.msra.mxu0 %v3041
      %3283 = vmatprep.subr.bf16.mxu0 %v3046
      %3284 = vmatpush1.bf16.msra.mxu0 %v3045
      %3285 = vmatprep.subr.bf16.mxu0 %v3050
      %3286 = vmatpush1.bf16.msra.mxu0 %v3049
      %3287 = vmatprep.subr.bf16.mxu0 %v3054
      %3288 = vmatpush1.bf16.msra.mxu0 %v3053
      %3289 = vmatprep.subr.bf16.mxu0 %v3058
      %3290 = vmatpush1.bf16.msra.mxu0 %v3057
      %3291 = vmatprep.subr.bf16.mxu0 %v3062
      %3292 = vmatpush1.bf16.msra.mxu0 %v3061
      %3293 = vmatprep.subr.bf16.mxu0 %v3066
      %3294 = vmatpush1.bf16.msra.mxu0 %v3065
      %3295 = vmatprep.subr.bf16.mxu0 %v3070
      %3296 = vmatpush1.bf16.msra.mxu0 %v3069
      %3297 = vmatprep.mubr.bf16.mxu0 %v2597
      %3298 = vmatmul.mubr.bf16.gmra.mrb[0].mxu0 %v2596
      %v3299 = vpop.f32.mrb[0].mxu0
      %v3300 = vadd.f32 %v2608, %v3299
      %v3301 = vpop.f32.mrb[0].mxu0
      %v3302 = vadd.f32 %v2612, %v3301
      %v3303 = vpop.f32.mrb[0].mxu0
      %v3304 = vadd.f32 %v2608, %v3303
      %v3305 = vpop.f32.mrb[0].mxu0
      %v3306 = vadd.f32 %v2612, %v3305
      %3307 = vmatprep.mubr.bf16.mxu0 %v2601
      %3308 = vmatmul.mubr.bf16.gmra.mrb[0].mxu0 %v2600
      %v3309 = vpop.f32.mrb[0].mxu0
      %v3310 = vadd.f32 %v2608, %v3309
      %v3311 = vpop.f32.mrb[0].mxu0
      %v3312 = vadd.f32 %v2612, %v3311
      %v3313 = vpop.f32.mrb[0].mxu0
      %v3314 = vadd.f32 %v2608, %v3313
      %v3315 = vpop.f32.mrb[0].mxu0
      %v3316 = vadd.f32 %v2612, %v3315
      %3317 = vdwg.mxu0
      %3318 = vmatprep.subr.bf16.mxu0 %v3074
      %3319 = vmatpush1.bf16.msra.mxu0 %v3073
      %3320 = vmatprep.subr.bf16.mxu0 %v3078
      %3321 = vmatpush1.bf16.msra.mxu0 %v3077
      %3322 = vmatprep.subr.bf16.mxu0 %v3082
      %3323 = vmatpush1.bf16.msra.mxu0 %v3081
      %3324 = vmatprep.subr.bf16.mxu0 %v3086
      %3325 = vmatpush1.bf16.msra.mxu0 %v3085
      %3326 = vmatprep.subr.bf16.mxu0 %v3090
      %3327 = vmatpush1.bf16.msra.mxu0 %v3089
      %3328 = vmatprep.subr.bf16.mxu0 %v3094
      %3329 = vmatpush1.bf16.msra.mxu0 %v3093
      %3330 = vmatprep.subr.bf16.mxu0 %v3098
      %3331 = vmatpush1.bf16.msra.mxu0 %v3097
      %3332 = vmatprep.subr.bf16.mxu0 %v3102
      %3333 = vmatpush1.bf16.msra.mxu0 %v3101
      %3334 = vmatprep.subr.bf16.mxu0 %v3106
      %3335 = vmatpush1.bf16.msra.mxu0 %v3105
      %3336 = vmatprep.subr.bf16.mxu0 %v3110
      %3337 = vmatpush1.bf16.msra.mxu0 %v3109
      %3338 = vmatprep.subr.bf16.mxu0 %v3114
      %3339 = vmatpush1.bf16.msra.mxu0 %v3113
      %3340 = vmatprep.subr.bf16.mxu0 %v3118
      %3341 = vmatpush1.bf16.msra.mxu0 %v3117
      %3342 = vmatprep.subr.bf16.mxu0 %v3122
      %3343 = vmatpush1.bf16.msra.mxu0 %v3121
      %3344 = vmatprep.subr.bf16.mxu0 %v3126
      %3345 = vmatpush1.bf16.msra.mxu0 %v3125
      %3346 = vmatprep.subr.bf16.mxu0 %v3130
      %3347 = vmatpush1.bf16.msra.mxu0 %v3129
      %3348 = vmatprep.subr.bf16.mxu0 %v3134
      %3349 = vmatpush1.bf16.msra.mxu0 %v3133
      %3350 = vmatprep.mubr.bf16.mxu0 %v2599
      %3351 = vmatmul.mubr.bf16.gmra.mrb[0].mxu0 %v2598
      %v3352 = vpop.f32.mrb[0].mxu0
      %v3353 = vadd.f32 %v3300, %v3352
      %v3354 = vpop.f32.mrb[0].mxu0
      %v3355 = vadd.f32 %v3302, %v3354
      %v3356 = vpop.f32.mrb[0].mxu0
      %v3357 = vadd.f32 %v3304, %v3356
      %v3358 = vpop.f32.mrb[0].mxu0
      %v3359 = vadd.f32 %v3306, %v3358
      %3360 = vmatprep.mubr.bf16.mxu0 %v2603
      %3361 = vmatmul.mubr.bf16.gmra.mrb[0].mxu0 %v2602
      %v3362 = vpop.f32.mrb[0].mxu0
      %v3363 = vadd.f32 %v3310, %v3362
      %v3364 = vpop.f32.mrb[0].mxu0
      %v3365 = vadd.f32 %v3312, %v3364
      %v3366 = vpop.f32.mrb[0].mxu0
      %v3367 = vadd.f32 %v3314, %v3366
      %v3368 = vpop.f32.mrb[0].mxu0
      %v3369 = vadd.f32 %v3316, %v3368
      %3370 = vdwg.mxu0
      %3371 = vmatprep.subr.bf16.mxu0 %v3012
      %3372 = vmatpush1.bf16.msra.mxu0 %v3011
      %3373 = vmatprep.subr.bf16.mxu0 %v3016
      %3374 = vmatpush1.bf16.msra.mxu0 %v3015
      %3375 = vmatprep.subr.bf16.mxu0 %v3020
      %3376 = vmatpush1.bf16.msra.mxu0 %v3019
      %3377 = vmatprep.subr.bf16.mxu0 %v3024
      %3378 = vmatpush1.bf16.msra.mxu0 %v3023
      %3379 = vmatprep.subr.bf16.mxu0 %v3028
      %3380 = vmatpush1.bf16.msra.mxu0 %v3027
      %3381 = vmatprep.subr.bf16.mxu0 %v3032
      %3382 = vmatpush1.bf16.msra.mxu0 %v3031
      %3383 = vmatprep.subr.bf16.mxu0 %v3036
      %3384 = vmatpush1.bf16.msra.mxu0 %v3035
      %3385 = vmatprep.subr.bf16.mxu0 %v3040
      %3386 = vmatpush1.bf16.msra.mxu0 %v3039
      %3387 = vmatprep.subr.bf16.mxu0 %v3044
      %3388 = vmatpush1.bf16.msra.mxu0 %v3043
      %3389 = vmatprep.subr.bf16.mxu0 %v3048
      %3390 = vmatpush1.bf16.msra.mxu0 %v3047
      %3391 = vmatprep.subr.bf16.mxu0 %v3052
      %3392 = vmatpush1.bf16.msra.mxu0 %v3051
      %3393 = vmatprep.subr.bf16.mxu0 %v3056
      %3394 = vmatpush1.bf16.msra.mxu0 %v3055
      %3395 = vmatprep.subr.bf16.mxu0 %v3060
      %3396 = vmatpush1.bf16.msra.mxu0 %v3059
      %3397 = vmatprep.subr.bf16.mxu0 %v3064
      %3398 = vmatpush1.bf16.msra.mxu0 %v3063
      %3399 = vmatprep.subr.bf16.mxu0 %v3068
      %3400 = vmatpush1.bf16.msra.mxu0 %v3067
      %3401 = vmatprep.subr.bf16.mxu0 %v3072
      %3402 = vmatpush1.bf16.msra.mxu0 %v3071
      %3403 = vmatprep.mubr.bf16.mxu0 %v2597
      %3404 = vmatmul.mubr.bf16.gmra.mrb[0].mxu0 %v2596
      %v3405 = vpop.f32.mrb[0].mxu0
      %v3406 = vadd.f32 %v2616, %v3405
      %v3407 = vpop.f32.mrb[0].mxu0
      %v3408 = vadd.f32 %v2620, %v3407
      %v3409 = vpop.f32.mrb[0].mxu0
      %v3410 = vadd.f32 %v2616, %v3409
      %v3411 = vpop.f32.mrb[0].mxu0
      %v3412 = vadd.f32 %v2620, %v3411
      %3413 = vmatprep.mubr.bf16.mxu0 %v2601
      %3414 = vmatmul.mubr.bf16.gmra.mrb[0].mxu0 %v2600
      %v3415 = vpop.f32.mrb[0].mxu0
      %v3416 = vadd.f32 %v2616, %v3415
      %v3417 = vpop.f32.mrb[0].mxu0
      %v3418 = vadd.f32 %v2620, %v3417
      %v3419 = vpop.f32.mrb[0].mxu0
      %v3420 = vadd.f32 %v2616, %v3419
      %v3421 = vpop.f32.mrb[0].mxu0
      %v3422 = vadd.f32 %v2620, %v3421
      %3423 = vdwg.mxu0
      %3424 = vmatprep.subr.bf16.mxu0 %v3076
      %3425 = vmatpush1.bf16.msra.mxu0 %v3075
      %3426 = vmatprep.subr.bf16.mxu0 %v3080
      %3427 = vmatpush1.bf16.msra.mxu0 %v3079
      %3428 = vmatprep.subr.bf16.mxu0 %v3084
      %3429 = vmatpush1.bf16.msra.mxu0 %v3083
      %3430 = vmatprep.subr.bf16.mxu0 %v3088
      %3431 = vmatpush1.bf16.msra.mxu0 %v3087
      %3432 = vmatprep.subr.bf16.mxu0 %v3092
      %3433 = vmatpush1.bf16.msra.mxu0 %v3091
      %3434 = vmatprep.subr.bf16.mxu0 %v3096
      %3435 = vmatpush1.bf16.msra.mxu0 %v3095
      %3436 = vmatprep.subr.bf16.mxu0 %v3100
      %3437 = vmatpush1.bf16.msra.mxu0 %v3099
      %3438 = vmatprep.subr.bf16.mxu0 %v3104
      %3439 = vmatpush1.bf16.msra.mxu0 %v3103
      %3440 = vmatprep.subr.bf16.mxu0 %v3108
      %3441 = vmatpush1.bf16.msra.mxu0 %v3107
      %3442 = vmatprep.subr.bf16.mxu0 %v3112
      %3443 = vmatpush1.bf16.msra.mxu0 %v3111
      %3444 = vmatprep.subr.bf16.mxu0 %v3116
      %3445 = vmatpush1.bf16.msra.mxu0 %v3115
      %3446 = vmatprep.subr.bf16.mxu0 %v3120
      %3447 = vmatpush1.bf16.msra.mxu0 %v3119
      %3448 = vmatprep.subr.bf16.mxu0 %v3124
      %3449 = vmatpush1.bf16.msra.mxu0 %v3123
      %3450 = vmatprep.subr.bf16.mxu0 %v3128
      %3451 = vmatpush1.bf16.msra.mxu0 %v3127
      %3452 = vmatprep.subr.bf16.mxu0 %v3132
      %3453 = vmatpush1.bf16.msra.mxu0 %v3131
      %3454 = vmatprep.subr.bf16.mxu0 %v3136
      %3455 = vmatpush1.bf16.msra.mxu0 %v3135
      %3456 = vmatprep.mubr.bf16.mxu0 %v2599
      %3457 = vmatmul.mubr.bf16.gmra.mrb[0].mxu0 %v2598
      %v3458 = vpop.f32.mrb[0].mxu0
      %v3459 = vadd.f32 %v3406, %v3458
      %v3460 = vpop.f32.mrb[0].mxu0
      %v3461 = vadd.f32 %v3408, %v3460
      %v3462 = vpop.f32.mrb[0].mxu0
      %v3463 = vadd.f32 %v3410, %v3462
      %v3464 = vpop.f32.mrb[0].mxu0
      %v3465 = vadd.f32 %v3412, %v3464
      %3466 = vmatprep.mubr.bf16.mxu0 %v2603
      %3467 = vmatmul.mubr.bf16.gmra.mrb[0].mxu0 %v2602
      %v3468 = vpop.f32.mrb[0].mxu0
      %v3469 = vadd.f32 %v3416, %v3468
      %v3470 = vpop.f32.mrb[0].mxu0
      %v3471 = vadd.f32 %v3418, %v3470
      %v3472 = vpop.f32.mrb[0].mxu0
      %v3473 = vadd.f32 %v3420, %v3472
      %v3474 = vpop.f32.mrb[0].mxu0
      %v3475 = vadd.f32 %v3422, %v3474
      %3476 = vdwg.mxu0
      %v3477 = vmul.f32 %v3353, 0.2
      %v3478 = vmul.f32 %v3355, 0.2
      %v3479 = vmul.f32 %v3459, 0.2
      %v3480 = vmul.f32 %v3461, 0.2
      %v3481 = vmul.f32 %v3357, 0.2
      %v3482 = vmul.f32 %v3359, 0.2
      %v3483 = vmul.f32 %v3463, 0.2
      %v3484 = vmul.f32 %v3465, 0.2
      %v3485 = vmul.f32 %v3363, 0.2
      %v3486 = vmul.f32 %v3365, 0.2
      %v3487 = vmul.f32 %v3469, 0.2
      %v3488 = vmul.f32 %v3471, 0.2
      %v3489 = vmul.f32 %v3367, 0.2
      %v3490 = vmul.f32 %v3369, 0.2
      %v3491 = vmul.f32 %v3473, 0.2
      %v3492 = vmul.f32 %v3475, 0.2
      %v3493 = vmax.f32 %v3353, %v3477
      %v3494 = vmax.f32 %v3355, %v3478
      %v3495 = vmax.f32 %v3459, %v3479
      %v3496 = vmax.f32 %v3461, %v3480
      %v3497 = vmax.f32 %v3357, %v3481
      %v3498 = vmax.f32 %v3359, %v3482
      %v3499 = vmax.f32 %v3463, %v3483
      %v3500 = vmax.f32 %v3465, %v3484
      %v3501 = vmax.f32 %v3363, %v3485
      %v3502 = vmax.f32 %v3365, %v3486
      %v3503 = vmax.f32 %v3469, %v3487
      %v3504 = vmax.f32 %v3471, %v3488
      %v3505 = vmax.f32 %v3367, %v3489
      %v3506 = vmax.f32 %v3369, %v3490
      %v3507 = vmax.f32 %v3473, %v3491
      %v3508 = vmax.f32 %v3475, %v3492
      %v3509 = vmul.f32 %v3493, 1.4142135
      %v3510 = vmul.f32 %v3494, 1.4142135
      %v3511 = vmul.f32 %v3495, 1.4142135
      %v3512 = vmul.f32 %v3496, 1.4142135
      %v3513 = vmul.f32 %v3497, 1.4142135
      %v3514 = vmul.f32 %v3498, 1.4142135
      %v3515 = vmul.f32 %v3499, 1.4142135
      %v3516 = vmul.f32 %v3500, 1.4142135
      %v3517 = vmul.f32 %v3501, 1.4142135
      %v3518 = vmul.f32 %v3502, 1.4142135
      %v3519 = vmul.f32 %v3503, 1.4142135
      %v3520 = vmul.f32 %v3504, 1.4142135
      %v3521 = vmul.f32 %v3505, 1.4142135
      %v3522 = vmul.f32 %v3506, 1.4142135
      %v3523 = vmul.f32 %v3507, 1.4142135
      %v3524 = vmul.f32 %v3508, 1.4142135
      %s3525 = scalar_lea.vmem %s205, 3072
      %v3526 = vld [vmem:[%s3525] sm:$0xff]
      %v3527 = vld [vmem:[%s3525 + $0x8] sm:$0xff]
      %v3528 = vld [vmem:[%s3525 + $0x10] sm:$0xff]
      %v3529 = vld [vmem:[%s3525 + $0x18] sm:$0xff]
      %v3530 = vld [vmem:[%s3525 + $0x20] sm:$0xff]
      %v3531 = vld [vmem:[%s3525 + $0x28] sm:$0xff]
      %v3532 = vld [vmem:[%s3525 + $0x30] sm:$0xff]
      %v3533 = vld [vmem:[%s3525 + $0x38] sm:$0xff]
      %v3534 = vld [vmem:[%s3525 + $0x40] sm:$0xff]
      %v3535 = vld [vmem:[%s3525 + $0x48] sm:$0xff]
      %v3536 = vld [vmem:[%s3525 + $0x50] sm:$0xff]
      %v3537 = vld [vmem:[%s3525 + $0x58] sm:$0xff]
      %v3538 = vld [vmem:[%s3525 + $0x60] sm:$0xff]
      %v3539 = vld [vmem:[%s3525 + $0x68] sm:$0xff]
      %v3540 = vld [vmem:[%s3525 + $0x70] sm:$0xff]
      %v3541 = vld [vmem:[%s3525 + $0x78] sm:$0xff]
      %v3542 = vld [vmem:[%s3525 + $0x80] sm:$0xff]
      %v3543 = vld [vmem:[%s3525 + $0x88] sm:$0xff]
      %v3544 = vld [vmem:[%s3525 + $0x90] sm:$0xff]
      %v3545 = vld [vmem:[%s3525 + $0x98] sm:$0xff]
      %v3546 = vld [vmem:[%s3525 + $0xa0] sm:$0xff]
      %v3547 = vld [vmem:[%s3525 + $0xa8] sm:$0xff]
      %v3548 = vld [vmem:[%s3525 + $0xb0] sm:$0xff]
      %v3549 = vld [vmem:[%s3525 + $0xb8] sm:$0xff]
      %v3550 = vld [vmem:[%s3525 + $0xc0] sm:$0xff]
      %v3551 = vld [vmem:[%s3525 + $0xc8] sm:$0xff]
      %v3552 = vld [vmem:[%s3525 + $0xd0] sm:$0xff]
      %v3553 = vld [vmem:[%s3525 + $0xd8] sm:$0xff]
      %v3554 = vld [vmem:[%s3525 + $0xe0] sm:$0xff]
      %v3555 = vld [vmem:[%s3525 + $0xe8] sm:$0xff]
      %v3556 = vld [vmem:[%s3525 + $0xf0] sm:$0xff]
      %v3557 = vld [vmem:[%s3525 + $0xf8] sm:$0xff]
      %v3558 = vld [vmem:[%s3525 + $0x100] sm:$0xff]
      %v3559 = vld [vmem:[%s3525 + $0x108] sm:$0xff]
      %v3560 = vld [vmem:[%s3525 + $0x110] sm:$0xff]
      %v3561 = vld [vmem:[%s3525 + $0x118] sm:$0xff]
      %v3562 = vld [vmem:[%s3525 + $0x120] sm:$0xff]
      %v3563 = vld [vmem:[%s3525 + $0x128] sm:$0xff]
      %v3564 = vld [vmem:[%s3525 + $0x130] sm:$0xff]
      %v3565 = vld [vmem:[%s3525 + $0x138] sm:$0xff]
      %v3566 = vld [vmem:[%s3525 + $0x140] sm:$0xff]
      %v3567 = vld [vmem:[%s3525 + $0x148] sm:$0xff]
      %v3568 = vld [vmem:[%s3525 + $0x150] sm:$0xff]
      %v3569 = vld [vmem:[%s3525 + $0x158] sm:$0xff]
      %v3570 = vld [vmem:[%s3525 + $0x160] sm:$0xff]
      %v3571 = vld [vmem:[%s3525 + $0x168] sm:$0xff]
      %v3572 = vld [vmem:[%s3525 + $0x170] sm:$0xff]
      %v3573 = vld [vmem:[%s3525 + $0x178] sm:$0xff]
      %v3574 = vld [vmem:[%s3525 + $0x180] sm:$0xff]
      %v3575 = vld [vmem:[%s3525 + $0x188] sm:$0xff]
      %v3576 = vld [vmem:[%s3525 + $0x190] sm:$0xff]
      %v3577 = vld [vmem:[%s3525 + $0x198] sm:$0xff]
      %v3578 = vld [vmem:[%s3525 + $0x1a0] sm:$0xff]
      %v3579 = vld [vmem:[%s3525 + $0x1a8] sm:$0xff]
      %v3580 = vld [vmem:[%s3525 + $0x1b0] sm:$0xff]
      %v3581 = vld [vmem:[%s3525 + $0x1b8] sm:$0xff]
      %v3582 = vld [vmem:[%s3525 + $0x1c0] sm:$0xff]
      %v3583 = vld [vmem:[%s3525 + $0x1c8] sm:$0xff]
      %v3584 = vld [vmem:[%s3525 + $0x1d0] sm:$0xff]
      %v3585 = vld [vmem:[%s3525 + $0x1d8] sm:$0xff]
      %v3586 = vld [vmem:[%s3525 + $0x1e0] sm:$0xff]
      %v3587 = vld [vmem:[%s3525 + $0x1e8] sm:$0xff]
      %v3588 = vld [vmem:[%s3525 + $0x1f0] sm:$0xff]
      %v3589 = vld [vmem:[%s3525 + $0x1f8] sm:$0xff]
      %v3590 = vld [vmem:[%s3525 + $0x200] sm:$0xff]
      %v3591 = vld [vmem:[%s3525 + $0x208] sm:$0xff]
      %v3592 = vld [vmem:[%s3525 + $0x210] sm:$0xff]
      %v3593 = vld [vmem:[%s3525 + $0x218] sm:$0xff]
      %v3594 = vld [vmem:[%s3525 + $0x220] sm:$0xff]
      %v3595 = vld [vmem:[%s3525 + $0x228] sm:$0xff]
      %v3596 = vld [vmem:[%s3525 + $0x230] sm:$0xff]
      %v3597 = vld [vmem:[%s3525 + $0x238] sm:$0xff]
      %v3598 = vld [vmem:[%s3525 + $0x240] sm:$0xff]
      %v3599 = vld [vmem:[%s3525 + $0x248] sm:$0xff]
      %v3600 = vld [vmem:[%s3525 + $0x250] sm:$0xff]
      %v3601 = vld [vmem:[%s3525 + $0x258] sm:$0xff]
      %v3602 = vld [vmem:[%s3525 + $0x260] sm:$0xff]
      %v3603 = vld [vmem:[%s3525 + $0x268] sm:$0xff]
      %v3604 = vld [vmem:[%s3525 + $0x270] sm:$0xff]
      %v3605 = vld [vmem:[%s3525 + $0x278] sm:$0xff]
      %v3606 = vld [vmem:[%s3525 + $0x280] sm:$0xff]
      %v3607 = vld [vmem:[%s3525 + $0x288] sm:$0xff]
      %v3608 = vld [vmem:[%s3525 + $0x290] sm:$0xff]
      %v3609 = vld [vmem:[%s3525 + $0x298] sm:$0xff]
      %v3610 = vld [vmem:[%s3525 + $0x2a0] sm:$0xff]
      %v3611 = vld [vmem:[%s3525 + $0x2a8] sm:$0xff]
      %v3612 = vld [vmem:[%s3525 + $0x2b0] sm:$0xff]
      %v3613 = vld [vmem:[%s3525 + $0x2b8] sm:$0xff]
      %v3614 = vld [vmem:[%s3525 + $0x2c0] sm:$0xff]
      %v3615 = vld [vmem:[%s3525 + $0x2c8] sm:$0xff]
      %v3616 = vld [vmem:[%s3525 + $0x2d0] sm:$0xff]
      %v3617 = vld [vmem:[%s3525 + $0x2d8] sm:$0xff]
      %v3618 = vld [vmem:[%s3525 + $0x2e0] sm:$0xff]
      %v3619 = vld [vmem:[%s3525 + $0x2e8] sm:$0xff]
      %v3620 = vld [vmem:[%s3525 + $0x2f0] sm:$0xff]
      %v3621 = vld [vmem:[%s3525 + $0x2f8] sm:$0xff]
      %v3622 = vld [vmem:[%s3525 + $0x300] sm:$0xff]
      %v3623 = vld [vmem:[%s3525 + $0x308] sm:$0xff]
      %v3624 = vld [vmem:[%s3525 + $0x310] sm:$0xff]
      %v3625 = vld [vmem:[%s3525 + $0x318] sm:$0xff]
      %v3626 = vld [vmem:[%s3525 + $0x320] sm:$0xff]
      %v3627 = vld [vmem:[%s3525 + $0x328] sm:$0xff]
      %v3628 = vld [vmem:[%s3525 + $0x330] sm:$0xff]
      %v3629 = vld [vmem:[%s3525 + $0x338] sm:$0xff]
      %v3630 = vld [vmem:[%s3525 + $0x340] sm:$0xff]
      %v3631 = vld [vmem:[%s3525 + $0x348] sm:$0xff]
      %v3632 = vld [vmem:[%s3525 + $0x350] sm:$0xff]
      %v3633 = vld [vmem:[%s3525 + $0x358] sm:$0xff]
      %v3634 = vld [vmem:[%s3525 + $0x360] sm:$0xff]
      %v3635 = vld [vmem:[%s3525 + $0x368] sm:$0xff]
      %v3636 = vld [vmem:[%s3525 + $0x370] sm:$0xff]
      %v3637 = vld [vmem:[%s3525 + $0x378] sm:$0xff]
      %v3638 = vld [vmem:[%s3525 + $0x380] sm:$0xff]
      %v3639 = vld [vmem:[%s3525 + $0x388] sm:$0xff]
      %v3640 = vld [vmem:[%s3525 + $0x390] sm:$0xff]
      %v3641 = vld [vmem:[%s3525 + $0x398] sm:$0xff]
      %v3642 = vld [vmem:[%s3525 + $0x3a0] sm:$0xff]
      %v3643 = vld [vmem:[%s3525 + $0x3a8] sm:$0xff]
      %v3644 = vld [vmem:[%s3525 + $0x3b0] sm:$0xff]
      %v3645 = vld [vmem:[%s3525 + $0x3b8] sm:$0xff]
      %v3646 = vld [vmem:[%s3525 + $0x3c0] sm:$0xff]
      %v3647 = vld [vmem:[%s3525 + $0x3c8] sm:$0xff]
      %v3648 = vld [vmem:[%s3525 + $0x3d0] sm:$0xff]
      %v3649 = vld [vmem:[%s3525 + $0x3d8] sm:$0xff]
      %v3650 = vld [vmem:[%s3525 + $0x3e0] sm:$0xff]
      %v3651 = vld [vmem:[%s3525 + $0x3e8] sm:$0xff]
      %v3652 = vld [vmem:[%s3525 + $0x3f0] sm:$0xff]
      %v3653 = vld [vmem:[%s3525 + $0x3f8] sm:$0xff]
      %s3654 = scalar_lea.vmem %s209, 12
      %v3655 = vld [vmem:[%s3654] sm:$0xf]
      %v3656 = vpack.c.bf16 %v3513, %v3509
      %v3657 = vpack.c.bf16 %v3514, %v3510
      %v3658 = vpack.c.bf16 %v3515, %v3511
      %v3659 = vpack.c.bf16 %v3516, %v3512
      %v3660 = vpack.c.bf16 %v3521, %v3517
      %v3661 = vpack.c.bf16 %v3522, %v3518
      %v3662 = vpack.c.bf16 %v3523, %v3519
      %v3663 = vpack.c.bf16 %v3524, %v3520
      %v3665 = vlaneseq
      %v3666 = vshrl.u32 %v3665, 7
      %v3667 = vsub.s32 0, %v3666
      %v3668 = vrot.slane %v3655, %v3667
      %v3669 = vlaneseq
      %v3670 = vshrl.u32 %v3669, 7
      %v3671 = vsub.s32 1, %v3670
      %v3672 = vrot.slane %v3655, %v3671
      %v3673 = vlaneseq
      %v3674 = vshrl.u32 %v3673, 7
      %v3675 = vsub.s32 2, %v3674
      %v3676 = vrot.slane %v3655, %v3675
      %v3677 = vlaneseq
      %v3678 = vshrl.u32 %v3677, 7
      %v3679 = vsub.s32 3, %v3678
      %v3680 = vrot.slane %v3655, %v3679
      %v3813 = vunpack.c.l.b16 %v3526
      %v3814 = vunpack.c.h.b16 %v3526
      %v3815 = vunpack.c.l.b16 %v3527
      %v3816 = vunpack.c.h.b16 %v3527
      %v3817 = vunpack.c.l.b16 %v3528
      %v3818 = vunpack.c.h.b16 %v3528
      %v3819 = vunpack.c.l.b16 %v3529
      %v3820 = vunpack.c.h.b16 %v3529
      %v3821 = vunpack.c.l.b16 %v3530
      %v3822 = vunpack.c.h.b16 %v3530
      %v3823 = vunpack.c.l.b16 %v3531
      %v3824 = vunpack.c.h.b16 %v3531
      %v3825 = vunpack.c.l.b16 %v3532
      %v3826 = vunpack.c.h.b16 %v3532
      %v3827 = vunpack.c.l.b16 %v3533
      %v3828 = vunpack.c.h.b16 %v3533
      %v3829 = vunpack.c.l.b16 %v3534
      %v3830 = vunpack.c.h.b16 %v3534
      %v3831 = vunpack.c.l.b16 %v3535
      %v3832 = vunpack.c.h.b16 %v3535
      %v3833 = vunpack.c.l.b16 %v3536
      %v3834 = vunpack.c.h.b16 %v3536
      %v3835 = vunpack.c.l.b16 %v3537
      %v3836 = vunpack.c.h.b16 %v3537
      %v3837 = vunpack.c.l.b16 %v3538
      %v3838 = vunpack.c.h.b16 %v3538
      %v3839 = vunpack.c.l.b16 %v3539
      %v3840 = vunpack.c.h.b16 %v3539
      %v3841 = vunpack.c.l.b16 %v3540
      %v3842 = vunpack.c.h.b16 %v3540
      %v3843 = vunpack.c.l.b16 %v3541
      %v3844 = vunpack.c.h.b16 %v3541
      %v3845 = vunpack.c.l.b16 %v3542
      %v3846 = vunpack.c.h.b16 %v3542
      %v3847 = vunpack.c.l.b16 %v3543
      %v3848 = vunpack.c.h.b16 %v3543
      %v3849 = vunpack.c.l.b16 %v3544
      %v3850 = vunpack.c.h.b16 %v3544
      %v3851 = vunpack.c.l.b16 %v3545
      %v3852 = vunpack.c.h.b16 %v3545
      %v3853 = vunpack.c.l.b16 %v3546
      %v3854 = vunpack.c.h.b16 %v3546
      %v3855 = vunpack.c.l.b16 %v3547
      %v3856 = vunpack.c.h.b16 %v3547
      %v3857 = vunpack.c.l.b16 %v3548
      %v3858 = vunpack.c.h.b16 %v3548
      %v3859 = vunpack.c.l.b16 %v3549
      %v3860 = vunpack.c.h.b16 %v3549
      %v3861 = vunpack.c.l.b16 %v3550
      %v3862 = vunpack.c.h.b16 %v3550
      %v3863 = vunpack.c.l.b16 %v3551
      %v3864 = vunpack.c.h.b16 %v3551
      %v3865 = vunpack.c.l.b16 %v3552
      %v3866 = vunpack.c.h.b16 %v3552
      %v3867 = vunpack.c.l.b16 %v3553
      %v3868 = vunpack.c.h.b16 %v3553
      %v3869 = vunpack.c.l.b16 %v3554
      %v3870 = vunpack.c.h.b16 %v3554
      %v3871 = vunpack.c.l.b16 %v3555
      %v3872 = vunpack.c.h.b16 %v3555
      %v3873 = vunpack.c.l.b16 %v3556
      %v3874 = vunpack.c.h.b16 %v3556
      %v3875 = vunpack.c.l.b16 %v3557
      %v3876 = vunpack.c.h.b16 %v3557
      %v3877 = vunpack.c.l.b16 %v3558
      %v3878 = vunpack.c.h.b16 %v3558
      %v3879 = vunpack.c.l.b16 %v3559
      %v3880 = vunpack.c.h.b16 %v3559
      %v3881 = vunpack.c.l.b16 %v3560
      %v3882 = vunpack.c.h.b16 %v3560
      %v3883 = vunpack.c.l.b16 %v3561
      %v3884 = vunpack.c.h.b16 %v3561
      %v3885 = vunpack.c.l.b16 %v3562
      %v3886 = vunpack.c.h.b16 %v3562
      %v3887 = vunpack.c.l.b16 %v3563
      %v3888 = vunpack.c.h.b16 %v3563
      %v3889 = vunpack.c.l.b16 %v3564
      %v3890 = vunpack.c.h.b16 %v3564
      %v3891 = vunpack.c.l.b16 %v3565
      %v3892 = vunpack.c.h.b16 %v3565
      %v3893 = vunpack.c.l.b16 %v3566
      %v3894 = vunpack.c.h.b16 %v3566
      %v3895 = vunpack.c.l.b16 %v3567
      %v3896 = vunpack.c.h.b16 %v3567
      %v3897 = vunpack.c.l.b16 %v3568
      %v3898 = vunpack.c.h.b16 %v3568
      %v3899 = vunpack.c.l.b16 %v3569
      %v3900 = vunpack.c.h.b16 %v3569
      %v3901 = vunpack.c.l.b16 %v3570
      %v3902 = vunpack.c.h.b16 %v3570
      %v3903 = vunpack.c.l.b16 %v3571
      %v3904 = vunpack.c.h.b16 %v3571
      %v3905 = vunpack.c.l.b16 %v3572
      %v3906 = vunpack.c.h.b16 %v3572
      %v3907 = vunpack.c.l.b16 %v3573
      %v3908 = vunpack.c.h.b16 %v3573
      %v3909 = vunpack.c.l.b16 %v3574
      %v3910 = vunpack.c.h.b16 %v3574
      %v3911 = vunpack.c.l.b16 %v3575
      %v3912 = vunpack.c.h.b16 %v3575
      %v3913 = vunpack.c.l.b16 %v3576
      %v3914 = vunpack.c.h.b16 %v3576
      %v3915 = vunpack.c.l.b16 %v3577
      %v3916 = vunpack.c.h.b16 %v3577
      %v3917 = vunpack.c.l.b16 %v3578
      %v3918 = vunpack.c.h.b16 %v3578
      %v3919 = vunpack.c.l.b16 %v3579
      %v3920 = vunpack.c.h.b16 %v3579
      %v3921 = vunpack.c.l.b16 %v3580
      %v3922 = vunpack.c.h.b16 %v3580
      %v3923 = vunpack.c.l.b16 %v3581
      %v3924 = vunpack.c.h.b16 %v3581
      %v3925 = vunpack.c.l.b16 %v3582
      %v3926 = vunpack.c.h.b16 %v3582
      %v3927 = vunpack.c.l.b16 %v3583
      %v3928 = vunpack.c.h.b16 %v3583
      %v3929 = vunpack.c.l.b16 %v3584
      %v3930 = vunpack.c.h.b16 %v3584
      %v3931 = vunpack.c.l.b16 %v3585
      %v3932 = vunpack.c.h.b16 %v3585
      %v3933 = vunpack.c.l.b16 %v3586
      %v3934 = vunpack.c.h.b16 %v3586
      %v3935 = vunpack.c.l.b16 %v3587
      %v3936 = vunpack.c.h.b16 %v3587
      %v3937 = vunpack.c.l.b16 %v3588
      %v3938 = vunpack.c.h.b16 %v3588
      %v3939 = vunpack.c.l.b16 %v3589
      %v3940 = vunpack.c.h.b16 %v3589
      %v3941 = vunpack.c.l.b16 %v3590
      %v3942 = vunpack.c.h.b16 %v3590
      %v3943 = vunpack.c.l.b16 %v3591
      %v3944 = vunpack.c.h.b16 %v3591
      %v3945 = vunpack.c.l.b16 %v3592
      %v3946 = vunpack.c.h.b16 %v3592
      %v3947 = vunpack.c.l.b16 %v3593
      %v3948 = vunpack.c.h.b16 %v3593
      %v3949 = vunpack.c.l.b16 %v3594
      %v3950 = vunpack.c.h.b16 %v3594
      %v3951 = vunpack.c.l.b16 %v3595
      %v3952 = vunpack.c.h.b16 %v3595
      %v3953 = vunpack.c.l.b16 %v3596
      %v3954 = vunpack.c.h.b16 %v3596
      %v3955 = vunpack.c.l.b16 %v3597
      %v3956 = vunpack.c.h.b16 %v3597
      %v3957 = vunpack.c.l.b16 %v3598
      %v3958 = vunpack.c.h.b16 %v3598
      %v3959 = vunpack.c.l.b16 %v3599
      %v3960 = vunpack.c.h.b16 %v3599
      %v3961 = vunpack.c.l.b16 %v3600
      %v3962 = vunpack.c.h.b16 %v3600
      %v3963 = vunpack.c.l.b16 %v3601
      %v3964 = vunpack.c.h.b16 %v3601
      %v3965 = vunpack.c.l.b16 %v3602
      %v3966 = vunpack.c.h.b16 %v3602
      %v3967 = vunpack.c.l.b16 %v3603
      %v3968 = vunpack.c.h.b16 %v3603
      %v3969 = vunpack.c.l.b16 %v3604
      %v3970 = vunpack.c.h.b16 %v3604
      %v3971 = vunpack.c.l.b16 %v3605
      %v3972 = vunpack.c.h.b16 %v3605
      %v3973 = vunpack.c.l.b16 %v3606
      %v3974 = vunpack.c.h.b16 %v3606
      %v3975 = vunpack.c.l.b16 %v3607
      %v3976 = vunpack.c.h.b16 %v3607
      %v3977 = vunpack.c.l.b16 %v3608
      %v3978 = vunpack.c.h.b16 %v3608
      %v3979 = vunpack.c.l.b16 %v3609
      %v3980 = vunpack.c.h.b16 %v3609
      %v3981 = vunpack.c.l.b16 %v3610
      %v3982 = vunpack.c.h.b16 %v3610
      %v3983 = vunpack.c.l.b16 %v3611
      %v3984 = vunpack.c.h.b16 %v3611
      %v3985 = vunpack.c.l.b16 %v3612
      %v3986 = vunpack.c.h.b16 %v3612
      %v3987 = vunpack.c.l.b16 %v3613
      %v3988 = vunpack.c.h.b16 %v3613
      %v3989 = vunpack.c.l.b16 %v3614
      %v3990 = vunpack.c.h.b16 %v3614
      %v3991 = vunpack.c.l.b16 %v3615
      %v3992 = vunpack.c.h.b16 %v3615
      %v3993 = vunpack.c.l.b16 %v3616
      %v3994 = vunpack.c.h.b16 %v3616
      %v3995 = vunpack.c.l.b16 %v3617
      %v3996 = vunpack.c.h.b16 %v3617
      %v3997 = vunpack.c.l.b16 %v3618
      %v3998 = vunpack.c.h.b16 %v3618
      %v3999 = vunpack.c.l.b16 %v3619
      %v4000 = vunpack.c.h.b16 %v3619
      %v4001 = vunpack.c.l.b16 %v3620
      %v4002 = vunpack.c.h.b16 %v3620
      %v4003 = vunpack.c.l.b16 %v3621
      %v4004 = vunpack.c.h.b16 %v3621
      %v4005 = vunpack.c.l.b16 %v3622
      %v4006 = vunpack.c.h.b16 %v3622
      %v4007 = vunpack.c.l.b16 %v3623
      %v4008 = vunpack.c.h.b16 %v3623
      %v4009 = vunpack.c.l.b16 %v3624
      %v4010 = vunpack.c.h.b16 %v3624
      %v4011 = vunpack.c.l.b16 %v3625
      %v4012 = vunpack.c.h.b16 %v3625
      %v4013 = vunpack.c.l.b16 %v3626
      %v4014 = vunpack.c.h.b16 %v3626
      %v4015 = vunpack.c.l.b16 %v3627
      %v4016 = vunpack.c.h.b16 %v3627
      %v4017 = vunpack.c.l.b16 %v3628
      %v4018 = vunpack.c.h.b16 %v3628
      %v4019 = vunpack.c.l.b16 %v3629
      %v4020 = vunpack.c.h.b16 %v3629
      %v4021 = vunpack.c.l.b16 %v3630
      %v4022 = vunpack.c.h.b16 %v3630
      %v4023 = vunpack.c.l.b16 %v3631
      %v4024 = vunpack.c.h.b16 %v3631
      %v4025 = vunpack.c.l.b16 %v3632
      %v4026 = vunpack.c.h.b16 %v3632
      %v4027 = vunpack.c.l.b16 %v3633
      %v4028 = vunpack.c.h.b16 %v3633
      %v4029 = vunpack.c.l.b16 %v3634
      %v4030 = vunpack.c.h.b16 %v3634
      %v4031 = vunpack.c.l.b16 %v3635
      %v4032 = vunpack.c.h.b16 %v3635
      %v4033 = vunpack.c.l.b16 %v3636
      %v4034 = vunpack.c.h.b16 %v3636
      %v4035 = vunpack.c.l.b16 %v3637
      %v4036 = vunpack.c.h.b16 %v3637
      %v4037 = vunpack.c.l.b16 %v3638
      %v4038 = vunpack.c.h.b16 %v3638
      %v4039 = vunpack.c.l.b16 %v3639
      %v4040 = vunpack.c.h.b16 %v3639
      %v4041 = vunpack.c.l.b16 %v3640
      %v4042 = vunpack.c.h.b16 %v3640
      %v4043 = vunpack.c.l.b16 %v3641
      %v4044 = vunpack.c.h.b16 %v3641
      %v4045 = vunpack.c.l.b16 %v3642
      %v4046 = vunpack.c.h.b16 %v3642
      %v4047 = vunpack.c.l.b16 %v3643
      %v4048 = vunpack.c.h.b16 %v3643
      %v4049 = vunpack.c.l.b16 %v3644
      %v4050 = vunpack.c.h.b16 %v3644
      %v4051 = vunpack.c.l.b16 %v3645
      %v4052 = vunpack.c.h.b16 %v3645
      %v4053 = vunpack.c.l.b16 %v3646
      %v4054 = vunpack.c.h.b16 %v3646
      %v4055 = vunpack.c.l.b16 %v3647
      %v4056 = vunpack.c.h.b16 %v3647
      %v4057 = vunpack.c.l.b16 %v3648
      %v4058 = vunpack.c.h.b16 %v3648
      %v4059 = vunpack.c.l.b16 %v3649
      %v4060 = vunpack.c.h.b16 %v3649
      %v4061 = vunpack.c.l.b16 %v3650
      %v4062 = vunpack.c.h.b16 %v3650
      %v4063 = vunpack.c.l.b16 %v3651
      %v4064 = vunpack.c.h.b16 %v3651
      %v4065 = vunpack.c.l.b16 %v3652
      %v4066 = vunpack.c.h.b16 %v3652
      %v4067 = vunpack.c.l.b16 %v3653
      %v4068 = vunpack.c.h.b16 %v3653
      %v4069 = vpack.c.b16 %v3817, %v3813
      %v4070 = vpack.c.b16 %v3818, %v3814
      %v4071 = vpack.c.b16 %v3819, %v3815
      %v4072 = vpack.c.b16 %v3820, %v3816
      %v4073 = vpack.c.b16 %v3825, %v3821
      %v4074 = vpack.c.b16 %v3826, %v3822
      %v4075 = vpack.c.b16 %v3827, %v3823
      %v4076 = vpack.c.b16 %v3828, %v3824
      %v4077 = vpack.c.b16 %v3833, %v3829
      %v4078 = vpack.c.b16 %v3834, %v3830
      %v4079 = vpack.c.b16 %v3835, %v3831
      %v4080 = vpack.c.b16 %v3836, %v3832
      %v4081 = vpack.c.b16 %v3841, %v3837
      %v4082 = vpack.c.b16 %v3842, %v3838
      %v4083 = vpack.c.b16 %v3843, %v3839
      %v4084 = vpack.c.b16 %v3844, %v3840
      %v4085 = vpack.c.b16 %v3849, %v3845
      %v4086 = vpack.c.b16 %v3850, %v3846
      %v4087 = vpack.c.b16 %v3851, %v3847
      %v4088 = vpack.c.b16 %v3852, %v3848
      %v4089 = vpack.c.b16 %v3857, %v3853
      %v4090 = vpack.c.b16 %v3858, %v3854
      %v4091 = vpack.c.b16 %v3859, %v3855
      %v4092 = vpack.c.b16 %v3860, %v3856
      %v4093 = vpack.c.b16 %v3865, %v3861
      %v4094 = vpack.c.b16 %v3866, %v3862
      %v4095 = vpack.c.b16 %v3867, %v3863
      %v4096 = vpack.c.b16 %v3868, %v3864
      %v4097 = vpack.c.b16 %v3873, %v3869
      %v4098 = vpack.c.b16 %v3874, %v3870
      %v4099 = vpack.c.b16 %v3875, %v3871
      %v4100 = vpack.c.b16 %v3876, %v3872
      %v4101 = vpack.c.b16 %v3881, %v3877
      %v4102 = vpack.c.b16 %v3882, %v3878
      %v4103 = vpack.c.b16 %v3883, %v3879
      %v4104 = vpack.c.b16 %v3884, %v3880
      %v4105 = vpack.c.b16 %v3889, %v3885
      %v4106 = vpack.c.b16 %v3890, %v3886
      %v4107 = vpack.c.b16 %v3891, %v3887
      %v4108 = vpack.c.b16 %v3892, %v3888
      %v4109 = vpack.c.b16 %v3897, %v3893
      %v4110 = vpack.c.b16 %v3898, %v3894
      %v4111 = vpack.c.b16 %v3899, %v3895
      %v4112 = vpack.c.b16 %v3900, %v3896
      %v4113 = vpack.c.b16 %v3905, %v3901
      %v4114 = vpack.c.b16 %v3906, %v3902
      %v4115 = vpack.c.b16 %v3907, %v3903
      %v4116 = vpack.c.b16 %v3908, %v3904
      %v4117 = vpack.c.b16 %v3913, %v3909
      %v4118 = vpack.c.b16 %v3914, %v3910
      %v4119 = vpack.c.b16 %v3915, %v3911
      %v4120 = vpack.c.b16 %v3916, %v3912
      %v4121 = vpack.c.b16 %v3921, %v3917
      %v4122 = vpack.c.b16 %v3922, %v3918
      %v4123 = vpack.c.b16 %v3923, %v3919
      %v4124 = vpack.c.b16 %v3924, %v3920
      %v4125 = vpack.c.b16 %v3929, %v3925
      %v4126 = vpack.c.b16 %v3930, %v3926
      %v4127 = vpack.c.b16 %v3931, %v3927
      %v4128 = vpack.c.b16 %v3932, %v3928
      %v4129 = vpack.c.b16 %v3937, %v3933
      %v4130 = vpack.c.b16 %v3938, %v3934
      %v4131 = vpack.c.b16 %v3939, %v3935
      %v4132 = vpack.c.b16 %v3940, %v3936
      %v4133 = vpack.c.b16 %v3945, %v3941
      %v4134 = vpack.c.b16 %v3946, %v3942
      %v4135 = vpack.c.b16 %v3947, %v3943
      %v4136 = vpack.c.b16 %v3948, %v3944
      %v4137 = vpack.c.b16 %v3953, %v3949
      %v4138 = vpack.c.b16 %v3954, %v3950
      %v4139 = vpack.c.b16 %v3955, %v3951
      %v4140 = vpack.c.b16 %v3956, %v3952
      %v4141 = vpack.c.b16 %v3961, %v3957
      %v4142 = vpack.c.b16 %v3962, %v3958
      %v4143 = vpack.c.b16 %v3963, %v3959
      %v4144 = vpack.c.b16 %v3964, %v3960
      %v4145 = vpack.c.b16 %v3969, %v3965
      %v4146 = vpack.c.b16 %v3970, %v3966
      %v4147 = vpack.c.b16 %v3971, %v3967
      %v4148 = vpack.c.b16 %v3972, %v3968
      %v4149 = vpack.c.b16 %v3977, %v3973
      %v4150 = vpack.c.b16 %v3978, %v3974
      %v4151 = vpack.c.b16 %v3979, %v3975
      %v4152 = vpack.c.b16 %v3980, %v3976
      %v4153 = vpack.c.b16 %v3985, %v3981
      %v4154 = vpack.c.b16 %v3986, %v3982
      %v4155 = vpack.c.b16 %v3987, %v3983
      %v4156 = vpack.c.b16 %v3988, %v3984
      %v4157 = vpack.c.b16 %v3993, %v3989
      %v4158 = vpack.c.b16 %v3994, %v3990
      %v4159 = vpack.c.b16 %v3995, %v3991
      %v4160 = vpack.c.b16 %v3996, %v3992
      %v4161 = vpack.c.b16 %v4001, %v3997
      %v4162 = vpack.c.b16 %v4002, %v3998
      %v4163 = vpack.c.b16 %v4003, %v3999
      %v4164 = vpack.c.b16 %v4004, %v4000
      %v4165 = vpack.c.b16 %v4009, %v4005
      %v4166 = vpack.c.b16 %v4010, %v4006
      %v4167 = vpack.c.b16 %v4011, %v4007
      %v4168 = vpack.c.b16 %v4012, %v4008
      %v4169 = vpack.c.b16 %v4017, %v4013
      %v4170 = vpack.c.b16 %v4018, %v4014
      %v4171 = vpack.c.b16 %v4019, %v4015
      %v4172 = vpack.c.b16 %v4020, %v4016
      %v4173 = vpack.c.b16 %v4025, %v4021
      %v4174 = vpack.c.b16 %v4026, %v4022
      %v4175 = vpack.c.b16 %v4027, %v4023
      %v4176 = vpack.c.b16 %v4028, %v4024
      %v4177 = vpack.c.b16 %v4033, %v4029
      %v4178 = vpack.c.b16 %v4034, %v4030
      %v4179 = vpack.c.b16 %v4035, %v4031
      %v4180 = vpack.c.b16 %v4036, %v4032
      %v4181 = vpack.c.b16 %v4041, %v4037
      %v4182 = vpack.c.b16 %v4042, %v4038
      %v4183 = vpack.c.b16 %v4043, %v4039
      %v4184 = vpack.c.b16 %v4044, %v4040
      %v4185 = vpack.c.b16 %v4049, %v4045
      %v4186 = vpack.c.b16 %v4050, %v4046
      %v4187 = vpack.c.b16 %v4051, %v4047
      %v4188 = vpack.c.b16 %v4052, %v4048
      %v4189 = vpack.c.b16 %v4057, %v4053
      %v4190 = vpack.c.b16 %v4058, %v4054
      %v4191 = vpack.c.b16 %v4059, %v4055
      %v4192 = vpack.c.b16 %v4060, %v4056
      %v4193 = vpack.c.b16 %v4065, %v4061
      %v4194 = vpack.c.b16 %v4066, %v4062
      %v4195 = vpack.c.b16 %v4067, %v4063
      %v4196 = vpack.c.b16 %v4068, %v4064
      %4325 = vmatprep.subr.bf16.mxu0 %v4070
      %4326 = vmatpush1.bf16.msra.mxu0 %v4069
      %4327 = vmatprep.subr.bf16.mxu0 %v4074
      %4328 = vmatpush1.bf16.msra.mxu0 %v4073
      %4329 = vmatprep.subr.bf16.mxu0 %v4078
      %4330 = vmatpush1.bf16.msra.mxu0 %v4077
      %4331 = vmatprep.subr.bf16.mxu0 %v4082
      %4332 = vmatpush1.bf16.msra.mxu0 %v4081
      %4333 = vmatprep.subr.bf16.mxu0 %v4086
      %4334 = vmatpush1.bf16.msra.mxu0 %v4085
      %4335 = vmatprep.subr.bf16.mxu0 %v4090
      %4336 = vmatpush1.bf16.msra.mxu0 %v4089
      %4337 = vmatprep.subr.bf16.mxu0 %v4094
      %4338 = vmatpush1.bf16.msra.mxu0 %v4093
      %4339 = vmatprep.subr.bf16.mxu0 %v4098
      %4340 = vmatpush1.bf16.msra.mxu0 %v4097
      %4341 = vmatprep.subr.bf16.mxu0 %v4102
      %4342 = vmatpush1.bf16.msra.mxu0 %v4101
      %4343 = vmatprep.subr.bf16.mxu0 %v4106
      %4344 = vmatpush1.bf16.msra.mxu0 %v4105
      %4345 = vmatprep.subr.bf16.mxu0 %v4110
      %4346 = vmatpush1.bf16.msra.mxu0 %v4109
      %4347 = vmatprep.subr.bf16.mxu0 %v4114
      %4348 = vmatpush1.bf16.msra.mxu0 %v4113
      %4349 = vmatprep.subr.bf16.mxu0 %v4118
      %4350 = vmatpush1.bf16.msra.mxu0 %v4117
      %4351 = vmatprep.subr.bf16.mxu0 %v4122
      %4352 = vmatpush1.bf16.msra.mxu0 %v4121
      %4353 = vmatprep.subr.bf16.mxu0 %v4126
      %4354 = vmatpush1.bf16.msra.mxu0 %v4125
      %4355 = vmatprep.subr.bf16.mxu0 %v4130
      %4356 = vmatpush1.bf16.msra.mxu0 %v4129
      %4357 = vmatprep.mubr.bf16.mxu0 %v3657
      %4358 = vmatmul.mubr.bf16.gmra.mrb[0].mxu0 %v3656
      %v4359 = vpop.f32.mrb[0].mxu0
      %v4360 = vadd.f32 %v3668, %v4359
      %v4361 = vpop.f32.mrb[0].mxu0
      %v4362 = vadd.f32 %v3672, %v4361
      %v4363 = vpop.f32.mrb[0].mxu0
      %v4364 = vadd.f32 %v3668, %v4363
      %v4365 = vpop.f32.mrb[0].mxu0
      %v4366 = vadd.f32 %v3672, %v4365
      %4367 = vmatprep.mubr.bf16.mxu0 %v3661
      %4368 = vmatmul.mubr.bf16.gmra.mrb[0].mxu0 %v3660
      %v4369 = vpop.f32.mrb[0].mxu0
      %v4370 = vadd.f32 %v3668, %v4369
      %v4371 = vpop.f32.mrb[0].mxu0
      %v4372 = vadd.f32 %v3672, %v4371
      %v4373 = vpop.f32.mrb[0].mxu0
      %v4374 = vadd.f32 %v3668, %v4373
      %v4375 = vpop.f32.mrb[0].mxu0
      %v4376 = vadd.f32 %v3672, %v4375
      %4377 = vdwg.mxu0
      %4378 = vmatprep.subr.bf16.mxu0 %v4134
      %4379 = vmatpush1.bf16.msra.mxu0 %v4133
      %4380 = vmatprep.subr.bf16.mxu0 %v4138
      %4381 = vmatpush1.bf16.msra.mxu0 %v4137
      %4382 = vmatprep.subr.bf16.mxu0 %v4142
      %4383 = vmatpush1.bf16.msra.mxu0 %v4141
      %4384 = vmatprep.subr.bf16.mxu0 %v4146
      %4385 = vmatpush1.bf16.msra.mxu0 %v4145
      %4386 = vmatprep.subr.bf16.mxu0 %v4150
      %4387 = vmatpush1.bf16.msra.mxu0 %v4149
      %4388 = vmatprep.subr.bf16.mxu0 %v4154
      %4389 = vmatpush1.bf16.msra.mxu0 %v4153
      %4390 = vmatprep.subr.bf16.mxu0 %v4158
      %4391 = vmatpush1.bf16.msra.mxu0 %v4157
      %4392 = vmatprep.subr.bf16.mxu0 %v4162
      %4393 = vmatpush1.bf16.msra.mxu0 %v4161
      %4394 = vmatprep.subr.bf16.mxu0 %v4166
      %4395 = vmatpush1.bf16.msra.mxu0 %v4165
      %4396 = vmatprep.subr.bf16.mxu0 %v4170
      %4397 = vmatpush1.bf16.msra.mxu0 %v4169
      %4398 = vmatprep.subr.bf16.mxu0 %v4174
      %4399 = vmatpush1.bf16.msra.mxu0 %v4173
      %4400 = vmatprep.subr.bf16.mxu0 %v4178
      %4401 = vmatpush1.bf16.msra.mxu0 %v4177
      %4402 = vmatprep.subr.bf16.mxu0 %v4182
      %4403 = vmatpush1.bf16.msra.mxu0 %v4181
      %4404 = vmatprep.subr.bf16.mxu0 %v4186
      %4405 = vmatpush1.bf16.msra.mxu0 %v4185
      %4406 = vmatprep.subr.bf16.mxu0 %v4190
      %4407 = vmatpush1.bf16.msra.mxu0 %v4189
      %4408 = vmatprep.subr.bf16.mxu0 %v4194
      %4409 = vmatpush1.bf16.msra.mxu0 %v4193
      %4410 = vmatprep.mubr.bf16.mxu0 %v3659
      %4411 = vmatmul.mubr.bf16.gmra.mrb[0].mxu0 %v3658
      %v4412 = vpop.f32.mrb[0].mxu0
      %v4413 = vadd.f32 %v4360, %v4412
      %v4414 = vpop.f32.mrb[0].mxu0
      %v4415 = vadd.f32 %v4362, %v4414
      %v4416 = vpop.f32.mrb[0].mxu0
      %v4417 = vadd.f32 %v4364, %v4416
      %v4418 = vpop.f32.mrb[0].mxu0
      %v4419 = vadd.f32 %v4366, %v4418
      %4420 = vmatprep.mubr.bf16.mxu0 %v3663
      %4421 = vmatmul.mubr.bf16.gmra.mrb[0].mxu0 %v3662
      %v4422 = vpop.f32.mrb[0].mxu0
      %v4423 = vadd.f32 %v4370, %v4422
      %v4424 = vpop.f32.mrb[0].mxu0
      %v4425 = vadd.f32 %v4372, %v4424
      %v4426 = vpop.f32.mrb[0].mxu0
      %v4427 = vadd.f32 %v4374, %v4426
      %v4428 = vpop.f32.mrb[0].mxu0
      %v4429 = vadd.f32 %v4376, %v4428
      %4430 = vdwg.mxu0
      %4431 = vmatprep.subr.bf16.mxu0 %v4072
      %4432 = vmatpush1.bf16.msra.mxu0 %v4071
      %4433 = vmatprep.subr.bf16.mxu0 %v4076
      %4434 = vmatpush1.bf16.msra.mxu0 %v4075
      %4435 = vmatprep.subr.bf16.mxu0 %v4080
      %4436 = vmatpush1.bf16.msra.mxu0 %v4079
      %4437 = vmatprep.subr.bf16.mxu0 %v4084
      %4438 = vmatpush1.bf16.msra.mxu0 %v4083
      %4439 = vmatprep.subr.bf16.mxu0 %v4088
      %4440 = vmatpush1.bf16.msra.mxu0 %v4087
      %4441 = vmatprep.subr.bf16.mxu0 %v4092
      %4442 = vmatpush1.bf16.msra.mxu0 %v4091
      %4443 = vmatprep.subr.bf16.mxu0 %v4096
      %4444 = vmatpush1.bf16.msra.mxu0 %v4095
      %4445 = vmatprep.subr.bf16.mxu0 %v4100
      %4446 = vmatpush1.bf16.msra.mxu0 %v4099
      %4447 = vmatprep.subr.bf16.mxu0 %v4104
      %4448 = vmatpush1.bf16.msra.mxu0 %v4103
      %4449 = vmatprep.subr.bf16.mxu0 %v4108
      %4450 = vmatpush1.bf16.msra.mxu0 %v4107
      %4451 = vmatprep.subr.bf16.mxu0 %v4112
      %4452 = vmatpush1.bf16.msra.mxu0 %v4111
      %4453 = vmatprep.subr.bf16.mxu0 %v4116
      %4454 = vmatpush1.bf16.msra.mxu0 %v4115
      %4455 = vmatprep.subr.bf16.mxu0 %v4120
      %4456 = vmatpush1.bf16.msra.mxu0 %v4119
      %4457 = vmatprep.subr.bf16.mxu0 %v4124
      %4458 = vmatpush1.bf16.msra.mxu0 %v4123
      %4459 = vmatprep.subr.bf16.mxu0 %v4128
      %4460 = vmatpush1.bf16.msra.mxu0 %v4127
      %4461 = vmatprep.subr.bf16.mxu0 %v4132
      %4462 = vmatpush1.bf16.msra.mxu0 %v4131
      %4463 = vmatprep.mubr.bf16.mxu0 %v3657
      %4464 = vmatmul.mubr.bf16.gmra.mrb[0].mxu0 %v3656
      %v4465 = vpop.f32.mrb[0].mxu0
      %v4466 = vadd.f32 %v3676, %v4465
      %v4467 = vpop.f32.mrb[0].mxu0
      %v4468 = vadd.f32 %v3680, %v4467
      %v4469 = vpop.f32.mrb[0].mxu0
      %v4470 = vadd.f32 %v3676, %v4469
      %v4471 = vpop.f32.mrb[0].mxu0
      %v4472 = vadd.f32 %v3680, %v4471
      %4473 = vmatprep.mubr.bf16.mxu0 %v3661
      %4474 = vmatmul.mubr.bf16.gmra.mrb[0].mxu0 %v3660
      %v4475 = vpop.f32.mrb[0].mxu0
      %v4476 = vadd.f32 %v3676, %v4475
      %v4477 = vpop.f32.mrb[0].mxu0
      %v4478 = vadd.f32 %v3680, %v4477
      %v4479 = vpop.f32.mrb[0].mxu0
      %v4480 = vadd.f32 %v3676, %v4479
      %v4481 = vpop.f32.mrb[0].mxu0
      %v4482 = vadd.f32 %v3680, %v4481
      %4483 = vdwg.mxu0
      %4484 = vmatprep.subr.bf16.mxu0 %v4136
      %4485 = vmatpush1.bf16.msra.mxu0 %v4135
      %4486 = vmatprep.subr.bf16.mxu0 %v4140
      %4487 = vmatpush1.bf16.msra.mxu0 %v4139
      %4488 = vmatprep.subr.bf16.mxu0 %v4144
      %4489 = vmatpush1.bf16.msra.mxu0 %v4143
      %4490 = vmatprep.subr.bf16.mxu0 %v4148
      %4491 = vmatpush1.bf16.msra.mxu0 %v4147
      %4492 = vmatprep.subr.bf16.mxu0 %v4152
      %4493 = vmatpush1.bf16.msra.mxu0 %v4151
      %4494 = vmatprep.subr.bf16.mxu0 %v4156
      %4495 = vmatpush1.bf16.msra.mxu0 %v4155
      %4496 = vmatprep.subr.bf16.mxu0 %v4160
      %4497 = vmatpush1.bf16.msra.mxu0 %v4159
      %4498 = vmatprep.subr.bf16.mxu0 %v4164
      %4499 = vmatpush1.bf16.msra.mxu0 %v4163
      %4500 = vmatprep.subr.bf16.mxu0 %v4168
      %4501 = vmatpush1.bf16.msra.mxu0 %v4167
      %4502 = vmatprep.subr.bf16.mxu0 %v4172
      %4503 = vmatpush1.bf16.msra.mxu0 %v4171
      %4504 = vmatprep.subr.bf16.mxu0 %v4176
      %4505 = vmatpush1.bf16.msra.mxu0 %v4175
      %4506 = vmatprep.subr.bf16.mxu0 %v4180
      %4507 = vmatpush1.bf16.msra.mxu0 %v4179
      %4508 = vmatprep.subr.bf16.mxu0 %v4184
      %4509 = vmatpush1.bf16.msra.mxu0 %v4183
      %4510 = vmatprep.subr.bf16.mxu0 %v4188
      %4511 = vmatpush1.bf16.msra.mxu0 %v4187
      %4512 = vmatprep.subr.bf16.mxu0 %v4192
      %4513 = vmatpush1.bf16.msra.mxu0 %v4191
      %4514 = vmatprep.subr.bf16.mxu0 %v4196
      %4515 = vmatpush1.bf16.msra.mxu0 %v4195
      %4516 = vmatprep.mubr.bf16.mxu0 %v3659
      %4517 = vmatmul.mubr.bf16.gmra.mrb[0].mxu0 %v3658
      %v4518 = vpop.f32.mrb[0].mxu0
      %v4519 = vadd.f32 %v4466, %v4518
      %v4520 = vpop.f32.mrb[0].mxu0
      %v4521 = vadd.f32 %v4468, %v4520
      %v4522 = vpop.f32.mrb[0].mxu0
      %v4523 = vadd.f32 %v4470, %v4522
      %v4524 = vpop.f32.mrb[0].mxu0
      %v4525 = vadd.f32 %v4472, %v4524
      %4526 = vmatprep.mubr.bf16.mxu0 %v3663
      %4527 = vmatmul.mubr.bf16.gmra.mrb[0].mxu0 %v3662
      %v4528 = vpop.f32.mrb[0].mxu0
      %v4529 = vadd.f32 %v4476, %v4528
      %v4530 = vpop.f32.mrb[0].mxu0
      %v4531 = vadd.f32 %v4478, %v4530
      %v4532 = vpop.f32.mrb[0].mxu0
      %v4533 = vadd.f32 %v4480, %v4532
      %v4534 = vpop.f32.mrb[0].mxu0
      %v4535 = vadd.f32 %v4482, %v4534
      %4536 = vdwg.mxu0
      %v4537 = vmul.f32 %v4413, 0.2
      %v4538 = vmul.f32 %v4415, 0.2
      %v4539 = vmul.f32 %v4519, 0.2
      %v4540 = vmul.f32 %v4521, 0.2
      %v4541 = vmul.f32 %v4417, 0.2
      %v4542 = vmul.f32 %v4419, 0.2
      %v4543 = vmul.f32 %v4523, 0.2
      %v4544 = vmul.f32 %v4525, 0.2
      %v4545 = vmul.f32 %v4423, 0.2
      %v4546 = vmul.f32 %v4425, 0.2
      %v4547 = vmul.f32 %v4529, 0.2
      %v4548 = vmul.f32 %v4531, 0.2
      %v4549 = vmul.f32 %v4427, 0.2
      %v4550 = vmul.f32 %v4429, 0.2
      %v4551 = vmul.f32 %v4533, 0.2
      %v4552 = vmul.f32 %v4535, 0.2
      %v4553 = vmax.f32 %v4413, %v4537
      %v4554 = vmax.f32 %v4415, %v4538
      %v4555 = vmax.f32 %v4519, %v4539
      %v4556 = vmax.f32 %v4521, %v4540
      %v4557 = vmax.f32 %v4417, %v4541
      %v4558 = vmax.f32 %v4419, %v4542
      %v4559 = vmax.f32 %v4523, %v4543
      %v4560 = vmax.f32 %v4525, %v4544
      %v4561 = vmax.f32 %v4423, %v4545
      %v4562 = vmax.f32 %v4425, %v4546
      %v4563 = vmax.f32 %v4529, %v4547
      %v4564 = vmax.f32 %v4531, %v4548
      %v4565 = vmax.f32 %v4427, %v4549
      %v4566 = vmax.f32 %v4429, %v4550
      %v4567 = vmax.f32 %v4533, %v4551
      %v4568 = vmax.f32 %v4535, %v4552
      %v4569 = vmul.f32 %v4553, 1.4142135
      %v4570 = vmul.f32 %v4554, 1.4142135
      %v4571 = vmul.f32 %v4555, 1.4142135
      %v4572 = vmul.f32 %v4556, 1.4142135
      %v4573 = vmul.f32 %v4557, 1.4142135
      %v4574 = vmul.f32 %v4558, 1.4142135
      %v4575 = vmul.f32 %v4559, 1.4142135
      %v4576 = vmul.f32 %v4560, 1.4142135
      %v4577 = vmul.f32 %v4561, 1.4142135
      %v4578 = vmul.f32 %v4562, 1.4142135
      %v4579 = vmul.f32 %v4563, 1.4142135
      %v4580 = vmul.f32 %v4564, 1.4142135
      %v4581 = vmul.f32 %v4565, 1.4142135
      %v4582 = vmul.f32 %v4566, 1.4142135
      %v4583 = vmul.f32 %v4567, 1.4142135
      %v4584 = vmul.f32 %v4568, 1.4142135
      %4585 = vst [vmem:[%s214] sm:$0xff] %v4569
      %4586 = vst [vmem:[%s214 + $0x8] sm:$0xff] %v4570
      %4587 = vst [vmem:[%s214 + $0x10] sm:$0xff] %v4571
      %4588 = vst [vmem:[%s214 + $0x18] sm:$0xff] %v4572
      %4589 = vst [vmem:[%s214 + $0x20] sm:$0xff] %v4573
      %4590 = vst [vmem:[%s214 + $0x28] sm:$0xff] %v4574
      %4591 = vst [vmem:[%s214 + $0x30] sm:$0xff] %v4575
      %4592 = vst [vmem:[%s214 + $0x38] sm:$0xff] %v4576
      %4593 = vst [vmem:[%s214 + $0x40] sm:$0xff] %v4577
      %4594 = vst [vmem:[%s214 + $0x48] sm:$0xff] %v4578
      %4595 = vst [vmem:[%s214 + $0x50] sm:$0xff] %v4579
      %4596 = vst [vmem:[%s214 + $0x58] sm:$0xff] %v4580
      %4597 = vst [vmem:[%s214 + $0x60] sm:$0xff] %v4581
      %4598 = vst [vmem:[%s214 + $0x68] sm:$0xff] %v4582
      %4599 = vst [vmem:[%s214 + $0x70] sm:$0xff] %v4583
      %4600 = vst [vmem:[%s214 + $0x78] sm:$0xff] %v4584
      %p4601 = scmp.lt.s32.totalorder %s21, 2
      %s4602 = scalar_select %p4601, %s21, 2
      %s4603 = smul.addr %s4602, 16
      %s4604 = smul.addr %s4603, 8
      %s4605 = scalar_lea.vmem %s4, %s4604
      // Predicated region
      $region33: #{_lambda_.1} parent=31 // pred_check
        %p4606 = pneg %p117
      $region34: #{_lambda_.1} parent=31 // pred_check_branch
        %4608 = sbr.rel (%p4606) target = $region36
      $region35: #{_lambda_.1} parent=31 // pred_region
        _
      $region36: #{_lambda_.1} parent=31 // pred_fallthru
        _
    $region32: #{_lambda_.1} parent=5 // pred_fallthru
      _
    %p4609 = scmp.le.s32.totalorder 2, %s16
    // Predicated region
    $region37: #{_lambda_.1} parent=5 // pred_check
      %p4610 = pneg %p4609
    $region38: #{_lambda_.1} parent=5 // pred_check_branch
      %4612 = sbr.rel (%p4610) target = $region40
    $region39: #{_lambda_.1} parent=5 // pred_region
      %s4613 = ssub.s32 %s16, 2
      // Predicated region
      $region41: #{_lambda_.1} parent=39 // pred_check
        %p4614 = pneg %p123
      $region42: #{_lambda_.1} parent=39 // pred_check_branch
        %4616 = sbr.rel (%p4614) target = $region44
      $region43: #{_lambda_.1} parent=39 // pred_region
        %p4617 = scmp.lt.s32.totalorder %s22, 2
        %s4618 = scalar_select %p4617, %s22, 2
        %s4619 = smul.addr %s4618, 16
        %s4620 = smul.addr %s4619, 8
        %s4621 = scalar_lea.vmem %s4, %s4620
      $region44: #{_lambda_.1} parent=39 // pred_fallthru
        _
    $region40: #{_lambda_.1} parent=5 // pred_fallthru
      _
  $region6: #{_lambda_.1} parent=0 // loop_footer
    %s20 = sadd.s32 1, %s16
  $region7: #{_lambda_.1} parent=0 // loop_footer_branch
    %15 = sbr.rel target = $region3
  $region8: #{_lambda_.1} parent=0 // loop_exit
    _

</llo_original>
